<compile_context>
chip_gen: v5e
topology: v5e:2x2
jax: 0.10.0
libtpu: 0.0.40
codegen_flags: <defaults>
</compile_context>

<pallas_src>
import functools
import math

import jax
import jax.numpy as jnp
from jax.experimental import pallas as pl
from jax.experimental.pallas import tpu as pltpu


def _make_freq_bands(max_freq, num_freqs, log_sample=True):
    # Matches torch: 2 ** linspace(0, max_freq, num_freqs)   (log_sample=True)
    #            or  linspace(2**0, 2**max_freq, num_freqs)  (log_sample=False)
    if num_freqs == 1:
        return [1.0]
    if log_sample:
        step = max_freq / (num_freqs - 1)
        return [2.0 ** (i * step) for i in range(num_freqs)]
    lo, hi = 2.0 ** 0, 2.0 ** max_freq
    step = (hi - lo) / (num_freqs - 1)
    return [lo + i * step for i in range(num_freqs)]


def _sublane(dtype):
    # Native sublane tiling granularity per element width.
    return {4: 8, 2: 16, 1: 32}.get(jnp.dtype(dtype).itemsize, 8)


def _pe_kernel(x_ref, o_ref, *, freq_bands, include_input, doublings):
    # x_ref: (tr, C) lane-dense tile of flattened input elements.
    # o_ref: (n_funcs, tr, C) tile; o_ref[j] = f_j(x) elementwise.
    # Every store writes a full dense (tr, C) tile -> unmasked, aligned vst.
    x = x_ref[...].astype(jnp.float32)          # compute in f32 on all gens
    j = 0
    if include_input:
        o_ref[0] = x.astype(o_ref.dtype)
        j = 1
    if doublings is None:
        for f in freq_bands:
            xf = x * jnp.float32(f)
            o_ref[j] = jnp.sin(xf).astype(o_ref.dtype)
            o_ref[j + 1] = jnp.cos(xf).astype(o_ref.dtype)
            j += 2
    else:
        # Base band at full accuracy; higher bands (exact 2^doublings ratio)
        # via double-angle recurrences -> only 2 transcendentals per element.
        xf = x * jnp.float32(freq_bands[0])
        s = jnp.sin(xf)
        c = jnp.cos(xf)
        o_ref[j] = s.astype(o_ref.dtype)
        o_ref[j + 1] = c.astype(o_ref.dtype)
        j += 2
        for _ in freq_bands[1:]:
            for _ in range(doublings):
                s, c = 2.0 * s * c, c * c - s * s
            o_ref[j] = s.astype(o_ref.dtype)
            o_ref[j + 1] = c.astype(o_ref.dtype)
            j += 2


def positional_encoding(x, *, input_dim, max_freq, num_freqs,
                        include_input=True, log_sample=True,
                        block_rows=256, lane_width=512, out_dtype=None,
                        torch_order=True, use_recurrence=False):
    """Pallas TPU implementation of PositionalEncoding.forward.

    x: (..., input_dim).
    torch_order=True  -> (..., input_dim * n_funcs) in the torch concat order
                         [x, sin(f0 x), cos(f0 x), sin(f1 x), ...] (wrapper
                         transpose; exact module semantics).
    torch_order=False -> (n_funcs, ..., input_dim) func-major fast path: no
                         full-output HBM transpose; fold the permutation into
                         the consumer (e.g. next layer's weight rows).
    out_dtype=jnp.bfloat16 halves output HBM traffic; compute stays f32.
    use_recurrence=True enables the double-angle recurrence (accuracy-gated,
    only taken when log_sample and the band step is a positive integer).
    """
    assert x.shape[-1] == input_dim
    assert lane_width % 128 == 0
    freq_bands = _make_freq_bands(max_freq, num_freqs, log_sample)
    n_funcs = (1 if include_input else 0) + 2 * num_freqs
    output_dim = input_dim * n_funcs
    out_dtype = x.dtype if out_dtype is None else jnp.dtype(out_dtype)

    # Double-angle recurrence only when band ratios are exact powers of two.
    doublings = None
    if use_recurrence and log_sample and num_freqs > 1:
        step = max_freq / (num_freqs - 1)
        if step > 0 and float(step).is_integer():
            doublings = int(step)

    lead_shape = x.shape[:-1]
    n_rows = int(math.prod(lead_shape)) if lead_shape else 1
    m = n_rows * input_dim                       # total scalar elements

    # Flat, lane-dense slab geometry (rows x lane_width).
    sub = max(_sublane(x.dtype), _sublane(out_dtype))
    c = lane_width
    block_rows = pl.cdiv(block_rows, sub) * sub
    r_needed = max(pl.cdiv(m, c), 1)
    r_sub = pl.cdiv(r_needed, sub) * sub         # sublane-aligned row count
    if r_sub <= block_rows:
        # Small input: still split into >=2 row-blocks when possible so both
        # v7x TensorCores get a grid step.
        k = r_sub // sub
        tr = max(1, pl.cdiv(k, 2)) * sub
    else:
        tr = block_rows
    grid_r = pl.cdiv(r_sub, tr)
    r_pad = grid_r * tr
    m_pad = r_pad * c

    x_flat = x.reshape(-1)
    if m_pad != m:
        # Only the (small) input is padded; the n_funcs-x larger output is
        # never pad/slice-copied.
        # TODO(synk): handle the ragged tail block in-kernel to drop this
        # whole-input pad copy too (skipped already when m tiles exactly).
        x_flat = jnp.pad(x_flat, (0, m_pad - m))
    x_slab = x_flat.reshape(r_pad, c)

    kernel = functools.partial(_pe_kernel, freq_bands=freq_bands,
                               include_input=include_input,
                               doublings=doublings)

    # Cost estimate: sin/cos are ~25-op VALU polynomials, not single flops.
    n_trans = 2 if doublings is not None else 2 * num_freqs
    flops_per_elem = num_freqs + 25 * n_trans
    if doublings is not None:
        flops_per_elem += 5 * doublings * (num_freqs - 1)
    cost = pl.CostEstimate(
        flops=flops_per_elem * m_pad,
        transcendentals=n_trans * m_pad,
        bytes_accessed=m_pad * x.dtype.itemsize
        + n_funcs * m_pad * out_dtype.itemsize,
    )

    # VMEM budget: double-buffered in/out tiles + elementwise temps.  Floor at
    # 32 MiB (v5e scoped default is only 16 MiB); defaults stay far below
    # v7x's 64 MiB physical VMEM.
    in_tile = tr * c * x.dtype.itemsize
    out_tile = n_funcs * tr * c * out_dtype.itemsize
    vmem_bytes = 2 * (in_tile + out_tile) + 4 * tr * c * 4 + (2 << 20)
    vmem_limit = int(max(32 << 20, vmem_bytes))

    out_slab = pl.pallas_call(
        kernel,
        out_shape=jax.ShapeDtypeStruct((n_funcs, r_pad, c), out_dtype),
        grid_spec=pltpu.PrefetchScalarGridSpec(
            num_scalar_prefetch=0,
            grid=(grid_r,),
            in_specs=[pl.BlockSpec((tr, c), lambda i: (i, 0))],
            out_specs=pl.BlockSpec((n_funcs, tr, c), lambda i: (0, i, 0)),
        ),
        compiler_params=pltpu.CompilerParams(
            dimension_semantics=("parallel",),
            vmem_limit_bytes=vmem_limit),
        cost_estimate=cost,
    )(x_slab)

    out = out_slab.reshape(n_funcs, m_pad)
    if m_pad != m:
        out = out[:, :m]
    if not torch_order:
        # Fast path: func-major layout, no full-output HBM transpose.
        return out.reshape(n_funcs, *lead_shape, input_dim)
    # Layout plumbing back to torch's concat order along the last axis.  This
    # re-reads/re-writes the full output in HBM — prefer torch_order=False.
    out = out.reshape(n_funcs, n_rows, input_dim)
    out = jnp.transpose(out, (1, 0, 2)).reshape(n_rows, output_dim)
    return out.reshape(*lead_shape, output_dim)


def positional_encoding_ref(x, *, input_dim, max_freq, num_freqs,
                            include_input=True, log_sample=True):
    # Pure-JAX reference mirroring the PyTorch module exactly.
    freq_bands = _make_freq_bands(max_freq, num_freqs, log_sample)
    chunks = []
    if include_input:
        chunks.append(x)
    for f in freq_bands:
        chunks.append(jnp.sin(x * jnp.asarray(f, x.dtype)))
        chunks.append(jnp.cos(x * jnp.asarray(f, x.dtype)))
    return jnp.concatenate(chunks, axis=-1)


if __name__ == "__main__":
    # NeRF-like config: 3-D coordinates, 4 log-spaced frequency bands.
    input_dim, max_freq, num_freqs = 3, 9, 4
    n_funcs = 1 + 2 * num_freqs
    expected_dim = input_dim * n_funcs

    key = jax.random.PRNGKey(0)
    k1, k2, k3 = jax.random.split(key, 3)

    pe = functools.partial(positional_encoding, input_dim=input_dim,
                           max_freq=max_freq, num_freqs=num_freqs,
                           include_input=True, log_sample=True)
    ref = functools.partial(positional_encoding_ref, input_dim=input_dim,
                            max_freq=max_freq, num_freqs=num_freqs,
                            include_input=True, log_sample=True)

    # Test 1: torch-order path, small input (single-block grid).
    x1 = jax.random.uniform(k1, (2, 64, input_dim), jnp.float32, -1.0, 1.0)
    out1 = jax.block_until_ready(pe(x1))
    assert out1.shape == (2, 64, expected_dim), out1.shape
    assert float(jnp.max(jnp.abs(out1 - ref(x1)))) < 1e-4

    # Test 2: torch-order path, multi-step grid (>=2 row blocks) + padded tail.
    x2 = jax.random.uniform(k2, (2, 1024, input_dim), jnp.float32, -1.0, 1.0)
    out2 = jax.block_until_ready(pe(x2))
    assert out2.shape == (2, 1024, expected_dim), out2.shape
    assert float(jnp.max(jnp.abs(out2 - ref(x2)))) < 1e-4

    # Test 3: fast path — func-major layout + bf16 output (no wrapper transpose).
    x3 = jax.random.uniform(k3, (2, 256, input_dim), jnp.float32, -1.0, 1.0)
    out3 = jax.block_until_ready(
        pe(x3, torch_order=False, out_dtype=jnp.bfloat16))
    assert out3.shape == (n_funcs, 2, 256, input_dim), out3.shape
    ref3 = ref(x3).reshape(2, 256, n_funcs, input_dim)
    ref3 = jnp.transpose(ref3, (2, 0, 1, 3))
    assert float(jnp.max(jnp.abs(out3.astype(jnp.float32) - ref3))) < 1e-2

    # Test 4: double-angle recurrence (integer band step -> exact 2x ratios).
    x4 = jax.random.uniform(k1, (4, 128, input_dim), jnp.float32, -1.0, 1.0)
    out4 = jax.block_until_ready(positional_encoding(
        x4, input_dim=input_dim, max_freq=3, num_freqs=4,
        include_input=True, log_sample=True, use_recurrence=True))
    ref4 = positional_encoding_ref(
        x4, input_dim=input_dim, max_freq=3, num_freqs=4,
        include_input=True, log_sample=True)
    assert out4.shape == (4, 128, expected_dim), out4.shape
    assert float(jnp.max(jnp.abs(out4 - ref4))) < 2e-4

    print("KERNEL_OK")
</pallas_src>

<mosaic_0001>
module attributes {stable_mosaic.version = 11 : i64} {
  func.func @_pe_kernel(%arg0: i32, %arg1: memref<8x512xf32, #tpu.memory_space<vmem>>, %arg2: memref<9x8x512xf32, #tpu.memory_space<vmem>>) attributes {dimension_semantics = [#tpu.dimension_semantics<parallel>], iteration_bounds = array<i64: 1>, scalar_prefetch = 0 : i64, scratch_operands = 0 : i64, tpu.core_type = #tpu.core_type<tc>, window_params = [{transform_indices = @transform_0, window_bounds = array<i64: 8, 512>}, {transform_indices = @transform_1, window_bounds = array<i64: 9, 8, 512>}]} {
    %c0 = arith.constant 0 : index
    %c0_0 = arith.constant 0 : index
    %0 = vector.load %arg1[%c0, %c0_0] : memref<8x512xf32, #tpu.memory_space<vmem>>, vector<8x512xf32>
    %c0_1 = arith.constant 0 : index
    %c0_2 = arith.constant 0 : index
    %c0_3 = arith.constant 0 : index
    %1 = vector.load %arg2[%c0_1, %c0_2, %c0_3] : memref<9x8x512xf32, #tpu.memory_space<vmem>>, vector<1x8x512xf32>
    %2 = vector.shape_cast %1 : vector<1x8x512xf32> to vector<8x512xf32>
    %3 = vector.shape_cast %0 : vector<8x512xf32> to vector<1x8x512xf32>
    tpu.vector_store %arg2[%c0_1, %c0_2, %c0_3], %3 {strides = array<i32>} : memref<9x8x512xf32, #tpu.memory_space<vmem>>, vector<1x8x512xf32>,
    %cst = arith.constant 1.000000e+00 : f32
    %4 = vector.broadcast %cst : f32 to vector<8x512xf32>
    %5 = arith.mulf %0, %4 : vector<8x512xf32>
    %6 = math.sin %5 : vector<8x512xf32>
    %c1 = arith.constant 1 : index
    %c0_4 = arith.constant 0 : index
    %c0_5 = arith.constant 0 : index
    %7 = vector.load %arg2[%c1, %c0_4, %c0_5] : memref<9x8x512xf32, #tpu.memory_space<vmem>>, vector<1x8x512xf32>
    %8 = vector.shape_cast %7 : vector<1x8x512xf32> to vector<8x512xf32>
    %9 = vector.shape_cast %6 : vector<8x512xf32> to vector<1x8x512xf32>
    tpu.vector_store %arg2[%c1, %c0_4, %c0_5], %9 {strides = array<i32>} : memref<9x8x512xf32, #tpu.memory_space<vmem>>, vector<1x8x512xf32>,
    %10 = math.cos %5 : vector<8x512xf32>
    %c2 = arith.constant 2 : index
    %c0_6 = arith.constant 0 : index
    %c0_7 = arith.constant 0 : index
    %11 = vector.load %arg2[%c2, %c0_6, %c0_7] : memref<9x8x512xf32, #tpu.memory_space<vmem>>, vector<1x8x512xf32>
    %12 = vector.shape_cast %11 : vector<1x8x512xf32> to vector<8x512xf32>
    %13 = vector.shape_cast %10 : vector<8x512xf32> to vector<1x8x512xf32>
    tpu.vector_store %arg2[%c2, %c0_6, %c0_7], %13 {strides = array<i32>} : memref<9x8x512xf32, #tpu.memory_space<vmem>>, vector<1x8x512xf32>,
    %cst_8 = arith.constant 8.000000e+00 : f32
    %14 = vector.broadcast %cst_8 : f32 to vector<8x512xf32>
    %15 = arith.mulf %0, %14 : vector<8x512xf32>
    %16 = math.sin %15 : vector<8x512xf32>
    %c3 = arith.constant 3 : index
    %c0_9 = arith.constant 0 : index
    %c0_10 = arith.constant 0 : index
    %17 = vector.load %arg2[%c3, %c0_9, %c0_10] : memref<9x8x512xf32, #tpu.memory_space<vmem>>, vector<1x8x512xf32>
    %18 = vector.shape_cast %17 : vector<1x8x512xf32> to vector<8x512xf32>
    %19 = vector.shape_cast %16 : vector<8x512xf32> to vector<1x8x512xf32>
    tpu.vector_store %arg2[%c3, %c0_9, %c0_10], %19 {strides = array<i32>} : memref<9x8x512xf32, #tpu.memory_space<vmem>>, vector<1x8x512xf32>,
    %20 = math.cos %15 : vector<8x512xf32>
    %c4 = arith.constant 4 : index
    %c0_11 = arith.constant 0 : index
    %c0_12 = arith.constant 0 : index
    %21 = vector.load %arg2[%c4, %c0_11, %c0_12] : memref<9x8x512xf32, #tpu.memory_space<vmem>>, vector<1x8x512xf32>
    %22 = vector.shape_cast %21 : vector<1x8x512xf32> to vector<8x512xf32>
    %23 = vector.shape_cast %20 : vector<8x512xf32> to vector<1x8x512xf32>
    tpu.vector_store %arg2[%c4, %c0_11, %c0_12], %23 {strides = array<i32>} : memref<9x8x512xf32, #tpu.memory_space<vmem>>, vector<1x8x512xf32>,
    %cst_13 = arith.constant 6.400000e+01 : f32
    %24 = vector.broadcast %cst_13 : f32 to vector<8x512xf32>
    %25 = arith.mulf %0, %24 : vector<8x512xf32>
    %26 = math.sin %25 : vector<8x512xf32>
    %c5 = arith.constant 5 : index
    %c0_14 = arith.constant 0 : index
    %c0_15 = arith.constant 0 : index
    %27 = vector.load %arg2[%c5, %c0_14, %c0_15] : memref<9x8x512xf32, #tpu.memory_space<vmem>>, vector<1x8x512xf32>
    %28 = vector.shape_cast %27 : vector<1x8x512xf32> to vector<8x512xf32>
    %29 = vector.shape_cast %26 : vector<8x512xf32> to vector<1x8x512xf32>
    tpu.vector_store %arg2[%c5, %c0_14, %c0_15], %29 {strides = array<i32>} : memref<9x8x512xf32, #tpu.memory_space<vmem>>, vector<1x8x512xf32>,
    %30 = math.cos %25 : vector<8x512xf32>
    %c6 = arith.constant 6 : index
    %c0_16 = arith.constant 0 : index
    %c0_17 = arith.constant 0 : index
    %31 = vector.load %arg2[%c6, %c0_16, %c0_17] : memref<9x8x512xf32, #tpu.memory_space<vmem>>, vector<1x8x512xf32>
    %32 = vector.shape_cast %31 : vector<1x8x512xf32> to vector<8x512xf32>
    %33 = vector.shape_cast %30 : vector<8x512xf32> to vector<1x8x512xf32>
    tpu.vector_store %arg2[%c6, %c0_16, %c0_17], %33 {strides = array<i32>} : memref<9x8x512xf32, #tpu.memory_space<vmem>>, vector<1x8x512xf32>,
    %cst_18 = arith.constant 5.120000e+02 : f32
    %34 = vector.broadcast %cst_18 : f32 to vector<8x512xf32>
    %35 = arith.mulf %0, %34 : vector<8x512xf32>
    %36 = math.sin %35 : vector<8x512xf32>
    %c7 = arith.constant 7 : index
    %c0_19 = arith.constant 0 : index
    %c0_20 = arith.constant 0 : index
    %37 = vector.load %arg2[%c7, %c0_19, %c0_20] : memref<9x8x512xf32, #tpu.memory_space<vmem>>, vector<1x8x512xf32>
    %38 = vector.shape_cast %37 : vector<1x8x512xf32> to vector<8x512xf32>
    %39 = vector.shape_cast %36 : vector<8x512xf32> to vector<1x8x512xf32>
    tpu.vector_store %arg2[%c7, %c0_19, %c0_20], %39 {strides = array<i32>} : memref<9x8x512xf32, #tpu.memory_space<vmem>>, vector<1x8x512xf32>,
    %40 = math.cos %35 : vector<8x512xf32>
    %c8 = arith.constant 8 : index
    %c0_21 = arith.constant 0 : index
    %c0_22 = arith.constant 0 : index
    %41 = vector.load %arg2[%c8, %c0_21, %c0_22] : memref<9x8x512xf32, #tpu.memory_space<vmem>>, vector<1x8x512xf32>
    %42 = vector.shape_cast %41 : vector<1x8x512xf32> to vector<8x512xf32>
    %43 = vector.shape_cast %40 : vector<8x512xf32> to vector<1x8x512xf32>
    tpu.vector_store %arg2[%c8, %c0_21, %c0_22], %43 {strides = array<i32>} : memref<9x8x512xf32, #tpu.memory_space<vmem>>, vector<1x8x512xf32>,
    return
  }
  func.func @transform_0(%arg0: i32) -> (i32, i32) {
    %c0_i32 = arith.constant 0 : i32
    %c0_i32_0 = arith.constant 0 : i32
    return %arg0, %c0_i32 : i32, i32
  }
  func.func @transform_1(%arg0: i32) -> (i32, i32, i32) {
    %c0_i32 = arith.constant 0 : i32
    %c0_i32_0 = arith.constant 0 : i32
    %c0_i32_1 = arith.constant 0 : i32
    return %c0_i32, %arg0, %c0_i32_0 : i32, i32, i32
  }
}

</mosaic_0001>

<llo_original>
// kernel: tpu_custom_call.1
$region0: #{tpu_custom_call.1}
  #allocation0 [shape = 'u32[]', space=smem, size = 0x4, offset = 0x4, fixed_abs, tag = 'smem constant byte address 0x4 - core index']
  #allocation1 [shape = 'u32[72,128]{1,0:T(1,128)}', space=vmem, size = 0x9000, scoped, tag = 'internal scratch']
  %s0 = inlined_call_operand.hbm [shape: f32[8,512], index: 0, kind: input, shape index: {}]
  %s1 = inlined_call_operand.hbm [shape: f32[9,8,512], index: 1, kind: output, shape index: {}]
  %s2 = sld [smem:[#allocation0]]
  $region18: #{tpu_custom_call.1} parent=0
    _
  %s4 = ssub.s32 1, %s2
  %s5 = scalar_select 0, %s4, %s2
  $region1: #{tpu_custom_call.1} parent=0
    #allocation2 [shape = 'u8[16384]{0}', space=vmem, size = 0x4000, scoped, tag = 'input window, operand 0, single buffered']
    #allocation3 [shape = 's32[1]{0}', space=sflag, size = 0x4, scoped, tag = 'scoped memory for tpu_custom_call.1']
    #allocation4 [shape = 's32[1]{0}', space=sflag, size = 0x4, scoped, tag = 'scoped memory for tpu_custom_call.1']
    #allocation5 [shape = 'u8[147456]{0}', space=vmem, size = 0x24000, scoped, tag = 'output window, operand 0, single buffered']
    %6 = vsyncpa [#allocation3], 0
    %7 = vsyncpa [#allocation4], 0
    // Predicated region
    $region2: #{tpu_custom_call.1} parent=1 // pred_check
      _
    $region3: #{tpu_custom_call.1} parent=1 // pred_check_branch
      %9 = sbr.rel (0) target = $region5
    $region4: #{tpu_custom_call.1} parent=1 // pred_region
      %11 = vsyncadd [#allocation3], 0
      %s13 = sshll.u32 %s0, 4
      %s14 = int_to_ptr.hbm [resolvable:$true] %s13
      %s15 = sshll.u32 [#allocation2], 4
      %s16 = int_to_ptr.vmem [resolvable:$true] %s15
      %18 = dma.hbm_to_vmem [thread:$0]  %s14, 512, %s16, [#allocation3]
    $region5: #{tpu_custom_call.1} parent=1 // pred_fallthru
      _
    // Predicated region
    $region6: #{tpu_custom_call.1} parent=1 // pred_check
      _
    $region7: #{tpu_custom_call.1} parent=1 // pred_check_branch
      %20 = sbr.rel (0) target = $region9
    $region8: #{tpu_custom_call.1} parent=1 // pred_region
      %22 = dma.done [#allocation3], 512
    $region9: #{tpu_custom_call.1} parent=1 // pred_fallthru
      _
    %v23 = vld [vmem:[#allocation2] sm:$0xff]
    %v24 = vld [vmem:[#allocation2 + $0x8] sm:$0xff]
    %v25 = vld [vmem:[#allocation2 + $0x10] sm:$0xff]
    %v26 = vld [vmem:[#allocation2 + $0x18] sm:$0xff]
    %27 = vst [vmem:[#allocation5] sm:$0xff] %v23
    %28 = vst [vmem:[#allocation5 + $0x8] sm:$0xff] %v24
    %29 = vst [vmem:[#allocation5 + $0x10] sm:$0xff] %v25
    %30 = vst [vmem:[#allocation5 + $0x18] sm:$0xff] %v26
    %v31 = vand.u32 2147483647, %v23
    %vm32 = vcmp.le.f32.partialorder %v31, 0.7853982
    %vm33 = vcmp.lt.s32.totalorder %v23, 0
    %v34 = vand.u32 %v23, 2139095040
    %v35 = vshrl.u32 %v34, 23
    %v36 = vsub.s32 %v35, 127
    %v37 = vand.u32 2147483647, %v23
    %v38 = vand.u32 %v37, 8388607
    %v39 = vor.u32 %v38, 8388608
    %v40 = vsub.s32 0, %v39
    %v41 = vadd.s32 %v36, 1
    %vm42 = vcmp.gt.s32.totalorder %v41, 0
    %v43 = vsel %vm42, %v41, 0
    %v44 = vshrl.u32 %v43, 5
    %v45 = vand.u32 %v43, 31
    %v46 = vsub.s32 32, %v45
    %v47 = vshrl.u32 683565275, %v46
    %v48 = vshll.u32 683565275, %v45
    %v49 = vshrl.u32 2475754826, %v46
    %v50 = vor.u32 %v48, %v49
    %v51 = vshll.u32 2475754826, %v45
    %v52 = vshrl.u32 2131351028, %v46
    %v53 = vor.u32 %v51, %v52
    %v54 = vshll.u32 2131351028, %v45
    %v55 = vshrl.u32 2102212464, %v46
    %v56 = vor.u32 %v54, %v55
    %v57 = vshll.u32 2102212464, %v45
    %v58 = vshrl.u32 920167782, %v46
    %v59 = vor.u32 %v57, %v58
    %v60 = vshll.u32 920167782, %v45
    %v61 = vshrl.u32 1326507024, %v46
    %v62 = vor.u32 %v60, %v61
    %vm63 = vcmp.lt.s32.totalorder %v44, 1
    %vm64 = vcmp.lt.s32.totalorder %v44, 2
    %vm65 = vcmp.lt.s32.totalorder %v44, 3
    %vm66 = vcmp.lt.s32.totalorder %v44, 4
    %v67 = vsel %vm63, %v47, %v50
    %v68 = vsel %vm66, %v56, 2102212464
    %v69 = vsel %vm65, %v53, %v68
    %v70 = vsel %vm64, %v67, %v69
    %v71 = vsel %vm63, %v50, %v53
    %v72 = vsel %vm66, %v59, 920167782
    %v73 = vsel %vm65, %v56, %v72
    %v74 = vsel %vm64, %v71, %v73
    %v75 = vsel %vm63, %v53, %v56
    %v76 = vsel %vm66, %v62, 1326507024
    %v77 = vsel %vm65, %v59, %v76
    %v78 = vsel %vm64, %v75, %v77
    %v79 = vshll.u32 %v39, 8
    %v80 = vand.u32 %v79, 65535
    %v81 = vshrl.u32 %v79, 16
    %v82 = vand.u32 %v78, 65535
    %v83 = vshrl.u32 %v78, 16
    %v84 = vmul.u32 %v80, %v82
    %v85 = vmul.u32 %v80, %v83
    %v86 = vmul.u32 %v81, %v82
    %v87 = vmul.u32 %v81, %v83
    %v88 = vshll.u32 %v85, 16
    %v89 = vshrl.u32 %v85, 16
    %v90 = vshll.u32 %v86, 16
    %v91 = vshrl.u32 %v86, 16
    %vm92 = vc.u32 %v84, %v88
    %v93 = vsel %vm92, 1, 0
    %v94 = vadd.s32 %v84, %v88
    %v95 = vadd.s32 %v87, %v93
    %vm96 = vc.u32 %v94, %v90
    %v97 = vsel %vm96, 1, 0
    %v98 = vadd.s32 %v94, %v90
    %v99 = vadd.s32 %v95, %v97
    %v100 = vadd.s32 %v99, %v89
    %v101 = vadd.s32 %v100, %v91
    %v102 = vand.u32 %v79, 65535
    %v103 = vshrl.u32 %v79, 16
    %v104 = vand.u32 %v74, 65535
    %v105 = vshrl.u32 %v74, 16
    %v106 = vmul.u32 %v102, %v104
    %v107 = vmul.u32 %v102, %v105
    %v108 = vmul.u32 %v103, %v104
    %v109 = vmul.u32 %v103, %v105
    %v110 = vshll.u32 %v107, 16
    %v111 = vshrl.u32 %v107, 16
    %v112 = vshll.u32 %v108, 16
    %v113 = vshrl.u32 %v108, 16
    %vm114 = vc.u32 %v106, %v110
    %v115 = vsel %vm114, 1, 0
    %v116 = vadd.s32 %v106, %v110
    %v117 = vadd.s32 %v109, %v115
    %vm118 = vc.u32 %v116, %v112
    %v119 = vsel %vm118, 1, 0
    %v120 = vadd.s32 %v116, %v112
    %v121 = vadd.s32 %v117, %v119
    %v122 = vadd.s32 %v121, %v111
    %v123 = vadd.s32 %v122, %v113
    %v124 = vmul.u32 %v79, %v70
    %v125 = vadd.s32 %v101, %v120
    %vm126 = vc.u32 %v101, %v120
    %v127 = vadd.s32 %v123, 1
    %v128 = vsel %vm126, %v127, %v123
    %v129 = vadd.s32 %v124, %v128
    %v130 = vadd.s32 %v129, 536870912
    %v131 = vshrl.u32 %v130, 30
    %v132 = vshll.u32 %v131, 30
    %v133 = vsub.s32 %v129, %v132
    %vm134 = vcmp.lt.s32.totalorder %v133, 0
    %v135 = vsub.s32 0, %v133
    %v136 = vsel %vm134, %v135, %v133
    %v137 = vclz %v136
    %v138 = vsub.s32 %v137, 2
    %vm139 = vcmp.gt.s32.totalorder 0, %v138
    %v140 = vsel %vm139, 0, %v138
    %v141 = vsub.s32 32, %v140
    %v142 = vshll.u32 %v133, %v140
    %v143 = vshrl.u32 %v125, %v141
    %v144 = vor.u32 %v142, %v143
    %v145 = vsub.s32 4294967266, %v140
    %v146 = vadd.s32 %v145, 127
    %v147 = vshll.u32 %v146, 23
    %v148 = vor.u32 4788187, %v147
    %v149 = vand.u32 2147483647, %v148
    %v151 = vcvt.s32.f32 %v144
    %v152 = vmul.f32 %v151, %v149
    %v153 = vxor.u32 %v152, 2147483648
    %v154 = vsel %vm33, %v153, %v152
    %v155 = vsub.s32 4, %v131
    %v156 = vsel %vm33, %v155, %v131
    %v157 = vsel %vm32, %v23, %v154
    %v158 = vsel %vm32, 0, %v156
    %v159 = vmul.f32 %v157, %v157
    %v160 = vmul.f32 %v159, -0.001358992
    %v161 = vadd.f32 %v160, 0.041655596
    %v162 = vmul.f32 %v159, %v161
    %v163 = vadd.f32 %v162, -0.4999988
    %v164 = vmul.f32 %v159, %v163
    %v165 = vadd.f32 1.0, %v164
    %v166 = vmul.f32 %v157, %v157
    %v167 = vmul.f32 %v166, -0.00019511016
    %v168 = vadd.f32 %v167, 0.008332121
    %v169 = vmul.f32 %v166, %v168
    %v170 = vadd.f32 %v169, -0.16666654
    %v171 = vmul.f32 %v166, %v170
    %v172 = vadd.f32 %v171, 1.0
    %v173 = vmul.f32 %v172, %v157
    %vm174 = vweird.f32 %v23
    %v175 = vadd.s32 %v158, 3
    %v176 = vand.u32 %v175, 3
    %vm177 = vcmp.lt.s32.totalorder %v176, 2
    %vm178 = vcmp.eq.s32.totalorder %v176, 0
    %v179 = vxor.u32 %v173, 2147483648
    %v180 = vsel %vm178, %v165, %v179
    %vm181 = vcmp.eq.s32.totalorder %v176, 2
    %v182 = vxor.u32 %v165, 2147483648
    %v183 = vsel %vm181, %v182, %v173
    %v184 = vsel %vm177, %v180, %v183
    %v185 = vsel %vm174, nan, %v184
    %v186 = vand.u32 2147483647, %v24
    %vm187 = vcmp.le.f32.partialorder %v186, 0.7853982
    %vm188 = vcmp.lt.s32.totalorder %v24, 0
    %v189 = vand.u32 %v24, 2139095040
    %v190 = vshrl.u32 %v189, 23
    %v191 = vsub.s32 %v190, 127
    %v192 = vand.u32 2147483647, %v24
    %v193 = vand.u32 %v192, 8388607
    %v194 = vor.u32 %v193, 8388608
    %v195 = vsub.s32 0, %v194
    %v196 = vadd.s32 %v191, 1
    %vm197 = vcmp.gt.s32.totalorder %v196, 0
    %v198 = vsel %vm197, %v196, 0
    %v199 = vshrl.u32 %v198, 5
    %v200 = vand.u32 %v198, 31
    %v201 = vsub.s32 32, %v200
    %v202 = vshrl.u32 683565275, %v201
    %v203 = vshll.u32 683565275, %v200
    %v204 = vshrl.u32 2475754826, %v201
    %v205 = vor.u32 %v203, %v204
    %v206 = vshll.u32 2475754826, %v200
    %v207 = vshrl.u32 2131351028, %v201
    %v208 = vor.u32 %v206, %v207
    %v209 = vshll.u32 2131351028, %v200
    %v210 = vshrl.u32 2102212464, %v201
    %v211 = vor.u32 %v209, %v210
    %v212 = vshll.u32 2102212464, %v200
    %v213 = vshrl.u32 920167782, %v201
    %v214 = vor.u32 %v212, %v213
    %v215 = vshll.u32 920167782, %v200
    %v216 = vshrl.u32 1326507024, %v201
    %v217 = vor.u32 %v215, %v216
    %vm218 = vcmp.lt.s32.totalorder %v199, 1
    %vm219 = vcmp.lt.s32.totalorder %v199, 2
    %vm220 = vcmp.lt.s32.totalorder %v199, 3
    %vm221 = vcmp.lt.s32.totalorder %v199, 4
    %v222 = vsel %vm218, %v202, %v205
    %v223 = vsel %vm221, %v211, 2102212464
    %v224 = vsel %vm220, %v208, %v223
    %v225 = vsel %vm219, %v222, %v224
    %v226 = vsel %vm218, %v205, %v208
    %v227 = vsel %vm221, %v214, 920167782
    %v228 = vsel %vm220, %v211, %v227
    %v229 = vsel %vm219, %v226, %v228
    %v230 = vsel %vm218, %v208, %v211
    %v231 = vsel %vm221, %v217, 1326507024
    %v232 = vsel %vm220, %v214, %v231
    %v233 = vsel %vm219, %v230, %v232
    %v234 = vshll.u32 %v194, 8
    %v235 = vand.u32 %v234, 65535
    %v236 = vshrl.u32 %v234, 16
    %v237 = vand.u32 %v233, 65535
    %v238 = vshrl.u32 %v233, 16
    %v239 = vmul.u32 %v235, %v237
    %v240 = vmul.u32 %v235, %v238
    %v241 = vmul.u32 %v236, %v237
    %v242 = vmul.u32 %v236, %v238
    %v243 = vshll.u32 %v240, 16
    %v244 = vshrl.u32 %v240, 16
    %v245 = vshll.u32 %v241, 16
    %v246 = vshrl.u32 %v241, 16
    %vm247 = vc.u32 %v239, %v243
    %v248 = vsel %vm247, 1, 0
    %v249 = vadd.s32 %v239, %v243
    %v250 = vadd.s32 %v242, %v248
    %vm251 = vc.u32 %v249, %v245
    %v252 = vsel %vm251, 1, 0
    %v253 = vadd.s32 %v249, %v245
    %v254 = vadd.s32 %v250, %v252
    %v255 = vadd.s32 %v254, %v244
    %v256 = vadd.s32 %v255, %v246
    %v257 = vand.u32 %v234, 65535
    %v258 = vshrl.u32 %v234, 16
    %v259 = vand.u32 %v229, 65535
    %v260 = vshrl.u32 %v229, 16
    %v261 = vmul.u32 %v257, %v259
    %v262 = vmul.u32 %v257, %v260
    %v263 = vmul.u32 %v258, %v259
    %v264 = vmul.u32 %v258, %v260
    %v265 = vshll.u32 %v262, 16
    %v266 = vshrl.u32 %v262, 16
    %v267 = vshll.u32 %v263, 16
    %v268 = vshrl.u32 %v263, 16
    %vm269 = vc.u32 %v261, %v265
    %v270 = vsel %vm269, 1, 0
    %v271 = vadd.s32 %v261, %v265
    %v272 = vadd.s32 %v264, %v270
    %vm273 = vc.u32 %v271, %v267
    %v274 = vsel %vm273, 1, 0
    %v275 = vadd.s32 %v271, %v267
    %v276 = vadd.s32 %v272, %v274
    %v277 = vadd.s32 %v276, %v266
    %v278 = vadd.s32 %v277, %v268
    %v279 = vmul.u32 %v234, %v225
    %v280 = vadd.s32 %v256, %v275
    %vm281 = vc.u32 %v256, %v275
    %v282 = vadd.s32 %v278, 1
    %v283 = vsel %vm281, %v282, %v278
    %v284 = vadd.s32 %v279, %v283
    %v285 = vadd.s32 %v284, 536870912
    %v286 = vshrl.u32 %v285, 30
    %v287 = vshll.u32 %v286, 30
    %v288 = vsub.s32 %v284, %v287
    %vm289 = vcmp.lt.s32.totalorder %v288, 0
    %v290 = vsub.s32 0, %v288
    %v291 = vsel %vm289, %v290, %v288
    %v292 = vclz %v291
    %v293 = vsub.s32 %v292, 2
    %vm294 = vcmp.gt.s32.totalorder 0, %v293
    %v295 = vsel %vm294, 0, %v293
    %v296 = vsub.s32 32, %v295
    %v297 = vshll.u32 %v288, %v295
    %v298 = vshrl.u32 %v280, %v296
    %v299 = vor.u32 %v297, %v298
    %v300 = vsub.s32 4294967266, %v295
    %v301 = vadd.s32 %v300, 127
    %v302 = vshll.u32 %v301, 23
    %v303 = vor.u32 4788187, %v302
    %v304 = vand.u32 2147483647, %v303
    %v306 = vcvt.s32.f32 %v299
    %v307 = vmul.f32 %v306, %v304
    %v308 = vxor.u32 %v307, 2147483648
    %v309 = vsel %vm188, %v308, %v307
    %v310 = vsub.s32 4, %v286
    %v311 = vsel %vm188, %v310, %v286
    %v312 = vsel %vm187, %v24, %v309
    %v313 = vsel %vm187, 0, %v311
    %v314 = vmul.f32 %v312, %v312
    %v315 = vmul.f32 %v314, -0.001358992
    %v316 = vadd.f32 %v315, 0.041655596
    %v317 = vmul.f32 %v314, %v316
    %v318 = vadd.f32 %v317, -0.4999988
    %v319 = vmul.f32 %v314, %v318
    %v320 = vadd.f32 1.0, %v319
    %v321 = vmul.f32 %v312, %v312
    %v322 = vmul.f32 %v321, -0.00019511016
    %v323 = vadd.f32 %v322, 0.008332121
    %v324 = vmul.f32 %v321, %v323
    %v325 = vadd.f32 %v324, -0.16666654
    %v326 = vmul.f32 %v321, %v325
    %v327 = vadd.f32 %v326, 1.0
    %v328 = vmul.f32 %v327, %v312
    %vm329 = vweird.f32 %v24
    %v330 = vadd.s32 %v313, 3
    %v331 = vand.u32 %v330, 3
    %vm332 = vcmp.lt.s32.totalorder %v331, 2
    %vm333 = vcmp.eq.s32.totalorder %v331, 0
    %v334 = vxor.u32 %v328, 2147483648
    %v335 = vsel %vm333, %v320, %v334
    %vm336 = vcmp.eq.s32.totalorder %v331, 2
    %v337 = vxor.u32 %v320, 2147483648
    %v338 = vsel %vm336, %v337, %v328
    %v339 = vsel %vm332, %v335, %v338
    %v340 = vsel %vm329, nan, %v339
    %v341 = vand.u32 2147483647, %v25
    %vm342 = vcmp.le.f32.partialorder %v341, 0.7853982
    %vm343 = vcmp.lt.s32.totalorder %v25, 0
    %v344 = vand.u32 %v25, 2139095040
    %v345 = vshrl.u32 %v344, 23
    %v346 = vsub.s32 %v345, 127
    %v347 = vand.u32 2147483647, %v25
    %v348 = vand.u32 %v347, 8388607
    %v349 = vor.u32 %v348, 8388608
    %v350 = vsub.s32 0, %v349
    %v351 = vadd.s32 %v346, 1
    %vm352 = vcmp.gt.s32.totalorder %v351, 0
    %v353 = vsel %vm352, %v351, 0
    %v354 = vshrl.u32 %v353, 5
    %v355 = vand.u32 %v353, 31
    %v356 = vsub.s32 32, %v355
    %v357 = vshrl.u32 683565275, %v356
    %v358 = vshll.u32 683565275, %v355
    %v359 = vshrl.u32 2475754826, %v356
    %v360 = vor.u32 %v358, %v359
    %v361 = vshll.u32 2475754826, %v355
    %v362 = vshrl.u32 2131351028, %v356
    %v363 = vor.u32 %v361, %v362
    %v364 = vshll.u32 2131351028, %v355
    %v365 = vshrl.u32 2102212464, %v356
    %v366 = vor.u32 %v364, %v365
    %v367 = vshll.u32 2102212464, %v355
    %v368 = vshrl.u32 920167782, %v356
    %v369 = vor.u32 %v367, %v368
    %v370 = vshll.u32 920167782, %v355
    %v371 = vshrl.u32 1326507024, %v356
    %v372 = vor.u32 %v370, %v371
    %vm373 = vcmp.lt.s32.totalorder %v354, 1
    %vm374 = vcmp.lt.s32.totalorder %v354, 2
    %vm375 = vcmp.lt.s32.totalorder %v354, 3
    %vm376 = vcmp.lt.s32.totalorder %v354, 4
    %v377 = vsel %vm373, %v357, %v360
    %v378 = vsel %vm376, %v366, 2102212464
    %v379 = vsel %vm375, %v363, %v378
    %v380 = vsel %vm374, %v377, %v379
    %v381 = vsel %vm373, %v360, %v363
    %v382 = vsel %vm376, %v369, 920167782
    %v383 = vsel %vm375, %v366, %v382
    %v384 = vsel %vm374, %v381, %v383
    %v385 = vsel %vm373, %v363, %v366
    %v386 = vsel %vm376, %v372, 1326507024
    %v387 = vsel %vm375, %v369, %v386
    %v388 = vsel %vm374, %v385, %v387
    %v389 = vshll.u32 %v349, 8
    %v390 = vand.u32 %v389, 65535
    %v391 = vshrl.u32 %v389, 16
    %v392 = vand.u32 %v388, 65535
    %v393 = vshrl.u32 %v388, 16
    %v394 = vmul.u32 %v390, %v392
    %v395 = vmul.u32 %v390, %v393
    %v396 = vmul.u32 %v391, %v392
    %v397 = vmul.u32 %v391, %v393
    %v398 = vshll.u32 %v395, 16
    %v399 = vshrl.u32 %v395, 16
    %v400 = vshll.u32 %v396, 16
    %v401 = vshrl.u32 %v396, 16
    %vm402 = vc.u32 %v394, %v398
    %v403 = vsel %vm402, 1, 0
    %v404 = vadd.s32 %v394, %v398
    %v405 = vadd.s32 %v397, %v403
    %vm406 = vc.u32 %v404, %v400
    %v407 = vsel %vm406, 1, 0
    %v408 = vadd.s32 %v404, %v400
    %v409 = vadd.s32 %v405, %v407
    %v410 = vadd.s32 %v409, %v399
    %v411 = vadd.s32 %v410, %v401
    %v412 = vand.u32 %v389, 65535
    %v413 = vshrl.u32 %v389, 16
    %v414 = vand.u32 %v384, 65535
    %v415 = vshrl.u32 %v384, 16
    %v416 = vmul.u32 %v412, %v414
    %v417 = vmul.u32 %v412, %v415
    %v418 = vmul.u32 %v413, %v414
    %v419 = vmul.u32 %v413, %v415
    %v420 = vshll.u32 %v417, 16
    %v421 = vshrl.u32 %v417, 16
    %v422 = vshll.u32 %v418, 16
    %v423 = vshrl.u32 %v418, 16
    %vm424 = vc.u32 %v416, %v420
    %v425 = vsel %vm424, 1, 0
    %v426 = vadd.s32 %v416, %v420
    %v427 = vadd.s32 %v419, %v425
    %vm428 = vc.u32 %v426, %v422
    %v429 = vsel %vm428, 1, 0
    %v430 = vadd.s32 %v426, %v422
    %v431 = vadd.s32 %v427, %v429
    %v432 = vadd.s32 %v431, %v421
    %v433 = vadd.s32 %v432, %v423
    %v434 = vmul.u32 %v389, %v380
    %v435 = vadd.s32 %v411, %v430
    %vm436 = vc.u32 %v411, %v430
    %v437 = vadd.s32 %v433, 1
    %v438 = vsel %vm436, %v437, %v433
    %v439 = vadd.s32 %v434, %v438
    %v440 = vadd.s32 %v439, 536870912
    %v441 = vshrl.u32 %v440, 30
    %v442 = vshll.u32 %v441, 30
    %v443 = vsub.s32 %v439, %v442
    %vm444 = vcmp.lt.s32.totalorder %v443, 0
    %v445 = vsub.s32 0, %v443
    %v446 = vsel %vm444, %v445, %v443
    %v447 = vclz %v446
    %v448 = vsub.s32 %v447, 2
    %vm449 = vcmp.gt.s32.totalorder 0, %v448
    %v450 = vsel %vm449, 0, %v448
    %v451 = vsub.s32 32, %v450
    %v452 = vshll.u32 %v443, %v450
    %v453 = vshrl.u32 %v435, %v451
    %v454 = vor.u32 %v452, %v453
    %v455 = vsub.s32 4294967266, %v450
    %v456 = vadd.s32 %v455, 127
    %v457 = vshll.u32 %v456, 23
    %v458 = vor.u32 4788187, %v457
    %v459 = vand.u32 2147483647, %v458
    %v461 = vcvt.s32.f32 %v454
    %v462 = vmul.f32 %v461, %v459
    %v463 = vxor.u32 %v462, 2147483648
    %v464 = vsel %vm343, %v463, %v462
    %v465 = vsub.s32 4, %v441
    %v466 = vsel %vm343, %v465, %v441
    %v467 = vsel %vm342, %v25, %v464
    %v468 = vsel %vm342, 0, %v466
    %v469 = vmul.f32 %v467, %v467
    %v470 = vmul.f32 %v469, -0.001358992
    %v471 = vadd.f32 %v470, 0.041655596
    %v472 = vmul.f32 %v469, %v471
    %v473 = vadd.f32 %v472, -0.4999988
    %v474 = vmul.f32 %v469, %v473
    %v475 = vadd.f32 1.0, %v474
    %v476 = vmul.f32 %v467, %v467
    %v477 = vmul.f32 %v476, -0.00019511016
    %v478 = vadd.f32 %v477, 0.008332121
    %v479 = vmul.f32 %v476, %v478
    %v480 = vadd.f32 %v479, -0.16666654
    %v481 = vmul.f32 %v476, %v480
    %v482 = vadd.f32 %v481, 1.0
    %v483 = vmul.f32 %v482, %v467
    %vm484 = vweird.f32 %v25
    %v485 = vadd.s32 %v468, 3
    %v486 = vand.u32 %v485, 3
    %vm487 = vcmp.lt.s32.totalorder %v486, 2
    %vm488 = vcmp.eq.s32.totalorder %v486, 0
    %v489 = vxor.u32 %v483, 2147483648
    %v490 = vsel %vm488, %v475, %v489
    %vm491 = vcmp.eq.s32.totalorder %v486, 2
    %v492 = vxor.u32 %v475, 2147483648
    %v493 = vsel %vm491, %v492, %v483
    %v494 = vsel %vm487, %v490, %v493
    %v495 = vsel %vm484, nan, %v494
    %v496 = vand.u32 2147483647, %v26
    %vm497 = vcmp.le.f32.partialorder %v496, 0.7853982
    %vm498 = vcmp.lt.s32.totalorder %v26, 0
    %v499 = vand.u32 %v26, 2139095040
    %v500 = vshrl.u32 %v499, 23
    %v501 = vsub.s32 %v500, 127
    %v502 = vand.u32 2147483647, %v26
    %v503 = vand.u32 %v502, 8388607
    %v504 = vor.u32 %v503, 8388608
    %v505 = vsub.s32 0, %v504
    %v506 = vadd.s32 %v501, 1
    %vm507 = vcmp.gt.s32.totalorder %v506, 0
    %v508 = vsel %vm507, %v506, 0
    %v509 = vshrl.u32 %v508, 5
    %v510 = vand.u32 %v508, 31
    %v511 = vsub.s32 32, %v510
    %v512 = vshrl.u32 683565275, %v511
    %v513 = vshll.u32 683565275, %v510
    %v514 = vshrl.u32 2475754826, %v511
    %v515 = vor.u32 %v513, %v514
    %v516 = vshll.u32 2475754826, %v510
    %v517 = vshrl.u32 2131351028, %v511
    %v518 = vor.u32 %v516, %v517
    %v519 = vshll.u32 2131351028, %v510
    %v520 = vshrl.u32 2102212464, %v511
    %v521 = vor.u32 %v519, %v520
    %v522 = vshll.u32 2102212464, %v510
    %v523 = vshrl.u32 920167782, %v511
    %v524 = vor.u32 %v522, %v523
    %v525 = vshll.u32 920167782, %v510
    %v526 = vshrl.u32 1326507024, %v511
    %v527 = vor.u32 %v525, %v526
    %vm528 = vcmp.lt.s32.totalorder %v509, 1
    %vm529 = vcmp.lt.s32.totalorder %v509, 2
    %vm530 = vcmp.lt.s32.totalorder %v509, 3
    %vm531 = vcmp.lt.s32.totalorder %v509, 4
    %v532 = vsel %vm528, %v512, %v515
    %v533 = vsel %vm531, %v521, 2102212464
    %v534 = vsel %vm530, %v518, %v533
    %v535 = vsel %vm529, %v532, %v534
    %v536 = vsel %vm528, %v515, %v518
    %v537 = vsel %vm531, %v524, 920167782
    %v538 = vsel %vm530, %v521, %v537
    %v539 = vsel %vm529, %v536, %v538
    %v540 = vsel %vm528, %v518, %v521
    %v541 = vsel %vm531, %v527, 1326507024
    %v542 = vsel %vm530, %v524, %v541
    %v543 = vsel %vm529, %v540, %v542
    %v544 = vshll.u32 %v504, 8
    %v545 = vand.u32 %v544, 65535
    %v546 = vshrl.u32 %v544, 16
    %v547 = vand.u32 %v543, 65535
    %v548 = vshrl.u32 %v543, 16
    %v549 = vmul.u32 %v545, %v547
    %v550 = vmul.u32 %v545, %v548
    %v551 = vmul.u32 %v546, %v547
    %v552 = vmul.u32 %v546, %v548
    %v553 = vshll.u32 %v550, 16
    %v554 = vshrl.u32 %v550, 16
    %v555 = vshll.u32 %v551, 16
    %v556 = vshrl.u32 %v551, 16
    %vm557 = vc.u32 %v549, %v553
    %v558 = vsel %vm557, 1, 0
    %v559 = vadd.s32 %v549, %v553
    %v560 = vadd.s32 %v552, %v558
    %vm561 = vc.u32 %v559, %v555
    %v562 = vsel %vm561, 1, 0
    %v563 = vadd.s32 %v559, %v555
    %v564 = vadd.s32 %v560, %v562
    %v565 = vadd.s32 %v564, %v554
    %v566 = vadd.s32 %v565, %v556
    %v567 = vand.u32 %v544, 65535
    %v568 = vshrl.u32 %v544, 16
    %v569 = vand.u32 %v539, 65535
    %v570 = vshrl.u32 %v539, 16
    %v571 = vmul.u32 %v567, %v569
    %v572 = vmul.u32 %v567, %v570
    %v573 = vmul.u32 %v568, %v569
    %v574 = vmul.u32 %v568, %v570
    %v575 = vshll.u32 %v572, 16
    %v576 = vshrl.u32 %v572, 16
    %v577 = vshll.u32 %v573, 16
    %v578 = vshrl.u32 %v573, 16
    %vm579 = vc.u32 %v571, %v575
    %v580 = vsel %vm579, 1, 0
    %v581 = vadd.s32 %v571, %v575
    %v582 = vadd.s32 %v574, %v580
    %vm583 = vc.u32 %v581, %v577
    %v584 = vsel %vm583, 1, 0
    %v585 = vadd.s32 %v581, %v577
    %v586 = vadd.s32 %v582, %v584
    %v587 = vadd.s32 %v586, %v576
    %v588 = vadd.s32 %v587, %v578
    %v589 = vmul.u32 %v544, %v535
    %v590 = vadd.s32 %v566, %v585
    %vm591 = vc.u32 %v566, %v585
    %v592 = vadd.s32 %v588, 1
    %v593 = vsel %vm591, %v592, %v588
    %v594 = vadd.s32 %v589, %v593
    %v595 = vadd.s32 %v594, 536870912
    %v596 = vshrl.u32 %v595, 30
    %v597 = vshll.u32 %v596, 30
    %v598 = vsub.s32 %v594, %v597
    %vm599 = vcmp.lt.s32.totalorder %v598, 0
    %v600 = vsub.s32 0, %v598
    %v601 = vsel %vm599, %v600, %v598
    %v602 = vclz %v601
    %v603 = vsub.s32 %v602, 2
    %vm604 = vcmp.gt.s32.totalorder 0, %v603
    %v605 = vsel %vm604, 0, %v603
    %v606 = vsub.s32 32, %v605
    %v607 = vshll.u32 %v598, %v605
    %v608 = vshrl.u32 %v590, %v606
    %v609 = vor.u32 %v607, %v608
    %v610 = vsub.s32 4294967266, %v605
    %v611 = vadd.s32 %v610, 127
    %v612 = vshll.u32 %v611, 23
    %v613 = vor.u32 4788187, %v612
    %v614 = vand.u32 2147483647, %v613
    %v616 = vcvt.s32.f32 %v609
    %v617 = vmul.f32 %v616, %v614
    %v618 = vxor.u32 %v617, 2147483648
    %v619 = vsel %vm498, %v618, %v617
    %v620 = vsub.s32 4, %v596
    %v621 = vsel %vm498, %v620, %v596
    %v622 = vsel %vm497, %v26, %v619
    %v623 = vsel %vm497, 0, %v621
    %v624 = vmul.f32 %v622, %v622
    %v625 = vmul.f32 %v624, -0.001358992
    %v626 = vadd.f32 %v625, 0.041655596
    %v627 = vmul.f32 %v624, %v626
    %v628 = vadd.f32 %v627, -0.4999988
    %v629 = vmul.f32 %v624, %v628
    %v630 = vadd.f32 1.0, %v629
    %v631 = vmul.f32 %v622, %v622
    %v632 = vmul.f32 %v631, -0.00019511016
    %v633 = vadd.f32 %v632, 0.008332121
    %v634 = vmul.f32 %v631, %v633
    %v635 = vadd.f32 %v634, -0.16666654
    %v636 = vmul.f32 %v631, %v635
    %v637 = vadd.f32 %v636, 1.0
    %v638 = vmul.f32 %v637, %v622
    %vm639 = vweird.f32 %v26
    %v640 = vadd.s32 %v623, 3
    %v641 = vand.u32 %v640, 3
    %vm642 = vcmp.lt.s32.totalorder %v641, 2
    %vm643 = vcmp.eq.s32.totalorder %v641, 0
    %v644 = vxor.u32 %v638, 2147483648
    %v645 = vsel %vm643, %v630, %v644
    %vm646 = vcmp.eq.s32.totalorder %v641, 2
    %v647 = vxor.u32 %v630, 2147483648
    %v648 = vsel %vm646, %v647, %v638
    %v649 = vsel %vm642, %v645, %v648
    %v650 = vsel %vm639, nan, %v649
    %s651 = scalar_lea.vmem [#allocation5], 32
    %652 = vst [vmem:[%s651] sm:$0xff] %v185
    %653 = vst [vmem:[%s651 + $0x8] sm:$0xff] %v340
    %654 = vst [vmem:[%s651 + $0x10] sm:$0xff] %v495
    %655 = vst [vmem:[%s651 + $0x18] sm:$0xff] %v650
    %v656 = vand.u32 2147483647, %v23
    %vm657 = vcmp.le.f32.partialorder %v656, 0.7853982
    %vm658 = vcmp.lt.s32.totalorder %v23, 0
    %v659 = vand.u32 %v23, 2139095040
    %v660 = vshrl.u32 %v659, 23
    %v661 = vsub.s32 %v660, 127
    %v662 = vand.u32 2147483647, %v23
    %v663 = vand.u32 %v662, 8388607
    %v664 = vor.u32 %v663, 8388608
    %v665 = vsub.s32 0, %v664
    %v666 = vadd.s32 %v661, 1
    %vm667 = vcmp.gt.s32.totalorder %v666, 0
    %v668 = vsel %vm667, %v666, 0
    %v669 = vshrl.u32 %v668, 5
    %v670 = vand.u32 %v668, 31
    %v671 = vsub.s32 32, %v670
    %v672 = vshrl.u32 683565275, %v671
    %v673 = vshll.u32 683565275, %v670
    %v674 = vshrl.u32 2475754826, %v671
    %v675 = vor.u32 %v673, %v674
    %v676 = vshll.u32 2475754826, %v670
    %v677 = vshrl.u32 2131351028, %v671
    %v678 = vor.u32 %v676, %v677
    %v679 = vshll.u32 2131351028, %v670
    %v680 = vshrl.u32 2102212464, %v671
    %v681 = vor.u32 %v679, %v680
    %v682 = vshll.u32 2102212464, %v670
    %v683 = vshrl.u32 920167782, %v671
    %v684 = vor.u32 %v682, %v683
    %v685 = vshll.u32 920167782, %v670
    %v686 = vshrl.u32 1326507024, %v671
    %v687 = vor.u32 %v685, %v686
    %vm688 = vcmp.lt.s32.totalorder %v669, 1
    %vm689 = vcmp.lt.s32.totalorder %v669, 2
    %vm690 = vcmp.lt.s32.totalorder %v669, 3
    %vm691 = vcmp.lt.s32.totalorder %v669, 4
    %v692 = vsel %vm688, %v672, %v675
    %v693 = vsel %vm691, %v681, 2102212464
    %v694 = vsel %vm690, %v678, %v693
    %v695 = vsel %vm689, %v692, %v694
    %v696 = vsel %vm688, %v675, %v678
    %v697 = vsel %vm691, %v684, 920167782
    %v698 = vsel %vm690, %v681, %v697
    %v699 = vsel %vm689, %v696, %v698
    %v700 = vsel %vm688, %v678, %v681
    %v701 = vsel %vm691, %v687, 1326507024
    %v702 = vsel %vm690, %v684, %v701
    %v703 = vsel %vm689, %v700, %v702
    %v704 = vshll.u32 %v664, 8
    %v705 = vand.u32 %v704, 65535
    %v706 = vshrl.u32 %v704, 16
    %v707 = vand.u32 %v703, 65535
    %v708 = vshrl.u32 %v703, 16
    %v709 = vmul.u32 %v705, %v707
    %v710 = vmul.u32 %v705, %v708
    %v711 = vmul.u32 %v706, %v707
    %v712 = vmul.u32 %v706, %v708
    %v713 = vshll.u32 %v710, 16
    %v714 = vshrl.u32 %v710, 16
    %v715 = vshll.u32 %v711, 16
    %v716 = vshrl.u32 %v711, 16
    %vm717 = vc.u32 %v709, %v713
    %v718 = vsel %vm717, 1, 0
    %v719 = vadd.s32 %v709, %v713
    %v720 = vadd.s32 %v712, %v718
    %vm721 = vc.u32 %v719, %v715
    %v722 = vsel %vm721, 1, 0
    %v723 = vadd.s32 %v719, %v715
    %v724 = vadd.s32 %v720, %v722
    %v725 = vadd.s32 %v724, %v714
    %v726 = vadd.s32 %v725, %v716
    %v727 = vand.u32 %v704, 65535
    %v728 = vshrl.u32 %v704, 16
    %v729 = vand.u32 %v699, 65535
    %v730 = vshrl.u32 %v699, 16
    %v731 = vmul.u32 %v727, %v729
    %v732 = vmul.u32 %v727, %v730
    %v733 = vmul.u32 %v728, %v729
    %v734 = vmul.u32 %v728, %v730
    %v735 = vshll.u32 %v732, 16
    %v736 = vshrl.u32 %v732, 16
    %v737 = vshll.u32 %v733, 16
    %v738 = vshrl.u32 %v733, 16
    %vm739 = vc.u32 %v731, %v735
    %v740 = vsel %vm739, 1, 0
    %v741 = vadd.s32 %v731, %v735
    %v742 = vadd.s32 %v734, %v740
    %vm743 = vc.u32 %v741, %v737
    %v744 = vsel %vm743, 1, 0
    %v745 = vadd.s32 %v741, %v737
    %v746 = vadd.s32 %v742, %v744
    %v747 = vadd.s32 %v746, %v736
    %v748 = vadd.s32 %v747, %v738
    %v749 = vmul.u32 %v704, %v695
    %v750 = vadd.s32 %v726, %v745
    %vm751 = vc.u32 %v726, %v745
    %v752 = vadd.s32 %v748, 1
    %v753 = vsel %vm751, %v752, %v748
    %v754 = vadd.s32 %v749, %v753
    %v755 = vadd.s32 %v754, 536870912
    %v756 = vshrl.u32 %v755, 30
    %v757 = vshll.u32 %v756, 30
    %v758 = vsub.s32 %v754, %v757
    %vm759 = vcmp.lt.s32.totalorder %v758, 0
    %v760 = vsub.s32 0, %v758
    %v761 = vsel %vm759, %v760, %v758
    %v762 = vclz %v761
    %v763 = vsub.s32 %v762, 2
    %vm764 = vcmp.gt.s32.totalorder 0, %v763
    %v765 = vsel %vm764, 0, %v763
    %v766 = vsub.s32 32, %v765
    %v767 = vshll.u32 %v758, %v765
    %v768 = vshrl.u32 %v750, %v766
    %v769 = vor.u32 %v767, %v768
    %v770 = vsub.s32 4294967266, %v765
    %v771 = vadd.s32 %v770, 127
    %v772 = vshll.u32 %v771, 23
    %v773 = vor.u32 4788187, %v772
    %v774 = vand.u32 2147483647, %v773
    %v776 = vcvt.s32.f32 %v769
    %v777 = vmul.f32 %v776, %v774
    %v778 = vxor.u32 %v777, 2147483648
    %v779 = vsel %vm658, %v778, %v777
    %v780 = vsub.s32 4, %v756
    %v781 = vsel %vm658, %v780, %v756
    %v782 = vsel %vm657, %v23, %v779
    %v783 = vsel %vm657, 0, %v781
    %v784 = vmul.f32 %v782, %v782
    %v785 = vmul.f32 %v784, -0.001358992
    %v786 = vadd.f32 %v785, 0.041655596
    %v787 = vmul.f32 %v784, %v786
    %v788 = vadd.f32 %v787, -0.4999988
    %v789 = vmul.f32 %v784, %v788
    %v790 = vadd.f32 1.0, %v789
    %v791 = vmul.f32 %v782, %v782
    %v792 = vmul.f32 %v791, -0.00019511016
    %v793 = vadd.f32 %v792, 0.008332121
    %v794 = vmul.f32 %v791, %v793
    %v795 = vadd.f32 %v794, -0.16666654
    %v796 = vmul.f32 %v791, %v795
    %v797 = vadd.f32 %v796, 1.0
    %v798 = vmul.f32 %v797, %v782
    %vm799 = vweird.f32 %v23
    %v800 = vand.u32 %v783, 3
    %vm801 = vcmp.lt.s32.totalorder %v800, 2
    %vm802 = vcmp.eq.s32.totalorder %v800, 0
    %v803 = vxor.u32 %v798, 2147483648
    %v804 = vsel %vm802, %v790, %v803
    %vm805 = vcmp.eq.s32.totalorder %v800, 2
    %v806 = vxor.u32 %v790, 2147483648
    %v807 = vsel %vm805, %v806, %v798
    %v808 = vsel %vm801, %v804, %v807
    %v809 = vsel %vm799, nan, %v808
    %v810 = vand.u32 2147483647, %v24
    %vm811 = vcmp.le.f32.partialorder %v810, 0.7853982
    %vm812 = vcmp.lt.s32.totalorder %v24, 0
    %v813 = vand.u32 %v24, 2139095040
    %v814 = vshrl.u32 %v813, 23
    %v815 = vsub.s32 %v814, 127
    %v816 = vand.u32 2147483647, %v24
    %v817 = vand.u32 %v816, 8388607
    %v818 = vor.u32 %v817, 8388608
    %v819 = vsub.s32 0, %v818
    %v820 = vadd.s32 %v815, 1
    %vm821 = vcmp.gt.s32.totalorder %v820, 0
    %v822 = vsel %vm821, %v820, 0
    %v823 = vshrl.u32 %v822, 5
    %v824 = vand.u32 %v822, 31
    %v825 = vsub.s32 32, %v824
    %v826 = vshrl.u32 683565275, %v825
    %v827 = vshll.u32 683565275, %v824
    %v828 = vshrl.u32 2475754826, %v825
    %v829 = vor.u32 %v827, %v828
    %v830 = vshll.u32 2475754826, %v824
    %v831 = vshrl.u32 2131351028, %v825
    %v832 = vor.u32 %v830, %v831
    %v833 = vshll.u32 2131351028, %v824
    %v834 = vshrl.u32 2102212464, %v825
    %v835 = vor.u32 %v833, %v834
    %v836 = vshll.u32 2102212464, %v824
    %v837 = vshrl.u32 920167782, %v825
    %v838 = vor.u32 %v836, %v837
    %v839 = vshll.u32 920167782, %v824
    %v840 = vshrl.u32 1326507024, %v825
    %v841 = vor.u32 %v839, %v840
    %vm842 = vcmp.lt.s32.totalorder %v823, 1
    %vm843 = vcmp.lt.s32.totalorder %v823, 2
    %vm844 = vcmp.lt.s32.totalorder %v823, 3
    %vm845 = vcmp.lt.s32.totalorder %v823, 4
    %v846 = vsel %vm842, %v826, %v829
    %v847 = vsel %vm845, %v835, 2102212464
    %v848 = vsel %vm844, %v832, %v847
    %v849 = vsel %vm843, %v846, %v848
    %v850 = vsel %vm842, %v829, %v832
    %v851 = vsel %vm845, %v838, 920167782
    %v852 = vsel %vm844, %v835, %v851
    %v853 = vsel %vm843, %v850, %v852
    %v854 = vsel %vm842, %v832, %v835
    %v855 = vsel %vm845, %v841, 1326507024
    %v856 = vsel %vm844, %v838, %v855
    %v857 = vsel %vm843, %v854, %v856
    %v858 = vshll.u32 %v818, 8
    %v859 = vand.u32 %v858, 65535
    %v860 = vshrl.u32 %v858, 16
    %v861 = vand.u32 %v857, 65535
    %v862 = vshrl.u32 %v857, 16
    %v863 = vmul.u32 %v859, %v861
    %v864 = vmul.u32 %v859, %v862
    %v865 = vmul.u32 %v860, %v861
    %v866 = vmul.u32 %v860, %v862
    %v867 = vshll.u32 %v864, 16
    %v868 = vshrl.u32 %v864, 16
    %v869 = vshll.u32 %v865, 16
    %v870 = vshrl.u32 %v865, 16
    %vm871 = vc.u32 %v863, %v867
    %v872 = vsel %vm871, 1, 0
    %v873 = vadd.s32 %v863, %v867
    %v874 = vadd.s32 %v866, %v872
    %vm875 = vc.u32 %v873, %v869
    %v876 = vsel %vm875, 1, 0
    %v877 = vadd.s32 %v873, %v869
    %v878 = vadd.s32 %v874, %v876
    %v879 = vadd.s32 %v878, %v868
    %v880 = vadd.s32 %v879, %v870
    %v881 = vand.u32 %v858, 65535
    %v882 = vshrl.u32 %v858, 16
    %v883 = vand.u32 %v853, 65535
    %v884 = vshrl.u32 %v853, 16
    %v885 = vmul.u32 %v881, %v883
    %v886 = vmul.u32 %v881, %v884
    %v887 = vmul.u32 %v882, %v883
    %v888 = vmul.u32 %v882, %v884
    %v889 = vshll.u32 %v886, 16
    %v890 = vshrl.u32 %v886, 16
    %v891 = vshll.u32 %v887, 16
    %v892 = vshrl.u32 %v887, 16
    %vm893 = vc.u32 %v885, %v889
    %v894 = vsel %vm893, 1, 0
    %v895 = vadd.s32 %v885, %v889
    %v896 = vadd.s32 %v888, %v894
    %vm897 = vc.u32 %v895, %v891
    %v898 = vsel %vm897, 1, 0
    %v899 = vadd.s32 %v895, %v891
    %v900 = vadd.s32 %v896, %v898
    %v901 = vadd.s32 %v900, %v890
    %v902 = vadd.s32 %v901, %v892
    %v903 = vmul.u32 %v858, %v849
    %v904 = vadd.s32 %v880, %v899
    %vm905 = vc.u32 %v880, %v899
    %v906 = vadd.s32 %v902, 1
    %v907 = vsel %vm905, %v906, %v902
    %v908 = vadd.s32 %v903, %v907
    %v909 = vadd.s32 %v908, 536870912
    %v910 = vshrl.u32 %v909, 30
    %v911 = vshll.u32 %v910, 30
    %v912 = vsub.s32 %v908, %v911
    %vm913 = vcmp.lt.s32.totalorder %v912, 0
    %v914 = vsub.s32 0, %v912
    %v915 = vsel %vm913, %v914, %v912
    %v916 = vclz %v915
    %v917 = vsub.s32 %v916, 2
    %vm918 = vcmp.gt.s32.totalorder 0, %v917
    %v919 = vsel %vm918, 0, %v917
    %v920 = vsub.s32 32, %v919
    %v921 = vshll.u32 %v912, %v919
    %v922 = vshrl.u32 %v904, %v920
    %v923 = vor.u32 %v921, %v922
    %v924 = vsub.s32 4294967266, %v919
    %v925 = vadd.s32 %v924, 127
    %v926 = vshll.u32 %v925, 23
    %v927 = vor.u32 4788187, %v926
    %v928 = vand.u32 2147483647, %v927
    %v930 = vcvt.s32.f32 %v923
    %v931 = vmul.f32 %v930, %v928
    %v932 = vxor.u32 %v931, 2147483648
    %v933 = vsel %vm812, %v932, %v931
    %v934 = vsub.s32 4, %v910
    %v935 = vsel %vm812, %v934, %v910
    %v936 = vsel %vm811, %v24, %v933
    %v937 = vsel %vm811, 0, %v935
    %v938 = vmul.f32 %v936, %v936
    %v939 = vmul.f32 %v938, -0.001358992
    %v940 = vadd.f32 %v939, 0.041655596
    %v941 = vmul.f32 %v938, %v940
    %v942 = vadd.f32 %v941, -0.4999988
    %v943 = vmul.f32 %v938, %v942
    %v944 = vadd.f32 1.0, %v943
    %v945 = vmul.f32 %v936, %v936
    %v946 = vmul.f32 %v945, -0.00019511016
    %v947 = vadd.f32 %v946, 0.008332121
    %v948 = vmul.f32 %v945, %v947
    %v949 = vadd.f32 %v948, -0.16666654
    %v950 = vmul.f32 %v945, %v949
    %v951 = vadd.f32 %v950, 1.0
    %v952 = vmul.f32 %v951, %v936
    %vm953 = vweird.f32 %v24
    %v954 = vand.u32 %v937, 3
    %vm955 = vcmp.lt.s32.totalorder %v954, 2
    %vm956 = vcmp.eq.s32.totalorder %v954, 0
    %v957 = vxor.u32 %v952, 2147483648
    %v958 = vsel %vm956, %v944, %v957
    %vm959 = vcmp.eq.s32.totalorder %v954, 2
    %v960 = vxor.u32 %v944, 2147483648
    %v961 = vsel %vm959, %v960, %v952
    %v962 = vsel %vm955, %v958, %v961
    %v963 = vsel %vm953, nan, %v962
    %v964 = vand.u32 2147483647, %v25
    %vm965 = vcmp.le.f32.partialorder %v964, 0.7853982
    %vm966 = vcmp.lt.s32.totalorder %v25, 0
    %v967 = vand.u32 %v25, 2139095040
    %v968 = vshrl.u32 %v967, 23
    %v969 = vsub.s32 %v968, 127
    %v970 = vand.u32 2147483647, %v25
    %v971 = vand.u32 %v970, 8388607
    %v972 = vor.u32 %v971, 8388608
    %v973 = vsub.s32 0, %v972
    %v974 = vadd.s32 %v969, 1
    %vm975 = vcmp.gt.s32.totalorder %v974, 0
    %v976 = vsel %vm975, %v974, 0
    %v977 = vshrl.u32 %v976, 5
    %v978 = vand.u32 %v976, 31
    %v979 = vsub.s32 32, %v978
    %v980 = vshrl.u32 683565275, %v979
    %v981 = vshll.u32 683565275, %v978
    %v982 = vshrl.u32 2475754826, %v979
    %v983 = vor.u32 %v981, %v982
    %v984 = vshll.u32 2475754826, %v978
    %v985 = vshrl.u32 2131351028, %v979
    %v986 = vor.u32 %v984, %v985
    %v987 = vshll.u32 2131351028, %v978
    %v988 = vshrl.u32 2102212464, %v979
    %v989 = vor.u32 %v987, %v988
    %v990 = vshll.u32 2102212464, %v978
    %v991 = vshrl.u32 920167782, %v979
    %v992 = vor.u32 %v990, %v991
    %v993 = vshll.u32 920167782, %v978
    %v994 = vshrl.u32 1326507024, %v979
    %v995 = vor.u32 %v993, %v994
    %vm996 = vcmp.lt.s32.totalorder %v977, 1
    %vm997 = vcmp.lt.s32.totalorder %v977, 2
    %vm998 = vcmp.lt.s32.totalorder %v977, 3
    %vm999 = vcmp.lt.s32.totalorder %v977, 4
    %v1000 = vsel %vm996, %v980, %v983
    %v1001 = vsel %vm999, %v989, 2102212464
    %v1002 = vsel %vm998, %v986, %v1001
    %v1003 = vsel %vm997, %v1000, %v1002
    %v1004 = vsel %vm996, %v983, %v986
    %v1005 = vsel %vm999, %v992, 920167782
    %v1006 = vsel %vm998, %v989, %v1005
    %v1007 = vsel %vm997, %v1004, %v1006
    %v1008 = vsel %vm996, %v986, %v989
    %v1009 = vsel %vm999, %v995, 1326507024
    %v1010 = vsel %vm998, %v992, %v1009
    %v1011 = vsel %vm997, %v1008, %v1010
    %v1012 = vshll.u32 %v972, 8
    %v1013 = vand.u32 %v1012, 65535
    %v1014 = vshrl.u32 %v1012, 16
    %v1015 = vand.u32 %v1011, 65535
    %v1016 = vshrl.u32 %v1011, 16
    %v1017 = vmul.u32 %v1013, %v1015
    %v1018 = vmul.u32 %v1013, %v1016
    %v1019 = vmul.u32 %v1014, %v1015
    %v1020 = vmul.u32 %v1014, %v1016
    %v1021 = vshll.u32 %v1018, 16
    %v1022 = vshrl.u32 %v1018, 16
    %v1023 = vshll.u32 %v1019, 16
    %v1024 = vshrl.u32 %v1019, 16
    %vm1025 = vc.u32 %v1017, %v1021
    %v1026 = vsel %vm1025, 1, 0
    %v1027 = vadd.s32 %v1017, %v1021
    %v1028 = vadd.s32 %v1020, %v1026
    %vm1029 = vc.u32 %v1027, %v1023
    %v1030 = vsel %vm1029, 1, 0
    %v1031 = vadd.s32 %v1027, %v1023
    %v1032 = vadd.s32 %v1028, %v1030
    %v1033 = vadd.s32 %v1032, %v1022
    %v1034 = vadd.s32 %v1033, %v1024
    %v1035 = vand.u32 %v1012, 65535
    %v1036 = vshrl.u32 %v1012, 16
    %v1037 = vand.u32 %v1007, 65535
    %v1038 = vshrl.u32 %v1007, 16
    %v1039 = vmul.u32 %v1035, %v1037
    %v1040 = vmul.u32 %v1035, %v1038
    %v1041 = vmul.u32 %v1036, %v1037
    %v1042 = vmul.u32 %v1036, %v1038
    %v1043 = vshll.u32 %v1040, 16
    %v1044 = vshrl.u32 %v1040, 16
    %v1045 = vshll.u32 %v1041, 16
    %v1046 = vshrl.u32 %v1041, 16
    %vm1047 = vc.u32 %v1039, %v1043
    %v1048 = vsel %vm1047, 1, 0
    %v1049 = vadd.s32 %v1039, %v1043
    %v1050 = vadd.s32 %v1042, %v1048
    %vm1051 = vc.u32 %v1049, %v1045
    %v1052 = vsel %vm1051, 1, 0
    %v1053 = vadd.s32 %v1049, %v1045
    %v1054 = vadd.s32 %v1050, %v1052
    %v1055 = vadd.s32 %v1054, %v1044
    %v1056 = vadd.s32 %v1055, %v1046
    %v1057 = vmul.u32 %v1012, %v1003
    %v1058 = vadd.s32 %v1034, %v1053
    %vm1059 = vc.u32 %v1034, %v1053
    %v1060 = vadd.s32 %v1056, 1
    %v1061 = vsel %vm1059, %v1060, %v1056
    %v1062 = vadd.s32 %v1057, %v1061
    %v1063 = vadd.s32 %v1062, 536870912
    %v1064 = vshrl.u32 %v1063, 30
    %v1065 = vshll.u32 %v1064, 30
    %v1066 = vsub.s32 %v1062, %v1065
    %vm1067 = vcmp.lt.s32.totalorder %v1066, 0
    %v1068 = vsub.s32 0, %v1066
    %v1069 = vsel %vm1067, %v1068, %v1066
    %v1070 = vclz %v1069
    %v1071 = vsub.s32 %v1070, 2
    %vm1072 = vcmp.gt.s32.totalorder 0, %v1071
    %v1073 = vsel %vm1072, 0, %v1071
    %v1074 = vsub.s32 32, %v1073
    %v1075 = vshll.u32 %v1066, %v1073
    %v1076 = vshrl.u32 %v1058, %v1074
    %v1077 = vor.u32 %v1075, %v1076
    %v1078 = vsub.s32 4294967266, %v1073
    %v1079 = vadd.s32 %v1078, 127
    %v1080 = vshll.u32 %v1079, 23
    %v1081 = vor.u32 4788187, %v1080
    %v1082 = vand.u32 2147483647, %v1081
    %v1084 = vcvt.s32.f32 %v1077
    %v1085 = vmul.f32 %v1084, %v1082
    %v1086 = vxor.u32 %v1085, 2147483648
    %v1087 = vsel %vm966, %v1086, %v1085
    %v1088 = vsub.s32 4, %v1064
    %v1089 = vsel %vm966, %v1088, %v1064
    %v1090 = vsel %vm965, %v25, %v1087
    %v1091 = vsel %vm965, 0, %v1089
    %v1092 = vmul.f32 %v1090, %v1090
    %v1093 = vmul.f32 %v1092, -0.001358992
    %v1094 = vadd.f32 %v1093, 0.041655596
    %v1095 = vmul.f32 %v1092, %v1094
    %v1096 = vadd.f32 %v1095, -0.4999988
    %v1097 = vmul.f32 %v1092, %v1096
    %v1098 = vadd.f32 1.0, %v1097
    %v1099 = vmul.f32 %v1090, %v1090
    %v1100 = vmul.f32 %v1099, -0.00019511016
    %v1101 = vadd.f32 %v1100, 0.008332121
    %v1102 = vmul.f32 %v1099, %v1101
    %v1103 = vadd.f32 %v1102, -0.16666654
    %v1104 = vmul.f32 %v1099, %v1103
    %v1105 = vadd.f32 %v1104, 1.0
    %v1106 = vmul.f32 %v1105, %v1090
    %vm1107 = vweird.f32 %v25
    %v1108 = vand.u32 %v1091, 3
    %vm1109 = vcmp.lt.s32.totalorder %v1108, 2
    %vm1110 = vcmp.eq.s32.totalorder %v1108, 0
    %v1111 = vxor.u32 %v1106, 2147483648
    %v1112 = vsel %vm1110, %v1098, %v1111
    %vm1113 = vcmp.eq.s32.totalorder %v1108, 2
    %v1114 = vxor.u32 %v1098, 2147483648
    %v1115 = vsel %vm1113, %v1114, %v1106
    %v1116 = vsel %vm1109, %v1112, %v1115
    %v1117 = vsel %vm1107, nan, %v1116
    %v1118 = vand.u32 2147483647, %v26
    %vm1119 = vcmp.le.f32.partialorder %v1118, 0.7853982
    %vm1120 = vcmp.lt.s32.totalorder %v26, 0
    %v1121 = vand.u32 %v26, 2139095040
    %v1122 = vshrl.u32 %v1121, 23
    %v1123 = vsub.s32 %v1122, 127
    %v1124 = vand.u32 2147483647, %v26
    %v1125 = vand.u32 %v1124, 8388607
    %v1126 = vor.u32 %v1125, 8388608
    %v1127 = vsub.s32 0, %v1126
    %v1128 = vadd.s32 %v1123, 1
    %vm1129 = vcmp.gt.s32.totalorder %v1128, 0
    %v1130 = vsel %vm1129, %v1128, 0
    %v1131 = vshrl.u32 %v1130, 5
    %v1132 = vand.u32 %v1130, 31
    %v1133 = vsub.s32 32, %v1132
    %v1134 = vshrl.u32 683565275, %v1133
    %v1135 = vshll.u32 683565275, %v1132
    %v1136 = vshrl.u32 2475754826, %v1133
    %v1137 = vor.u32 %v1135, %v1136
    %v1138 = vshll.u32 2475754826, %v1132
    %v1139 = vshrl.u32 2131351028, %v1133
    %v1140 = vor.u32 %v1138, %v1139
    %v1141 = vshll.u32 2131351028, %v1132
    %v1142 = vshrl.u32 2102212464, %v1133
    %v1143 = vor.u32 %v1141, %v1142
    %v1144 = vshll.u32 2102212464, %v1132
    %v1145 = vshrl.u32 920167782, %v1133
    %v1146 = vor.u32 %v1144, %v1145
    %v1147 = vshll.u32 920167782, %v1132
    %v1148 = vshrl.u32 1326507024, %v1133
    %v1149 = vor.u32 %v1147, %v1148
    %vm1150 = vcmp.lt.s32.totalorder %v1131, 1
    %vm1151 = vcmp.lt.s32.totalorder %v1131, 2
    %vm1152 = vcmp.lt.s32.totalorder %v1131, 3
    %vm1153 = vcmp.lt.s32.totalorder %v1131, 4
    %v1154 = vsel %vm1150, %v1134, %v1137
    %v1155 = vsel %vm1153, %v1143, 2102212464
    %v1156 = vsel %vm1152, %v1140, %v1155
    %v1157 = vsel %vm1151, %v1154, %v1156
    %v1158 = vsel %vm1150, %v1137, %v1140
    %v1159 = vsel %vm1153, %v1146, 920167782
    %v1160 = vsel %vm1152, %v1143, %v1159
    %v1161 = vsel %vm1151, %v1158, %v1160
    %v1162 = vsel %vm1150, %v1140, %v1143
    %v1163 = vsel %vm1153, %v1149, 1326507024
    %v1164 = vsel %vm1152, %v1146, %v1163
    %v1165 = vsel %vm1151, %v1162, %v1164
    %v1166 = vshll.u32 %v1126, 8
    %v1167 = vand.u32 %v1166, 65535
    %v1168 = vshrl.u32 %v1166, 16
    %v1169 = vand.u32 %v1165, 65535
    %v1170 = vshrl.u32 %v1165, 16
    %v1171 = vmul.u32 %v1167, %v1169
    %v1172 = vmul.u32 %v1167, %v1170
    %v1173 = vmul.u32 %v1168, %v1169
    %v1174 = vmul.u32 %v1168, %v1170
    %v1175 = vshll.u32 %v1172, 16
    %v1176 = vshrl.u32 %v1172, 16
    %v1177 = vshll.u32 %v1173, 16
    %v1178 = vshrl.u32 %v1173, 16
    %vm1179 = vc.u32 %v1171, %v1175
    %v1180 = vsel %vm1179, 1, 0
    %v1181 = vadd.s32 %v1171, %v1175
    %v1182 = vadd.s32 %v1174, %v1180
    %vm1183 = vc.u32 %v1181, %v1177
    %v1184 = vsel %vm1183, 1, 0
    %v1185 = vadd.s32 %v1181, %v1177
    %v1186 = vadd.s32 %v1182, %v1184
    %v1187 = vadd.s32 %v1186, %v1176
    %v1188 = vadd.s32 %v1187, %v1178
    %v1189 = vand.u32 %v1166, 65535
    %v1190 = vshrl.u32 %v1166, 16
    %v1191 = vand.u32 %v1161, 65535
    %v1192 = vshrl.u32 %v1161, 16
    %v1193 = vmul.u32 %v1189, %v1191
    %v1194 = vmul.u32 %v1189, %v1192
    %v1195 = vmul.u32 %v1190, %v1191
    %v1196 = vmul.u32 %v1190, %v1192
    %v1197 = vshll.u32 %v1194, 16
    %v1198 = vshrl.u32 %v1194, 16
    %v1199 = vshll.u32 %v1195, 16
    %v1200 = vshrl.u32 %v1195, 16
    %vm1201 = vc.u32 %v1193, %v1197
    %v1202 = vsel %vm1201, 1, 0
    %v1203 = vadd.s32 %v1193, %v1197
    %v1204 = vadd.s32 %v1196, %v1202
    %vm1205 = vc.u32 %v1203, %v1199
    %v1206 = vsel %vm1205, 1, 0
    %v1207 = vadd.s32 %v1203, %v1199
    %v1208 = vadd.s32 %v1204, %v1206
    %v1209 = vadd.s32 %v1208, %v1198
    %v1210 = vadd.s32 %v1209, %v1200
    %v1211 = vmul.u32 %v1166, %v1157
    %v1212 = vadd.s32 %v1188, %v1207
    %vm1213 = vc.u32 %v1188, %v1207
    %v1214 = vadd.s32 %v1210, 1
    %v1215 = vsel %vm1213, %v1214, %v1210
    %v1216 = vadd.s32 %v1211, %v1215
    %v1217 = vadd.s32 %v1216, 536870912
    %v1218 = vshrl.u32 %v1217, 30
    %v1219 = vshll.u32 %v1218, 30
    %v1220 = vsub.s32 %v1216, %v1219
    %vm1221 = vcmp.lt.s32.totalorder %v1220, 0
    %v1222 = vsub.s32 0, %v1220
    %v1223 = vsel %vm1221, %v1222, %v1220
    %v1224 = vclz %v1223
    %v1225 = vsub.s32 %v1224, 2
    %vm1226 = vcmp.gt.s32.totalorder 0, %v1225
    %v1227 = vsel %vm1226, 0, %v1225
    %v1228 = vsub.s32 32, %v1227
    %v1229 = vshll.u32 %v1220, %v1227
    %v1230 = vshrl.u32 %v1212, %v1228
    %v1231 = vor.u32 %v1229, %v1230
    %v1232 = vsub.s32 4294967266, %v1227
    %v1233 = vadd.s32 %v1232, 127
    %v1234 = vshll.u32 %v1233, 23
    %v1235 = vor.u32 4788187, %v1234
    %v1236 = vand.u32 2147483647, %v1235
    %v1238 = vcvt.s32.f32 %v1231
    %v1239 = vmul.f32 %v1238, %v1236
    %v1240 = vxor.u32 %v1239, 2147483648
    %v1241 = vsel %vm1120, %v1240, %v1239
    %v1242 = vsub.s32 4, %v1218
    %v1243 = vsel %vm1120, %v1242, %v1218
    %v1244 = vsel %vm1119, %v26, %v1241
    %v1245 = vsel %vm1119, 0, %v1243
    %v1246 = vmul.f32 %v1244, %v1244
    %v1247 = vmul.f32 %v1246, -0.001358992
    %v1248 = vadd.f32 %v1247, 0.041655596
    %v1249 = vmul.f32 %v1246, %v1248
    %v1250 = vadd.f32 %v1249, -0.4999988
    %v1251 = vmul.f32 %v1246, %v1250
    %v1252 = vadd.f32 1.0, %v1251
    %v1253 = vmul.f32 %v1244, %v1244
    %v1254 = vmul.f32 %v1253, -0.00019511016
    %v1255 = vadd.f32 %v1254, 0.008332121
    %v1256 = vmul.f32 %v1253, %v1255
    %v1257 = vadd.f32 %v1256, -0.16666654
    %v1258 = vmul.f32 %v1253, %v1257
    %v1259 = vadd.f32 %v1258, 1.0
    %v1260 = vmul.f32 %v1259, %v1244
    %vm1261 = vweird.f32 %v26
    %v1262 = vand.u32 %v1245, 3
    %vm1263 = vcmp.lt.s32.totalorder %v1262, 2
    %vm1264 = vcmp.eq.s32.totalorder %v1262, 0
    %v1265 = vxor.u32 %v1260, 2147483648
    %v1266 = vsel %vm1264, %v1252, %v1265
    %vm1267 = vcmp.eq.s32.totalorder %v1262, 2
    %v1268 = vxor.u32 %v1252, 2147483648
    %v1269 = vsel %vm1267, %v1268, %v1260
    %v1270 = vsel %vm1263, %v1266, %v1269
    %v1271 = vsel %vm1261, nan, %v1270
    %s1272 = scalar_lea.vmem [#allocation5], 64
    %1273 = vst [vmem:[%s1272] sm:$0xff] %v809
    %1274 = vst [vmem:[%s1272 + $0x8] sm:$0xff] %v963
    %1275 = vst [vmem:[%s1272 + $0x10] sm:$0xff] %v1117
    %1276 = vst [vmem:[%s1272 + $0x18] sm:$0xff] %v1271
    %v1277 = vmul.f32 %v23, 8.0
    %v1278 = vmul.f32 %v24, 8.0
    %v1279 = vmul.f32 %v25, 8.0
    %v1280 = vmul.f32 %v26, 8.0
    %v1281 = vand.u32 2147483647, %v1277
    %vm1282 = vcmp.le.f32.partialorder %v1281, 0.7853982
    %vm1283 = vcmp.lt.s32.totalorder %v1277, 0
    %v1284 = vand.u32 %v1277, 2139095040
    %v1285 = vshrl.u32 %v1284, 23
    %v1286 = vsub.s32 %v1285, 127
    %v1287 = vand.u32 2147483647, %v1277
    %v1288 = vand.u32 %v1287, 8388607
    %v1289 = vor.u32 %v1288, 8388608
    %v1290 = vsub.s32 0, %v1289
    %v1291 = vadd.s32 %v1286, 1
    %vm1292 = vcmp.gt.s32.totalorder %v1291, 0
    %v1293 = vsel %vm1292, %v1291, 0
    %v1294 = vshrl.u32 %v1293, 5
    %v1295 = vand.u32 %v1293, 31
    %v1296 = vsub.s32 32, %v1295
    %v1297 = vshrl.u32 683565275, %v1296
    %v1298 = vshll.u32 683565275, %v1295
    %v1299 = vshrl.u32 2475754826, %v1296
    %v1300 = vor.u32 %v1298, %v1299
    %v1301 = vshll.u32 2475754826, %v1295
    %v1302 = vshrl.u32 2131351028, %v1296
    %v1303 = vor.u32 %v1301, %v1302
    %v1304 = vshll.u32 2131351028, %v1295
    %v1305 = vshrl.u32 2102212464, %v1296
    %v1306 = vor.u32 %v1304, %v1305
    %v1307 = vshll.u32 2102212464, %v1295
    %v1308 = vshrl.u32 920167782, %v1296
    %v1309 = vor.u32 %v1307, %v1308
    %v1310 = vshll.u32 920167782, %v1295
    %v1311 = vshrl.u32 1326507024, %v1296
    %v1312 = vor.u32 %v1310, %v1311
    %vm1313 = vcmp.lt.s32.totalorder %v1294, 1
    %vm1314 = vcmp.lt.s32.totalorder %v1294, 2
    %vm1315 = vcmp.lt.s32.totalorder %v1294, 3
    %vm1316 = vcmp.lt.s32.totalorder %v1294, 4
    %v1317 = vsel %vm1313, %v1297, %v1300
    %v1318 = vsel %vm1316, %v1306, 2102212464
    %v1319 = vsel %vm1315, %v1303, %v1318
    %v1320 = vsel %vm1314, %v1317, %v1319
    %v1321 = vsel %vm1313, %v1300, %v1303
    %v1322 = vsel %vm1316, %v1309, 920167782
    %v1323 = vsel %vm1315, %v1306, %v1322
    %v1324 = vsel %vm1314, %v1321, %v1323
    %v1325 = vsel %vm1313, %v1303, %v1306
    %v1326 = vsel %vm1316, %v1312, 1326507024
    %v1327 = vsel %vm1315, %v1309, %v1326
    %v1328 = vsel %vm1314, %v1325, %v1327
    %v1329 = vshll.u32 %v1289, 8
    %v1330 = vand.u32 %v1329, 65535
    %v1331 = vshrl.u32 %v1329, 16
    %v1332 = vand.u32 %v1328, 65535
    %v1333 = vshrl.u32 %v1328, 16
    %v1334 = vmul.u32 %v1330, %v1332
    %v1335 = vmul.u32 %v1330, %v1333
    %v1336 = vmul.u32 %v1331, %v1332
    %v1337 = vmul.u32 %v1331, %v1333
    %v1338 = vshll.u32 %v1335, 16
    %v1339 = vshrl.u32 %v1335, 16
    %v1340 = vshll.u32 %v1336, 16
    %v1341 = vshrl.u32 %v1336, 16
    %vm1342 = vc.u32 %v1334, %v1338
    %v1343 = vsel %vm1342, 1, 0
    %v1344 = vadd.s32 %v1334, %v1338
    %v1345 = vadd.s32 %v1337, %v1343
    %vm1346 = vc.u32 %v1344, %v1340
    %v1347 = vsel %vm1346, 1, 0
    %v1348 = vadd.s32 %v1344, %v1340
    %v1349 = vadd.s32 %v1345, %v1347
    %v1350 = vadd.s32 %v1349, %v1339
    %v1351 = vadd.s32 %v1350, %v1341
    %v1352 = vand.u32 %v1329, 65535
    %v1353 = vshrl.u32 %v1329, 16
    %v1354 = vand.u32 %v1324, 65535
    %v1355 = vshrl.u32 %v1324, 16
    %v1356 = vmul.u32 %v1352, %v1354
    %v1357 = vmul.u32 %v1352, %v1355
    %v1358 = vmul.u32 %v1353, %v1354
    %v1359 = vmul.u32 %v1353, %v1355
    %v1360 = vshll.u32 %v1357, 16
    %v1361 = vshrl.u32 %v1357, 16
    %v1362 = vshll.u32 %v1358, 16
    %v1363 = vshrl.u32 %v1358, 16
    %vm1364 = vc.u32 %v1356, %v1360
    %v1365 = vsel %vm1364, 1, 0
    %v1366 = vadd.s32 %v1356, %v1360
    %v1367 = vadd.s32 %v1359, %v1365
    %vm1368 = vc.u32 %v1366, %v1362
    %v1369 = vsel %vm1368, 1, 0
    %v1370 = vadd.s32 %v1366, %v1362
    %v1371 = vadd.s32 %v1367, %v1369
    %v1372 = vadd.s32 %v1371, %v1361
    %v1373 = vadd.s32 %v1372, %v1363
    %v1374 = vmul.u32 %v1329, %v1320
    %v1375 = vadd.s32 %v1351, %v1370
    %vm1376 = vc.u32 %v1351, %v1370
    %v1377 = vadd.s32 %v1373, 1
    %v1378 = vsel %vm1376, %v1377, %v1373
    %v1379 = vadd.s32 %v1374, %v1378
    %v1380 = vadd.s32 %v1379, 536870912
    %v1381 = vshrl.u32 %v1380, 30
    %v1382 = vshll.u32 %v1381, 30
    %v1383 = vsub.s32 %v1379, %v1382
    %vm1384 = vcmp.lt.s32.totalorder %v1383, 0
    %v1385 = vsub.s32 0, %v1383
    %v1386 = vsel %vm1384, %v1385, %v1383
    %v1387 = vclz %v1386
    %v1388 = vsub.s32 %v1387, 2
    %vm1389 = vcmp.gt.s32.totalorder 0, %v1388
    %v1390 = vsel %vm1389, 0, %v1388
    %v1391 = vsub.s32 32, %v1390
    %v1392 = vshll.u32 %v1383, %v1390
    %v1393 = vshrl.u32 %v1375, %v1391
    %v1394 = vor.u32 %v1392, %v1393
    %v1395 = vsub.s32 4294967266, %v1390
    %v1396 = vadd.s32 %v1395, 127
    %v1397 = vshll.u32 %v1396, 23
    %v1398 = vor.u32 4788187, %v1397
    %v1399 = vand.u32 2147483647, %v1398
    %v1401 = vcvt.s32.f32 %v1394
    %v1402 = vmul.f32 %v1401, %v1399
    %v1403 = vxor.u32 %v1402, 2147483648
    %v1404 = vsel %vm1283, %v1403, %v1402
    %v1405 = vsub.s32 4, %v1381
    %v1406 = vsel %vm1283, %v1405, %v1381
    %v1407 = vsel %vm1282, %v1277, %v1404
    %v1408 = vsel %vm1282, 0, %v1406
    %v1409 = vmul.f32 %v1407, %v1407
    %v1410 = vmul.f32 %v1409, -0.001358992
    %v1411 = vadd.f32 %v1410, 0.041655596
    %v1412 = vmul.f32 %v1409, %v1411
    %v1413 = vadd.f32 %v1412, -0.4999988
    %v1414 = vmul.f32 %v1409, %v1413
    %v1415 = vadd.f32 1.0, %v1414
    %v1416 = vmul.f32 %v1407, %v1407
    %v1417 = vmul.f32 %v1416, -0.00019511016
    %v1418 = vadd.f32 %v1417, 0.008332121
    %v1419 = vmul.f32 %v1416, %v1418
    %v1420 = vadd.f32 %v1419, -0.16666654
    %v1421 = vmul.f32 %v1416, %v1420
    %v1422 = vadd.f32 %v1421, 1.0
    %v1423 = vmul.f32 %v1422, %v1407
    %vm1424 = vweird.f32 %v1277
    %v1425 = vadd.s32 %v1408, 3
    %v1426 = vand.u32 %v1425, 3
    %vm1427 = vcmp.lt.s32.totalorder %v1426, 2
    %vm1428 = vcmp.eq.s32.totalorder %v1426, 0
    %v1429 = vxor.u32 %v1423, 2147483648
    %v1430 = vsel %vm1428, %v1415, %v1429
    %vm1431 = vcmp.eq.s32.totalorder %v1426, 2
    %v1432 = vxor.u32 %v1415, 2147483648
    %v1433 = vsel %vm1431, %v1432, %v1423
    %v1434 = vsel %vm1427, %v1430, %v1433
    %v1435 = vsel %vm1424, nan, %v1434
    %v1436 = vand.u32 2147483647, %v1278
    %vm1437 = vcmp.le.f32.partialorder %v1436, 0.7853982
    %vm1438 = vcmp.lt.s32.totalorder %v1278, 0
    %v1439 = vand.u32 %v1278, 2139095040
    %v1440 = vshrl.u32 %v1439, 23
    %v1441 = vsub.s32 %v1440, 127
    %v1442 = vand.u32 2147483647, %v1278
    %v1443 = vand.u32 %v1442, 8388607
    %v1444 = vor.u32 %v1443, 8388608
    %v1445 = vsub.s32 0, %v1444
    %v1446 = vadd.s32 %v1441, 1
    %vm1447 = vcmp.gt.s32.totalorder %v1446, 0
    %v1448 = vsel %vm1447, %v1446, 0
    %v1449 = vshrl.u32 %v1448, 5
    %v1450 = vand.u32 %v1448, 31
    %v1451 = vsub.s32 32, %v1450
    %v1452 = vshrl.u32 683565275, %v1451
    %v1453 = vshll.u32 683565275, %v1450
    %v1454 = vshrl.u32 2475754826, %v1451
    %v1455 = vor.u32 %v1453, %v1454
    %v1456 = vshll.u32 2475754826, %v1450
    %v1457 = vshrl.u32 2131351028, %v1451
    %v1458 = vor.u32 %v1456, %v1457
    %v1459 = vshll.u32 2131351028, %v1450
    %v1460 = vshrl.u32 2102212464, %v1451
    %v1461 = vor.u32 %v1459, %v1460
    %v1462 = vshll.u32 2102212464, %v1450
    %v1463 = vshrl.u32 920167782, %v1451
    %v1464 = vor.u32 %v1462, %v1463
    %v1465 = vshll.u32 920167782, %v1450
    %v1466 = vshrl.u32 1326507024, %v1451
    %v1467 = vor.u32 %v1465, %v1466
    %vm1468 = vcmp.lt.s32.totalorder %v1449, 1
    %vm1469 = vcmp.lt.s32.totalorder %v1449, 2
    %vm1470 = vcmp.lt.s32.totalorder %v1449, 3
    %vm1471 = vcmp.lt.s32.totalorder %v1449, 4
    %v1472 = vsel %vm1468, %v1452, %v1455
    %v1473 = vsel %vm1471, %v1461, 2102212464
    %v1474 = vsel %vm1470, %v1458, %v1473
    %v1475 = vsel %vm1469, %v1472, %v1474
    %v1476 = vsel %vm1468, %v1455, %v1458
    %v1477 = vsel %vm1471, %v1464, 920167782
    %v1478 = vsel %vm1470, %v1461, %v1477
    %v1479 = vsel %vm1469, %v1476, %v1478
    %v1480 = vsel %vm1468, %v1458, %v1461
    %v1481 = vsel %vm1471, %v1467, 1326507024
    %v1482 = vsel %vm1470, %v1464, %v1481
    %v1483 = vsel %vm1469, %v1480, %v1482
    %v1484 = vshll.u32 %v1444, 8
    %v1485 = vand.u32 %v1484, 65535
    %v1486 = vshrl.u32 %v1484, 16
    %v1487 = vand.u32 %v1483, 65535
    %v1488 = vshrl.u32 %v1483, 16
    %v1489 = vmul.u32 %v1485, %v1487
    %v1490 = vmul.u32 %v1485, %v1488
    %v1491 = vmul.u32 %v1486, %v1487
    %v1492 = vmul.u32 %v1486, %v1488
    %v1493 = vshll.u32 %v1490, 16
    %v1494 = vshrl.u32 %v1490, 16
    %v1495 = vshll.u32 %v1491, 16
    %v1496 = vshrl.u32 %v1491, 16
    %vm1497 = vc.u32 %v1489, %v1493
    %v1498 = vsel %vm1497, 1, 0
    %v1499 = vadd.s32 %v1489, %v1493
    %v1500 = vadd.s32 %v1492, %v1498
    %vm1501 = vc.u32 %v1499, %v1495
    %v1502 = vsel %vm1501, 1, 0
    %v1503 = vadd.s32 %v1499, %v1495
    %v1504 = vadd.s32 %v1500, %v1502
    %v1505 = vadd.s32 %v1504, %v1494
    %v1506 = vadd.s32 %v1505, %v1496
    %v1507 = vand.u32 %v1484, 65535
    %v1508 = vshrl.u32 %v1484, 16
    %v1509 = vand.u32 %v1479, 65535
    %v1510 = vshrl.u32 %v1479, 16
    %v1511 = vmul.u32 %v1507, %v1509
    %v1512 = vmul.u32 %v1507, %v1510
    %v1513 = vmul.u32 %v1508, %v1509
    %v1514 = vmul.u32 %v1508, %v1510
    %v1515 = vshll.u32 %v1512, 16
    %v1516 = vshrl.u32 %v1512, 16
    %v1517 = vshll.u32 %v1513, 16
    %v1518 = vshrl.u32 %v1513, 16
    %vm1519 = vc.u32 %v1511, %v1515
    %v1520 = vsel %vm1519, 1, 0
    %v1521 = vadd.s32 %v1511, %v1515
    %v1522 = vadd.s32 %v1514, %v1520
    %vm1523 = vc.u32 %v1521, %v1517
    %v1524 = vsel %vm1523, 1, 0
    %v1525 = vadd.s32 %v1521, %v1517
    %v1526 = vadd.s32 %v1522, %v1524
    %v1527 = vadd.s32 %v1526, %v1516
    %v1528 = vadd.s32 %v1527, %v1518
    %v1529 = vmul.u32 %v1484, %v1475
    %v1530 = vadd.s32 %v1506, %v1525
    %vm1531 = vc.u32 %v1506, %v1525
    %v1532 = vadd.s32 %v1528, 1
    %v1533 = vsel %vm1531, %v1532, %v1528
    %v1534 = vadd.s32 %v1529, %v1533
    %v1535 = vadd.s32 %v1534, 536870912
    %v1536 = vshrl.u32 %v1535, 30
    %v1537 = vshll.u32 %v1536, 30
    %v1538 = vsub.s32 %v1534, %v1537
    %vm1539 = vcmp.lt.s32.totalorder %v1538, 0
    %v1540 = vsub.s32 0, %v1538
    %v1541 = vsel %vm1539, %v1540, %v1538
    %v1542 = vclz %v1541
    %v1543 = vsub.s32 %v1542, 2
    %vm1544 = vcmp.gt.s32.totalorder 0, %v1543
    %v1545 = vsel %vm1544, 0, %v1543
    %v1546 = vsub.s32 32, %v1545
    %v1547 = vshll.u32 %v1538, %v1545
    %v1548 = vshrl.u32 %v1530, %v1546
    %v1549 = vor.u32 %v1547, %v1548
    %v1550 = vsub.s32 4294967266, %v1545
    %v1551 = vadd.s32 %v1550, 127
    %v1552 = vshll.u32 %v1551, 23
    %v1553 = vor.u32 4788187, %v1552
    %v1554 = vand.u32 2147483647, %v1553
    %v1556 = vcvt.s32.f32 %v1549
    %v1557 = vmul.f32 %v1556, %v1554
    %v1558 = vxor.u32 %v1557, 2147483648
    %v1559 = vsel %vm1438, %v1558, %v1557
    %v1560 = vsub.s32 4, %v1536
    %v1561 = vsel %vm1438, %v1560, %v1536
    %v1562 = vsel %vm1437, %v1278, %v1559
    %v1563 = vsel %vm1437, 0, %v1561
    %v1564 = vmul.f32 %v1562, %v1562
    %v1565 = vmul.f32 %v1564, -0.001358992
    %v1566 = vadd.f32 %v1565, 0.041655596
    %v1567 = vmul.f32 %v1564, %v1566
    %v1568 = vadd.f32 %v1567, -0.4999988
    %v1569 = vmul.f32 %v1564, %v1568
    %v1570 = vadd.f32 1.0, %v1569
    %v1571 = vmul.f32 %v1562, %v1562
    %v1572 = vmul.f32 %v1571, -0.00019511016
    %v1573 = vadd.f32 %v1572, 0.008332121
    %v1574 = vmul.f32 %v1571, %v1573
    %v1575 = vadd.f32 %v1574, -0.16666654
    %v1576 = vmul.f32 %v1571, %v1575
    %v1577 = vadd.f32 %v1576, 1.0
    %v1578 = vmul.f32 %v1577, %v1562
    %vm1579 = vweird.f32 %v1278
    %v1580 = vadd.s32 %v1563, 3
    %v1581 = vand.u32 %v1580, 3
    %vm1582 = vcmp.lt.s32.totalorder %v1581, 2
    %vm1583 = vcmp.eq.s32.totalorder %v1581, 0
    %v1584 = vxor.u32 %v1578, 2147483648
    %v1585 = vsel %vm1583, %v1570, %v1584
    %vm1586 = vcmp.eq.s32.totalorder %v1581, 2
    %v1587 = vxor.u32 %v1570, 2147483648
    %v1588 = vsel %vm1586, %v1587, %v1578
    %v1589 = vsel %vm1582, %v1585, %v1588
    %v1590 = vsel %vm1579, nan, %v1589
    %v1591 = vand.u32 2147483647, %v1279
    %vm1592 = vcmp.le.f32.partialorder %v1591, 0.7853982
    %vm1593 = vcmp.lt.s32.totalorder %v1279, 0
    %v1594 = vand.u32 %v1279, 2139095040
    %v1595 = vshrl.u32 %v1594, 23
    %v1596 = vsub.s32 %v1595, 127
    %v1597 = vand.u32 2147483647, %v1279
    %v1598 = vand.u32 %v1597, 8388607
    %v1599 = vor.u32 %v1598, 8388608
    %v1600 = vsub.s32 0, %v1599
    %v1601 = vadd.s32 %v1596, 1
    %vm1602 = vcmp.gt.s32.totalorder %v1601, 0
    %v1603 = vsel %vm1602, %v1601, 0
    %v1604 = vshrl.u32 %v1603, 5
    %v1605 = vand.u32 %v1603, 31
    %v1606 = vsub.s32 32, %v1605
    %v1607 = vshrl.u32 683565275, %v1606
    %v1608 = vshll.u32 683565275, %v1605
    %v1609 = vshrl.u32 2475754826, %v1606
    %v1610 = vor.u32 %v1608, %v1609
    %v1611 = vshll.u32 2475754826, %v1605
    %v1612 = vshrl.u32 2131351028, %v1606
    %v1613 = vor.u32 %v1611, %v1612
    %v1614 = vshll.u32 2131351028, %v1605
    %v1615 = vshrl.u32 2102212464, %v1606
    %v1616 = vor.u32 %v1614, %v1615
    %v1617 = vshll.u32 2102212464, %v1605
    %v1618 = vshrl.u32 920167782, %v1606
    %v1619 = vor.u32 %v1617, %v1618
    %v1620 = vshll.u32 920167782, %v1605
    %v1621 = vshrl.u32 1326507024, %v1606
    %v1622 = vor.u32 %v1620, %v1621
    %vm1623 = vcmp.lt.s32.totalorder %v1604, 1
    %vm1624 = vcmp.lt.s32.totalorder %v1604, 2
    %vm1625 = vcmp.lt.s32.totalorder %v1604, 3
    %vm1626 = vcmp.lt.s32.totalorder %v1604, 4
    %v1627 = vsel %vm1623, %v1607, %v1610
    %v1628 = vsel %vm1626, %v1616, 2102212464
    %v1629 = vsel %vm1625, %v1613, %v1628
    %v1630 = vsel %vm1624, %v1627, %v1629
    %v1631 = vsel %vm1623, %v1610, %v1613
    %v1632 = vsel %vm1626, %v1619, 920167782
    %v1633 = vsel %vm1625, %v1616, %v1632
    %v1634 = vsel %vm1624, %v1631, %v1633
    %v1635 = vsel %vm1623, %v1613, %v1616
    %v1636 = vsel %vm1626, %v1622, 1326507024
    %v1637 = vsel %vm1625, %v1619, %v1636
    %v1638 = vsel %vm1624, %v1635, %v1637
    %v1639 = vshll.u32 %v1599, 8
    %v1640 = vand.u32 %v1639, 65535
    %v1641 = vshrl.u32 %v1639, 16
    %v1642 = vand.u32 %v1638, 65535
    %v1643 = vshrl.u32 %v1638, 16
    %v1644 = vmul.u32 %v1640, %v1642
    %v1645 = vmul.u32 %v1640, %v1643
    %v1646 = vmul.u32 %v1641, %v1642
    %v1647 = vmul.u32 %v1641, %v1643
    %v1648 = vshll.u32 %v1645, 16
    %v1649 = vshrl.u32 %v1645, 16
    %v1650 = vshll.u32 %v1646, 16
    %v1651 = vshrl.u32 %v1646, 16
    %vm1652 = vc.u32 %v1644, %v1648
    %v1653 = vsel %vm1652, 1, 0
    %v1654 = vadd.s32 %v1644, %v1648
    %v1655 = vadd.s32 %v1647, %v1653
    %vm1656 = vc.u32 %v1654, %v1650
    %v1657 = vsel %vm1656, 1, 0
    %v1658 = vadd.s32 %v1654, %v1650
    %v1659 = vadd.s32 %v1655, %v1657
    %v1660 = vadd.s32 %v1659, %v1649
    %v1661 = vadd.s32 %v1660, %v1651
    %v1662 = vand.u32 %v1639, 65535
    %v1663 = vshrl.u32 %v1639, 16
    %v1664 = vand.u32 %v1634, 65535
    %v1665 = vshrl.u32 %v1634, 16
    %v1666 = vmul.u32 %v1662, %v1664
    %v1667 = vmul.u32 %v1662, %v1665
    %v1668 = vmul.u32 %v1663, %v1664
    %v1669 = vmul.u32 %v1663, %v1665
    %v1670 = vshll.u32 %v1667, 16
    %v1671 = vshrl.u32 %v1667, 16
    %v1672 = vshll.u32 %v1668, 16
    %v1673 = vshrl.u32 %v1668, 16
    %vm1674 = vc.u32 %v1666, %v1670
    %v1675 = vsel %vm1674, 1, 0
    %v1676 = vadd.s32 %v1666, %v1670
    %v1677 = vadd.s32 %v1669, %v1675
    %vm1678 = vc.u32 %v1676, %v1672
    %v1679 = vsel %vm1678, 1, 0
    %v1680 = vadd.s32 %v1676, %v1672
    %v1681 = vadd.s32 %v1677, %v1679
    %v1682 = vadd.s32 %v1681, %v1671
    %v1683 = vadd.s32 %v1682, %v1673
    %v1684 = vmul.u32 %v1639, %v1630
    %v1685 = vadd.s32 %v1661, %v1680
    %vm1686 = vc.u32 %v1661, %v1680
    %v1687 = vadd.s32 %v1683, 1
    %v1688 = vsel %vm1686, %v1687, %v1683
    %v1689 = vadd.s32 %v1684, %v1688
    %v1690 = vadd.s32 %v1689, 536870912
    %v1691 = vshrl.u32 %v1690, 30
    %v1692 = vshll.u32 %v1691, 30
    %v1693 = vsub.s32 %v1689, %v1692
    %vm1694 = vcmp.lt.s32.totalorder %v1693, 0
    %v1695 = vsub.s32 0, %v1693
    %v1696 = vsel %vm1694, %v1695, %v1693
    %v1697 = vclz %v1696
    %v1698 = vsub.s32 %v1697, 2
    %vm1699 = vcmp.gt.s32.totalorder 0, %v1698
    %v1700 = vsel %vm1699, 0, %v1698
    %v1701 = vsub.s32 32, %v1700
    %v1702 = vshll.u32 %v1693, %v1700
    %v1703 = vshrl.u32 %v1685, %v1701
    %v1704 = vor.u32 %v1702, %v1703
    %v1705 = vsub.s32 4294967266, %v1700
    %v1706 = vadd.s32 %v1705, 127
    %v1707 = vshll.u32 %v1706, 23
    %v1708 = vor.u32 4788187, %v1707
    %v1709 = vand.u32 2147483647, %v1708
    %v1711 = vcvt.s32.f32 %v1704
    %v1712 = vmul.f32 %v1711, %v1709
    %v1713 = vxor.u32 %v1712, 2147483648
    %v1714 = vsel %vm1593, %v1713, %v1712
    %v1715 = vsub.s32 4, %v1691
    %v1716 = vsel %vm1593, %v1715, %v1691
    %v1717 = vsel %vm1592, %v1279, %v1714
    %v1718 = vsel %vm1592, 0, %v1716
    %v1719 = vmul.f32 %v1717, %v1717
    %v1720 = vmul.f32 %v1719, -0.001358992
    %v1721 = vadd.f32 %v1720, 0.041655596
    %v1722 = vmul.f32 %v1719, %v1721
    %v1723 = vadd.f32 %v1722, -0.4999988
    %v1724 = vmul.f32 %v1719, %v1723
    %v1725 = vadd.f32 1.0, %v1724
    %v1726 = vmul.f32 %v1717, %v1717
    %v1727 = vmul.f32 %v1726, -0.00019511016
    %v1728 = vadd.f32 %v1727, 0.008332121
    %v1729 = vmul.f32 %v1726, %v1728
    %v1730 = vadd.f32 %v1729, -0.16666654
    %v1731 = vmul.f32 %v1726, %v1730
    %v1732 = vadd.f32 %v1731, 1.0
    %v1733 = vmul.f32 %v1732, %v1717
    %vm1734 = vweird.f32 %v1279
    %v1735 = vadd.s32 %v1718, 3
    %v1736 = vand.u32 %v1735, 3
    %vm1737 = vcmp.lt.s32.totalorder %v1736, 2
    %vm1738 = vcmp.eq.s32.totalorder %v1736, 0
    %v1739 = vxor.u32 %v1733, 2147483648
    %v1740 = vsel %vm1738, %v1725, %v1739
    %vm1741 = vcmp.eq.s32.totalorder %v1736, 2
    %v1742 = vxor.u32 %v1725, 2147483648
    %v1743 = vsel %vm1741, %v1742, %v1733
    %v1744 = vsel %vm1737, %v1740, %v1743
    %v1745 = vsel %vm1734, nan, %v1744
    %v1746 = vand.u32 2147483647, %v1280
    %vm1747 = vcmp.le.f32.partialorder %v1746, 0.7853982
    %vm1748 = vcmp.lt.s32.totalorder %v1280, 0
    %v1749 = vand.u32 %v1280, 2139095040
    %v1750 = vshrl.u32 %v1749, 23
    %v1751 = vsub.s32 %v1750, 127
    %v1752 = vand.u32 2147483647, %v1280
    %v1753 = vand.u32 %v1752, 8388607
    %v1754 = vor.u32 %v1753, 8388608
    %v1755 = vsub.s32 0, %v1754
    %v1756 = vadd.s32 %v1751, 1
    %vm1757 = vcmp.gt.s32.totalorder %v1756, 0
    %v1758 = vsel %vm1757, %v1756, 0
    %v1759 = vshrl.u32 %v1758, 5
    %v1760 = vand.u32 %v1758, 31
    %v1761 = vsub.s32 32, %v1760
    %v1762 = vshrl.u32 683565275, %v1761
    %v1763 = vshll.u32 683565275, %v1760
    %v1764 = vshrl.u32 2475754826, %v1761
    %v1765 = vor.u32 %v1763, %v1764
    %v1766 = vshll.u32 2475754826, %v1760
    %v1767 = vshrl.u32 2131351028, %v1761
    %v1768 = vor.u32 %v1766, %v1767
    %v1769 = vshll.u32 2131351028, %v1760
    %v1770 = vshrl.u32 2102212464, %v1761
    %v1771 = vor.u32 %v1769, %v1770
    %v1772 = vshll.u32 2102212464, %v1760
    %v1773 = vshrl.u32 920167782, %v1761
    %v1774 = vor.u32 %v1772, %v1773
    %v1775 = vshll.u32 920167782, %v1760
    %v1776 = vshrl.u32 1326507024, %v1761
    %v1777 = vor.u32 %v1775, %v1776
    %vm1778 = vcmp.lt.s32.totalorder %v1759, 1
    %vm1779 = vcmp.lt.s32.totalorder %v1759, 2
    %vm1780 = vcmp.lt.s32.totalorder %v1759, 3
    %vm1781 = vcmp.lt.s32.totalorder %v1759, 4
    %v1782 = vsel %vm1778, %v1762, %v1765
    %v1783 = vsel %vm1781, %v1771, 2102212464
    %v1784 = vsel %vm1780, %v1768, %v1783
    %v1785 = vsel %vm1779, %v1782, %v1784
    %v1786 = vsel %vm1778, %v1765, %v1768
    %v1787 = vsel %vm1781, %v1774, 920167782
    %v1788 = vsel %vm1780, %v1771, %v1787
    %v1789 = vsel %vm1779, %v1786, %v1788
    %v1790 = vsel %vm1778, %v1768, %v1771
    %v1791 = vsel %vm1781, %v1777, 1326507024
    %v1792 = vsel %vm1780, %v1774, %v1791
    %v1793 = vsel %vm1779, %v1790, %v1792
    %v1794 = vshll.u32 %v1754, 8
    %v1795 = vand.u32 %v1794, 65535
    %v1796 = vshrl.u32 %v1794, 16
    %v1797 = vand.u32 %v1793, 65535
    %v1798 = vshrl.u32 %v1793, 16
    %v1799 = vmul.u32 %v1795, %v1797
    %v1800 = vmul.u32 %v1795, %v1798
    %v1801 = vmul.u32 %v1796, %v1797
    %v1802 = vmul.u32 %v1796, %v1798
    %v1803 = vshll.u32 %v1800, 16
    %v1804 = vshrl.u32 %v1800, 16
    %v1805 = vshll.u32 %v1801, 16
    %v1806 = vshrl.u32 %v1801, 16
    %vm1807 = vc.u32 %v1799, %v1803
    %v1808 = vsel %vm1807, 1, 0
    %v1809 = vadd.s32 %v1799, %v1803
    %v1810 = vadd.s32 %v1802, %v1808
    %vm1811 = vc.u32 %v1809, %v1805
    %v1812 = vsel %vm1811, 1, 0
    %v1813 = vadd.s32 %v1809, %v1805
    %v1814 = vadd.s32 %v1810, %v1812
    %v1815 = vadd.s32 %v1814, %v1804
    %v1816 = vadd.s32 %v1815, %v1806
    %v1817 = vand.u32 %v1794, 65535
    %v1818 = vshrl.u32 %v1794, 16
    %v1819 = vand.u32 %v1789, 65535
    %v1820 = vshrl.u32 %v1789, 16
    %v1821 = vmul.u32 %v1817, %v1819
    %v1822 = vmul.u32 %v1817, %v1820
    %v1823 = vmul.u32 %v1818, %v1819
    %v1824 = vmul.u32 %v1818, %v1820
    %v1825 = vshll.u32 %v1822, 16
    %v1826 = vshrl.u32 %v1822, 16
    %v1827 = vshll.u32 %v1823, 16
    %v1828 = vshrl.u32 %v1823, 16
    %vm1829 = vc.u32 %v1821, %v1825
    %v1830 = vsel %vm1829, 1, 0
    %v1831 = vadd.s32 %v1821, %v1825
    %v1832 = vadd.s32 %v1824, %v1830
    %vm1833 = vc.u32 %v1831, %v1827
    %v1834 = vsel %vm1833, 1, 0
    %v1835 = vadd.s32 %v1831, %v1827
    %v1836 = vadd.s32 %v1832, %v1834
    %v1837 = vadd.s32 %v1836, %v1826
    %v1838 = vadd.s32 %v1837, %v1828
    %v1839 = vmul.u32 %v1794, %v1785
    %v1840 = vadd.s32 %v1816, %v1835
    %vm1841 = vc.u32 %v1816, %v1835
    %v1842 = vadd.s32 %v1838, 1
    %v1843 = vsel %vm1841, %v1842, %v1838
    %v1844 = vadd.s32 %v1839, %v1843
    %v1845 = vadd.s32 %v1844, 536870912
    %v1846 = vshrl.u32 %v1845, 30
    %v1847 = vshll.u32 %v1846, 30
    %v1848 = vsub.s32 %v1844, %v1847
    %vm1849 = vcmp.lt.s32.totalorder %v1848, 0
    %v1850 = vsub.s32 0, %v1848
    %v1851 = vsel %vm1849, %v1850, %v1848
    %v1852 = vclz %v1851
    %v1853 = vsub.s32 %v1852, 2
    %vm1854 = vcmp.gt.s32.totalorder 0, %v1853
    %v1855 = vsel %vm1854, 0, %v1853
    %v1856 = vsub.s32 32, %v1855
    %v1857 = vshll.u32 %v1848, %v1855
    %v1858 = vshrl.u32 %v1840, %v1856
    %v1859 = vor.u32 %v1857, %v1858
    %v1860 = vsub.s32 4294967266, %v1855
    %v1861 = vadd.s32 %v1860, 127
    %v1862 = vshll.u32 %v1861, 23
    %v1863 = vor.u32 4788187, %v1862
    %v1864 = vand.u32 2147483647, %v1863
    %v1866 = vcvt.s32.f32 %v1859
    %v1867 = vmul.f32 %v1866, %v1864
    %v1868 = vxor.u32 %v1867, 2147483648
    %v1869 = vsel %vm1748, %v1868, %v1867
    %v1870 = vsub.s32 4, %v1846
    %v1871 = vsel %vm1748, %v1870, %v1846
    %v1872 = vsel %vm1747, %v1280, %v1869
    %v1873 = vsel %vm1747, 0, %v1871
    %v1874 = vmul.f32 %v1872, %v1872
    %v1875 = vmul.f32 %v1874, -0.001358992
    %v1876 = vadd.f32 %v1875, 0.041655596
    %v1877 = vmul.f32 %v1874, %v1876
    %v1878 = vadd.f32 %v1877, -0.4999988
    %v1879 = vmul.f32 %v1874, %v1878
    %v1880 = vadd.f32 1.0, %v1879
    %v1881 = vmul.f32 %v1872, %v1872
    %v1882 = vmul.f32 %v1881, -0.00019511016
    %v1883 = vadd.f32 %v1882, 0.008332121
    %v1884 = vmul.f32 %v1881, %v1883
    %v1885 = vadd.f32 %v1884, -0.16666654
    %v1886 = vmul.f32 %v1881, %v1885
    %v1887 = vadd.f32 %v1886, 1.0
    %v1888 = vmul.f32 %v1887, %v1872
    %vm1889 = vweird.f32 %v1280
    %v1890 = vadd.s32 %v1873, 3
    %v1891 = vand.u32 %v1890, 3
    %vm1892 = vcmp.lt.s32.totalorder %v1891, 2
    %vm1893 = vcmp.eq.s32.totalorder %v1891, 0
    %v1894 = vxor.u32 %v1888, 2147483648
    %v1895 = vsel %vm1893, %v1880, %v1894
    %vm1896 = vcmp.eq.s32.totalorder %v1891, 2
    %v1897 = vxor.u32 %v1880, 2147483648
    %v1898 = vsel %vm1896, %v1897, %v1888
    %v1899 = vsel %vm1892, %v1895, %v1898
    %v1900 = vsel %vm1889, nan, %v1899
    %s1901 = scalar_lea.vmem [#allocation5], 96
    %1902 = vst [vmem:[%s1901] sm:$0xff] %v1435
    %1903 = vst [vmem:[%s1901 + $0x8] sm:$0xff] %v1590
    %1904 = vst [vmem:[%s1901 + $0x10] sm:$0xff] %v1745
    %1905 = vst [vmem:[%s1901 + $0x18] sm:$0xff] %v1900
    %v1906 = vand.u32 2147483647, %v1277
    %vm1907 = vcmp.le.f32.partialorder %v1906, 0.7853982
    %vm1908 = vcmp.lt.s32.totalorder %v1277, 0
    %v1909 = vand.u32 %v1277, 2139095040
    %v1910 = vshrl.u32 %v1909, 23
    %v1911 = vsub.s32 %v1910, 127
    %v1912 = vand.u32 2147483647, %v1277
    %v1913 = vand.u32 %v1912, 8388607
    %v1914 = vor.u32 %v1913, 8388608
    %v1915 = vsub.s32 0, %v1914
    %v1916 = vadd.s32 %v1911, 1
    %vm1917 = vcmp.gt.s32.totalorder %v1916, 0
    %v1918 = vsel %vm1917, %v1916, 0
    %v1919 = vshrl.u32 %v1918, 5
    %v1920 = vand.u32 %v1918, 31
    %v1921 = vsub.s32 32, %v1920
    %v1922 = vshrl.u32 683565275, %v1921
    %v1923 = vshll.u32 683565275, %v1920
    %v1924 = vshrl.u32 2475754826, %v1921
    %v1925 = vor.u32 %v1923, %v1924
    %v1926 = vshll.u32 2475754826, %v1920
    %v1927 = vshrl.u32 2131351028, %v1921
    %v1928 = vor.u32 %v1926, %v1927
    %v1929 = vshll.u32 2131351028, %v1920
    %v1930 = vshrl.u32 2102212464, %v1921
    %v1931 = vor.u32 %v1929, %v1930
    %v1932 = vshll.u32 2102212464, %v1920
    %v1933 = vshrl.u32 920167782, %v1921
    %v1934 = vor.u32 %v1932, %v1933
    %v1935 = vshll.u32 920167782, %v1920
    %v1936 = vshrl.u32 1326507024, %v1921
    %v1937 = vor.u32 %v1935, %v1936
    %vm1938 = vcmp.lt.s32.totalorder %v1919, 1
    %vm1939 = vcmp.lt.s32.totalorder %v1919, 2
    %vm1940 = vcmp.lt.s32.totalorder %v1919, 3
    %vm1941 = vcmp.lt.s32.totalorder %v1919, 4
    %v1942 = vsel %vm1938, %v1922, %v1925
    %v1943 = vsel %vm1941, %v1931, 2102212464
    %v1944 = vsel %vm1940, %v1928, %v1943
    %v1945 = vsel %vm1939, %v1942, %v1944
    %v1946 = vsel %vm1938, %v1925, %v1928
    %v1947 = vsel %vm1941, %v1934, 920167782
    %v1948 = vsel %vm1940, %v1931, %v1947
    %v1949 = vsel %vm1939, %v1946, %v1948
    %v1950 = vsel %vm1938, %v1928, %v1931
    %v1951 = vsel %vm1941, %v1937, 1326507024
    %v1952 = vsel %vm1940, %v1934, %v1951
    %v1953 = vsel %vm1939, %v1950, %v1952
    %v1954 = vshll.u32 %v1914, 8
    %v1955 = vand.u32 %v1954, 65535
    %v1956 = vshrl.u32 %v1954, 16
    %v1957 = vand.u32 %v1953, 65535
    %v1958 = vshrl.u32 %v1953, 16
    %v1959 = vmul.u32 %v1955, %v1957
    %v1960 = vmul.u32 %v1955, %v1958
    %v1961 = vmul.u32 %v1956, %v1957
    %v1962 = vmul.u32 %v1956, %v1958
    %v1963 = vshll.u32 %v1960, 16
    %v1964 = vshrl.u32 %v1960, 16
    %v1965 = vshll.u32 %v1961, 16
    %v1966 = vshrl.u32 %v1961, 16
    %vm1967 = vc.u32 %v1959, %v1963
    %v1968 = vsel %vm1967, 1, 0
    %v1969 = vadd.s32 %v1959, %v1963
    %v1970 = vadd.s32 %v1962, %v1968
    %vm1971 = vc.u32 %v1969, %v1965
    %v1972 = vsel %vm1971, 1, 0
    %v1973 = vadd.s32 %v1969, %v1965
    %v1974 = vadd.s32 %v1970, %v1972
    %v1975 = vadd.s32 %v1974, %v1964
    %v1976 = vadd.s32 %v1975, %v1966
    %v1977 = vand.u32 %v1954, 65535
    %v1978 = vshrl.u32 %v1954, 16
    %v1979 = vand.u32 %v1949, 65535
    %v1980 = vshrl.u32 %v1949, 16
    %v1981 = vmul.u32 %v1977, %v1979
    %v1982 = vmul.u32 %v1977, %v1980
    %v1983 = vmul.u32 %v1978, %v1979
    %v1984 = vmul.u32 %v1978, %v1980
    %v1985 = vshll.u32 %v1982, 16
    %v1986 = vshrl.u32 %v1982, 16
    %v1987 = vshll.u32 %v1983, 16
    %v1988 = vshrl.u32 %v1983, 16
    %vm1989 = vc.u32 %v1981, %v1985
    %v1990 = vsel %vm1989, 1, 0
    %v1991 = vadd.s32 %v1981, %v1985
    %v1992 = vadd.s32 %v1984, %v1990
    %vm1993 = vc.u32 %v1991, %v1987
    %v1994 = vsel %vm1993, 1, 0
    %v1995 = vadd.s32 %v1991, %v1987
    %v1996 = vadd.s32 %v1992, %v1994
    %v1997 = vadd.s32 %v1996, %v1986
    %v1998 = vadd.s32 %v1997, %v1988
    %v1999 = vmul.u32 %v1954, %v1945
    %v2000 = vadd.s32 %v1976, %v1995
    %vm2001 = vc.u32 %v1976, %v1995
    %v2002 = vadd.s32 %v1998, 1
    %v2003 = vsel %vm2001, %v2002, %v1998
    %v2004 = vadd.s32 %v1999, %v2003
    %v2005 = vadd.s32 %v2004, 536870912
    %v2006 = vshrl.u32 %v2005, 30
    %v2007 = vshll.u32 %v2006, 30
    %v2008 = vsub.s32 %v2004, %v2007
    %vm2009 = vcmp.lt.s32.totalorder %v2008, 0
    %v2010 = vsub.s32 0, %v2008
    %v2011 = vsel %vm2009, %v2010, %v2008
    %v2012 = vclz %v2011
    %v2013 = vsub.s32 %v2012, 2
    %vm2014 = vcmp.gt.s32.totalorder 0, %v2013
    %v2015 = vsel %vm2014, 0, %v2013
    %v2016 = vsub.s32 32, %v2015
    %v2017 = vshll.u32 %v2008, %v2015
    %v2018 = vshrl.u32 %v2000, %v2016
    %v2019 = vor.u32 %v2017, %v2018
    %v2020 = vsub.s32 4294967266, %v2015
    %v2021 = vadd.s32 %v2020, 127
    %v2022 = vshll.u32 %v2021, 23
    %v2023 = vor.u32 4788187, %v2022
    %v2024 = vand.u32 2147483647, %v2023
    %v2026 = vcvt.s32.f32 %v2019
    %v2027 = vmul.f32 %v2026, %v2024
    %v2028 = vxor.u32 %v2027, 2147483648
    %v2029 = vsel %vm1908, %v2028, %v2027
    %v2030 = vsub.s32 4, %v2006
    %v2031 = vsel %vm1908, %v2030, %v2006
    %v2032 = vsel %vm1907, %v1277, %v2029
    %v2033 = vsel %vm1907, 0, %v2031
    %v2034 = vmul.f32 %v2032, %v2032
    %v2035 = vmul.f32 %v2034, -0.001358992
    %v2036 = vadd.f32 %v2035, 0.041655596
    %v2037 = vmul.f32 %v2034, %v2036
    %v2038 = vadd.f32 %v2037, -0.4999988
    %v2039 = vmul.f32 %v2034, %v2038
    %v2040 = vadd.f32 1.0, %v2039
    %v2041 = vmul.f32 %v2032, %v2032
    %v2042 = vmul.f32 %v2041, -0.00019511016
    %v2043 = vadd.f32 %v2042, 0.008332121
    %v2044 = vmul.f32 %v2041, %v2043
    %v2045 = vadd.f32 %v2044, -0.16666654
    %v2046 = vmul.f32 %v2041, %v2045
    %v2047 = vadd.f32 %v2046, 1.0
    %v2048 = vmul.f32 %v2047, %v2032
    %vm2049 = vweird.f32 %v1277
    %v2050 = vand.u32 %v2033, 3
    %vm2051 = vcmp.lt.s32.totalorder %v2050, 2
    %vm2052 = vcmp.eq.s32.totalorder %v2050, 0
    %v2053 = vxor.u32 %v2048, 2147483648
    %v2054 = vsel %vm2052, %v2040, %v2053
    %vm2055 = vcmp.eq.s32.totalorder %v2050, 2
    %v2056 = vxor.u32 %v2040, 2147483648
    %v2057 = vsel %vm2055, %v2056, %v2048
    %v2058 = vsel %vm2051, %v2054, %v2057
    %v2059 = vsel %vm2049, nan, %v2058
    %v2060 = vand.u32 2147483647, %v1278
    %vm2061 = vcmp.le.f32.partialorder %v2060, 0.7853982
    %vm2062 = vcmp.lt.s32.totalorder %v1278, 0
    %v2063 = vand.u32 %v1278, 2139095040
    %v2064 = vshrl.u32 %v2063, 23
    %v2065 = vsub.s32 %v2064, 127
    %v2066 = vand.u32 2147483647, %v1278
    %v2067 = vand.u32 %v2066, 8388607
    %v2068 = vor.u32 %v2067, 8388608
    %v2069 = vsub.s32 0, %v2068
    %v2070 = vadd.s32 %v2065, 1
    %vm2071 = vcmp.gt.s32.totalorder %v2070, 0
    %v2072 = vsel %vm2071, %v2070, 0
    %v2073 = vshrl.u32 %v2072, 5
    %v2074 = vand.u32 %v2072, 31
    %v2075 = vsub.s32 32, %v2074
    %v2076 = vshrl.u32 683565275, %v2075
    %v2077 = vshll.u32 683565275, %v2074
    %v2078 = vshrl.u32 2475754826, %v2075
    %v2079 = vor.u32 %v2077, %v2078
    %v2080 = vshll.u32 2475754826, %v2074
    %v2081 = vshrl.u32 2131351028, %v2075
    %v2082 = vor.u32 %v2080, %v2081
    %v2083 = vshll.u32 2131351028, %v2074
    %v2084 = vshrl.u32 2102212464, %v2075
    %v2085 = vor.u32 %v2083, %v2084
    %v2086 = vshll.u32 2102212464, %v2074
    %v2087 = vshrl.u32 920167782, %v2075
    %v2088 = vor.u32 %v2086, %v2087
    %v2089 = vshll.u32 920167782, %v2074
    %v2090 = vshrl.u32 1326507024, %v2075
    %v2091 = vor.u32 %v2089, %v2090
    %vm2092 = vcmp.lt.s32.totalorder %v2073, 1
    %vm2093 = vcmp.lt.s32.totalorder %v2073, 2
    %vm2094 = vcmp.lt.s32.totalorder %v2073, 3
    %vm2095 = vcmp.lt.s32.totalorder %v2073, 4
    %v2096 = vsel %vm2092, %v2076, %v2079
    %v2097 = vsel %vm2095, %v2085, 2102212464
    %v2098 = vsel %vm2094, %v2082, %v2097
    %v2099 = vsel %vm2093, %v2096, %v2098
    %v2100 = vsel %vm2092, %v2079, %v2082
    %v2101 = vsel %vm2095, %v2088, 920167782
    %v2102 = vsel %vm2094, %v2085, %v2101
    %v2103 = vsel %vm2093, %v2100, %v2102
    %v2104 = vsel %vm2092, %v2082, %v2085
    %v2105 = vsel %vm2095, %v2091, 1326507024
    %v2106 = vsel %vm2094, %v2088, %v2105
    %v2107 = vsel %vm2093, %v2104, %v2106
    %v2108 = vshll.u32 %v2068, 8
    %v2109 = vand.u32 %v2108, 65535
    %v2110 = vshrl.u32 %v2108, 16
    %v2111 = vand.u32 %v2107, 65535
    %v2112 = vshrl.u32 %v2107, 16
    %v2113 = vmul.u32 %v2109, %v2111
    %v2114 = vmul.u32 %v2109, %v2112
    %v2115 = vmul.u32 %v2110, %v2111
    %v2116 = vmul.u32 %v2110, %v2112
    %v2117 = vshll.u32 %v2114, 16
    %v2118 = vshrl.u32 %v2114, 16
    %v2119 = vshll.u32 %v2115, 16
    %v2120 = vshrl.u32 %v2115, 16
    %vm2121 = vc.u32 %v2113, %v2117
    %v2122 = vsel %vm2121, 1, 0
    %v2123 = vadd.s32 %v2113, %v2117
    %v2124 = vadd.s32 %v2116, %v2122
    %vm2125 = vc.u32 %v2123, %v2119
    %v2126 = vsel %vm2125, 1, 0
    %v2127 = vadd.s32 %v2123, %v2119
    %v2128 = vadd.s32 %v2124, %v2126
    %v2129 = vadd.s32 %v2128, %v2118
    %v2130 = vadd.s32 %v2129, %v2120
    %v2131 = vand.u32 %v2108, 65535
    %v2132 = vshrl.u32 %v2108, 16
    %v2133 = vand.u32 %v2103, 65535
    %v2134 = vshrl.u32 %v2103, 16
    %v2135 = vmul.u32 %v2131, %v2133
    %v2136 = vmul.u32 %v2131, %v2134
    %v2137 = vmul.u32 %v2132, %v2133
    %v2138 = vmul.u32 %v2132, %v2134
    %v2139 = vshll.u32 %v2136, 16
    %v2140 = vshrl.u32 %v2136, 16
    %v2141 = vshll.u32 %v2137, 16
    %v2142 = vshrl.u32 %v2137, 16
    %vm2143 = vc.u32 %v2135, %v2139
    %v2144 = vsel %vm2143, 1, 0
    %v2145 = vadd.s32 %v2135, %v2139
    %v2146 = vadd.s32 %v2138, %v2144
    %vm2147 = vc.u32 %v2145, %v2141
    %v2148 = vsel %vm2147, 1, 0
    %v2149 = vadd.s32 %v2145, %v2141
    %v2150 = vadd.s32 %v2146, %v2148
    %v2151 = vadd.s32 %v2150, %v2140
    %v2152 = vadd.s32 %v2151, %v2142
    %v2153 = vmul.u32 %v2108, %v2099
    %v2154 = vadd.s32 %v2130, %v2149
    %vm2155 = vc.u32 %v2130, %v2149
    %v2156 = vadd.s32 %v2152, 1
    %v2157 = vsel %vm2155, %v2156, %v2152
    %v2158 = vadd.s32 %v2153, %v2157
    %v2159 = vadd.s32 %v2158, 536870912
    %v2160 = vshrl.u32 %v2159, 30
    %v2161 = vshll.u32 %v2160, 30
    %v2162 = vsub.s32 %v2158, %v2161
    %vm2163 = vcmp.lt.s32.totalorder %v2162, 0
    %v2164 = vsub.s32 0, %v2162
    %v2165 = vsel %vm2163, %v2164, %v2162
    %v2166 = vclz %v2165
    %v2167 = vsub.s32 %v2166, 2
    %vm2168 = vcmp.gt.s32.totalorder 0, %v2167
    %v2169 = vsel %vm2168, 0, %v2167
    %v2170 = vsub.s32 32, %v2169
    %v2171 = vshll.u32 %v2162, %v2169
    %v2172 = vshrl.u32 %v2154, %v2170
    %v2173 = vor.u32 %v2171, %v2172
    %v2174 = vsub.s32 4294967266, %v2169
    %v2175 = vadd.s32 %v2174, 127
    %v2176 = vshll.u32 %v2175, 23
    %v2177 = vor.u32 4788187, %v2176
    %v2178 = vand.u32 2147483647, %v2177
    %v2180 = vcvt.s32.f32 %v2173
    %v2181 = vmul.f32 %v2180, %v2178
    %v2182 = vxor.u32 %v2181, 2147483648
    %v2183 = vsel %vm2062, %v2182, %v2181
    %v2184 = vsub.s32 4, %v2160
    %v2185 = vsel %vm2062, %v2184, %v2160
    %v2186 = vsel %vm2061, %v1278, %v2183
    %v2187 = vsel %vm2061, 0, %v2185
    %v2188 = vmul.f32 %v2186, %v2186
    %v2189 = vmul.f32 %v2188, -0.001358992
    %v2190 = vadd.f32 %v2189, 0.041655596
    %v2191 = vmul.f32 %v2188, %v2190
    %v2192 = vadd.f32 %v2191, -0.4999988
    %v2193 = vmul.f32 %v2188, %v2192
    %v2194 = vadd.f32 1.0, %v2193
    %v2195 = vmul.f32 %v2186, %v2186
    %v2196 = vmul.f32 %v2195, -0.00019511016
    %v2197 = vadd.f32 %v2196, 0.008332121
    %v2198 = vmul.f32 %v2195, %v2197
    %v2199 = vadd.f32 %v2198, -0.16666654
    %v2200 = vmul.f32 %v2195, %v2199
    %v2201 = vadd.f32 %v2200, 1.0
    %v2202 = vmul.f32 %v2201, %v2186
    %vm2203 = vweird.f32 %v1278
    %v2204 = vand.u32 %v2187, 3
    %vm2205 = vcmp.lt.s32.totalorder %v2204, 2
    %vm2206 = vcmp.eq.s32.totalorder %v2204, 0
    %v2207 = vxor.u32 %v2202, 2147483648
    %v2208 = vsel %vm2206, %v2194, %v2207
    %vm2209 = vcmp.eq.s32.totalorder %v2204, 2
    %v2210 = vxor.u32 %v2194, 2147483648
    %v2211 = vsel %vm2209, %v2210, %v2202
    %v2212 = vsel %vm2205, %v2208, %v2211
    %v2213 = vsel %vm2203, nan, %v2212
    %v2214 = vand.u32 2147483647, %v1279
    %vm2215 = vcmp.le.f32.partialorder %v2214, 0.7853982
    %vm2216 = vcmp.lt.s32.totalorder %v1279, 0
    %v2217 = vand.u32 %v1279, 2139095040
    %v2218 = vshrl.u32 %v2217, 23
    %v2219 = vsub.s32 %v2218, 127
    %v2220 = vand.u32 2147483647, %v1279
    %v2221 = vand.u32 %v2220, 8388607
    %v2222 = vor.u32 %v2221, 8388608
    %v2223 = vsub.s32 0, %v2222
    %v2224 = vadd.s32 %v2219, 1
    %vm2225 = vcmp.gt.s32.totalorder %v2224, 0
    %v2226 = vsel %vm2225, %v2224, 0
    %v2227 = vshrl.u32 %v2226, 5
    %v2228 = vand.u32 %v2226, 31
    %v2229 = vsub.s32 32, %v2228
    %v2230 = vshrl.u32 683565275, %v2229
    %v2231 = vshll.u32 683565275, %v2228
    %v2232 = vshrl.u32 2475754826, %v2229
    %v2233 = vor.u32 %v2231, %v2232
    %v2234 = vshll.u32 2475754826, %v2228
    %v2235 = vshrl.u32 2131351028, %v2229
    %v2236 = vor.u32 %v2234, %v2235
    %v2237 = vshll.u32 2131351028, %v2228
    %v2238 = vshrl.u32 2102212464, %v2229
    %v2239 = vor.u32 %v2237, %v2238
    %v2240 = vshll.u32 2102212464, %v2228
    %v2241 = vshrl.u32 920167782, %v2229
    %v2242 = vor.u32 %v2240, %v2241
    %v2243 = vshll.u32 920167782, %v2228
    %v2244 = vshrl.u32 1326507024, %v2229
    %v2245 = vor.u32 %v2243, %v2244
    %vm2246 = vcmp.lt.s32.totalorder %v2227, 1
    %vm2247 = vcmp.lt.s32.totalorder %v2227, 2
    %vm2248 = vcmp.lt.s32.totalorder %v2227, 3
    %vm2249 = vcmp.lt.s32.totalorder %v2227, 4
    %v2250 = vsel %vm2246, %v2230, %v2233
    %v2251 = vsel %vm2249, %v2239, 2102212464
    %v2252 = vsel %vm2248, %v2236, %v2251
    %v2253 = vsel %vm2247, %v2250, %v2252
    %v2254 = vsel %vm2246, %v2233, %v2236
    %v2255 = vsel %vm2249, %v2242, 920167782
    %v2256 = vsel %vm2248, %v2239, %v2255
    %v2257 = vsel %vm2247, %v2254, %v2256
    %v2258 = vsel %vm2246, %v2236, %v2239
    %v2259 = vsel %vm2249, %v2245, 1326507024
    %v2260 = vsel %vm2248, %v2242, %v2259
    %v2261 = vsel %vm2247, %v2258, %v2260
    %v2262 = vshll.u32 %v2222, 8
    %v2263 = vand.u32 %v2262, 65535
    %v2264 = vshrl.u32 %v2262, 16
    %v2265 = vand.u32 %v2261, 65535
    %v2266 = vshrl.u32 %v2261, 16
    %v2267 = vmul.u32 %v2263, %v2265
    %v2268 = vmul.u32 %v2263, %v2266
    %v2269 = vmul.u32 %v2264, %v2265
    %v2270 = vmul.u32 %v2264, %v2266
    %v2271 = vshll.u32 %v2268, 16
    %v2272 = vshrl.u32 %v2268, 16
    %v2273 = vshll.u32 %v2269, 16
    %v2274 = vshrl.u32 %v2269, 16
    %vm2275 = vc.u32 %v2267, %v2271
    %v2276 = vsel %vm2275, 1, 0
    %v2277 = vadd.s32 %v2267, %v2271
    %v2278 = vadd.s32 %v2270, %v2276
    %vm2279 = vc.u32 %v2277, %v2273
    %v2280 = vsel %vm2279, 1, 0
    %v2281 = vadd.s32 %v2277, %v2273
    %v2282 = vadd.s32 %v2278, %v2280
    %v2283 = vadd.s32 %v2282, %v2272
    %v2284 = vadd.s32 %v2283, %v2274
    %v2285 = vand.u32 %v2262, 65535
    %v2286 = vshrl.u32 %v2262, 16
    %v2287 = vand.u32 %v2257, 65535
    %v2288 = vshrl.u32 %v2257, 16
    %v2289 = vmul.u32 %v2285, %v2287
    %v2290 = vmul.u32 %v2285, %v2288
    %v2291 = vmul.u32 %v2286, %v2287
    %v2292 = vmul.u32 %v2286, %v2288
    %v2293 = vshll.u32 %v2290, 16
    %v2294 = vshrl.u32 %v2290, 16
    %v2295 = vshll.u32 %v2291, 16
    %v2296 = vshrl.u32 %v2291, 16
    %vm2297 = vc.u32 %v2289, %v2293
    %v2298 = vsel %vm2297, 1, 0
    %v2299 = vadd.s32 %v2289, %v2293
    %v2300 = vadd.s32 %v2292, %v2298
    %vm2301 = vc.u32 %v2299, %v2295
    %v2302 = vsel %vm2301, 1, 0
    %v2303 = vadd.s32 %v2299, %v2295
    %v2304 = vadd.s32 %v2300, %v2302
    %v2305 = vadd.s32 %v2304, %v2294
    %v2306 = vadd.s32 %v2305, %v2296
    %v2307 = vmul.u32 %v2262, %v2253
    %v2308 = vadd.s32 %v2284, %v2303
    %vm2309 = vc.u32 %v2284, %v2303
    %v2310 = vadd.s32 %v2306, 1
    %v2311 = vsel %vm2309, %v2310, %v2306
    %v2312 = vadd.s32 %v2307, %v2311
    %v2313 = vadd.s32 %v2312, 536870912
    %v2314 = vshrl.u32 %v2313, 30
    %v2315 = vshll.u32 %v2314, 30
    %v2316 = vsub.s32 %v2312, %v2315
    %vm2317 = vcmp.lt.s32.totalorder %v2316, 0
    %v2318 = vsub.s32 0, %v2316
    %v2319 = vsel %vm2317, %v2318, %v2316
    %v2320 = vclz %v2319
    %v2321 = vsub.s32 %v2320, 2
    %vm2322 = vcmp.gt.s32.totalorder 0, %v2321
    %v2323 = vsel %vm2322, 0, %v2321
    %v2324 = vsub.s32 32, %v2323
    %v2325 = vshll.u32 %v2316, %v2323
    %v2326 = vshrl.u32 %v2308, %v2324
    %v2327 = vor.u32 %v2325, %v2326
    %v2328 = vsub.s32 4294967266, %v2323
    %v2329 = vadd.s32 %v2328, 127
    %v2330 = vshll.u32 %v2329, 23
    %v2331 = vor.u32 4788187, %v2330
    %v2332 = vand.u32 2147483647, %v2331
    %v2334 = vcvt.s32.f32 %v2327
    %v2335 = vmul.f32 %v2334, %v2332
    %v2336 = vxor.u32 %v2335, 2147483648
    %v2337 = vsel %vm2216, %v2336, %v2335
    %v2338 = vsub.s32 4, %v2314
    %v2339 = vsel %vm2216, %v2338, %v2314
    %v2340 = vsel %vm2215, %v1279, %v2337
    %v2341 = vsel %vm2215, 0, %v2339
    %v2342 = vmul.f32 %v2340, %v2340
    %v2343 = vmul.f32 %v2342, -0.001358992
    %v2344 = vadd.f32 %v2343, 0.041655596
    %v2345 = vmul.f32 %v2342, %v2344
    %v2346 = vadd.f32 %v2345, -0.4999988
    %v2347 = vmul.f32 %v2342, %v2346
    %v2348 = vadd.f32 1.0, %v2347
    %v2349 = vmul.f32 %v2340, %v2340
    %v2350 = vmul.f32 %v2349, -0.00019511016
    %v2351 = vadd.f32 %v2350, 0.008332121
    %v2352 = vmul.f32 %v2349, %v2351
    %v2353 = vadd.f32 %v2352, -0.16666654
    %v2354 = vmul.f32 %v2349, %v2353
    %v2355 = vadd.f32 %v2354, 1.0
    %v2356 = vmul.f32 %v2355, %v2340
    %vm2357 = vweird.f32 %v1279
    %v2358 = vand.u32 %v2341, 3
    %vm2359 = vcmp.lt.s32.totalorder %v2358, 2
    %vm2360 = vcmp.eq.s32.totalorder %v2358, 0
    %v2361 = vxor.u32 %v2356, 2147483648
    %v2362 = vsel %vm2360, %v2348, %v2361
    %vm2363 = vcmp.eq.s32.totalorder %v2358, 2
    %v2364 = vxor.u32 %v2348, 2147483648
    %v2365 = vsel %vm2363, %v2364, %v2356
    %v2366 = vsel %vm2359, %v2362, %v2365
    %v2367 = vsel %vm2357, nan, %v2366
    %v2368 = vand.u32 2147483647, %v1280
    %vm2369 = vcmp.le.f32.partialorder %v2368, 0.7853982
    %vm2370 = vcmp.lt.s32.totalorder %v1280, 0
    %v2371 = vand.u32 %v1280, 2139095040
    %v2372 = vshrl.u32 %v2371, 23
    %v2373 = vsub.s32 %v2372, 127
    %v2374 = vand.u32 2147483647, %v1280
    %v2375 = vand.u32 %v2374, 8388607
    %v2376 = vor.u32 %v2375, 8388608
    %v2377 = vsub.s32 0, %v2376
    %v2378 = vadd.s32 %v2373, 1
    %vm2379 = vcmp.gt.s32.totalorder %v2378, 0
    %v2380 = vsel %vm2379, %v2378, 0
    %v2381 = vshrl.u32 %v2380, 5
    %v2382 = vand.u32 %v2380, 31
    %v2383 = vsub.s32 32, %v2382
    %v2384 = vshrl.u32 683565275, %v2383
    %v2385 = vshll.u32 683565275, %v2382
    %v2386 = vshrl.u32 2475754826, %v2383
    %v2387 = vor.u32 %v2385, %v2386
    %v2388 = vshll.u32 2475754826, %v2382
    %v2389 = vshrl.u32 2131351028, %v2383
    %v2390 = vor.u32 %v2388, %v2389
    %v2391 = vshll.u32 2131351028, %v2382
    %v2392 = vshrl.u32 2102212464, %v2383
    %v2393 = vor.u32 %v2391, %v2392
    %v2394 = vshll.u32 2102212464, %v2382
    %v2395 = vshrl.u32 920167782, %v2383
    %v2396 = vor.u32 %v2394, %v2395
    %v2397 = vshll.u32 920167782, %v2382
    %v2398 = vshrl.u32 1326507024, %v2383
    %v2399 = vor.u32 %v2397, %v2398
    %vm2400 = vcmp.lt.s32.totalorder %v2381, 1
    %vm2401 = vcmp.lt.s32.totalorder %v2381, 2
    %vm2402 = vcmp.lt.s32.totalorder %v2381, 3
    %vm2403 = vcmp.lt.s32.totalorder %v2381, 4
    %v2404 = vsel %vm2400, %v2384, %v2387
    %v2405 = vsel %vm2403, %v2393, 2102212464
    %v2406 = vsel %vm2402, %v2390, %v2405
    %v2407 = vsel %vm2401, %v2404, %v2406
    %v2408 = vsel %vm2400, %v2387, %v2390
    %v2409 = vsel %vm2403, %v2396, 920167782
    %v2410 = vsel %vm2402, %v2393, %v2409
    %v2411 = vsel %vm2401, %v2408, %v2410
    %v2412 = vsel %vm2400, %v2390, %v2393
    %v2413 = vsel %vm2403, %v2399, 1326507024
    %v2414 = vsel %vm2402, %v2396, %v2413
    %v2415 = vsel %vm2401, %v2412, %v2414
    %v2416 = vshll.u32 %v2376, 8
    %v2417 = vand.u32 %v2416, 65535
    %v2418 = vshrl.u32 %v2416, 16
    %v2419 = vand.u32 %v2415, 65535
    %v2420 = vshrl.u32 %v2415, 16
    %v2421 = vmul.u32 %v2417, %v2419
    %v2422 = vmul.u32 %v2417, %v2420
    %v2423 = vmul.u32 %v2418, %v2419
    %v2424 = vmul.u32 %v2418, %v2420
    %v2425 = vshll.u32 %v2422, 16
    %v2426 = vshrl.u32 %v2422, 16
    %v2427 = vshll.u32 %v2423, 16
    %v2428 = vshrl.u32 %v2423, 16
    %vm2429 = vc.u32 %v2421, %v2425
    %v2430 = vsel %vm2429, 1, 0
    %v2431 = vadd.s32 %v2421, %v2425
    %v2432 = vadd.s32 %v2424, %v2430
    %vm2433 = vc.u32 %v2431, %v2427
    %v2434 = vsel %vm2433, 1, 0
    %v2435 = vadd.s32 %v2431, %v2427
    %v2436 = vadd.s32 %v2432, %v2434
    %v2437 = vadd.s32 %v2436, %v2426
    %v2438 = vadd.s32 %v2437, %v2428
    %v2439 = vand.u32 %v2416, 65535
    %v2440 = vshrl.u32 %v2416, 16
    %v2441 = vand.u32 %v2411, 65535
    %v2442 = vshrl.u32 %v2411, 16
    %v2443 = vmul.u32 %v2439, %v2441
    %v2444 = vmul.u32 %v2439, %v2442
    %v2445 = vmul.u32 %v2440, %v2441
    %v2446 = vmul.u32 %v2440, %v2442
    %v2447 = vshll.u32 %v2444, 16
    %v2448 = vshrl.u32 %v2444, 16
    %v2449 = vshll.u32 %v2445, 16
    %v2450 = vshrl.u32 %v2445, 16
    %vm2451 = vc.u32 %v2443, %v2447
    %v2452 = vsel %vm2451, 1, 0
    %v2453 = vadd.s32 %v2443, %v2447
    %v2454 = vadd.s32 %v2446, %v2452
    %vm2455 = vc.u32 %v2453, %v2449
    %v2456 = vsel %vm2455, 1, 0
    %v2457 = vadd.s32 %v2453, %v2449
    %v2458 = vadd.s32 %v2454, %v2456
    %v2459 = vadd.s32 %v2458, %v2448
    %v2460 = vadd.s32 %v2459, %v2450
    %v2461 = vmul.u32 %v2416, %v2407
    %v2462 = vadd.s32 %v2438, %v2457
    %vm2463 = vc.u32 %v2438, %v2457
    %v2464 = vadd.s32 %v2460, 1
    %v2465 = vsel %vm2463, %v2464, %v2460
    %v2466 = vadd.s32 %v2461, %v2465
    %v2467 = vadd.s32 %v2466, 536870912
    %v2468 = vshrl.u32 %v2467, 30
    %v2469 = vshll.u32 %v2468, 30
    %v2470 = vsub.s32 %v2466, %v2469
    %vm2471 = vcmp.lt.s32.totalorder %v2470, 0
    %v2472 = vsub.s32 0, %v2470
    %v2473 = vsel %vm2471, %v2472, %v2470
    %v2474 = vclz %v2473
    %v2475 = vsub.s32 %v2474, 2
    %vm2476 = vcmp.gt.s32.totalorder 0, %v2475
    %v2477 = vsel %vm2476, 0, %v2475
    %v2478 = vsub.s32 32, %v2477
    %v2479 = vshll.u32 %v2470, %v2477
    %v2480 = vshrl.u32 %v2462, %v2478
    %v2481 = vor.u32 %v2479, %v2480
    %v2482 = vsub.s32 4294967266, %v2477
    %v2483 = vadd.s32 %v2482, 127
    %v2484 = vshll.u32 %v2483, 23
    %v2485 = vor.u32 4788187, %v2484
    %v2486 = vand.u32 2147483647, %v2485
    %v2488 = vcvt.s32.f32 %v2481
    %v2489 = vmul.f32 %v2488, %v2486
    %v2490 = vxor.u32 %v2489, 2147483648
    %v2491 = vsel %vm2370, %v2490, %v2489
    %v2492 = vsub.s32 4, %v2468
    %v2493 = vsel %vm2370, %v2492, %v2468
    %v2494 = vsel %vm2369, %v1280, %v2491
    %v2495 = vsel %vm2369, 0, %v2493
    %v2496 = vmul.f32 %v2494, %v2494
    %v2497 = vmul.f32 %v2496, -0.001358992
    %v2498 = vadd.f32 %v2497, 0.041655596
    %v2499 = vmul.f32 %v2496, %v2498
    %v2500 = vadd.f32 %v2499, -0.4999988
    %v2501 = vmul.f32 %v2496, %v2500
    %v2502 = vadd.f32 1.0, %v2501
    %v2503 = vmul.f32 %v2494, %v2494
    %v2504 = vmul.f32 %v2503, -0.00019511016
    %v2505 = vadd.f32 %v2504, 0.008332121
    %v2506 = vmul.f32 %v2503, %v2505
    %v2507 = vadd.f32 %v2506, -0.16666654
    %v2508 = vmul.f32 %v2503, %v2507
    %v2509 = vadd.f32 %v2508, 1.0
    %v2510 = vmul.f32 %v2509, %v2494
    %vm2511 = vweird.f32 %v1280
    %v2512 = vand.u32 %v2495, 3
    %vm2513 = vcmp.lt.s32.totalorder %v2512, 2
    %vm2514 = vcmp.eq.s32.totalorder %v2512, 0
    %v2515 = vxor.u32 %v2510, 2147483648
    %v2516 = vsel %vm2514, %v2502, %v2515
    %vm2517 = vcmp.eq.s32.totalorder %v2512, 2
    %v2518 = vxor.u32 %v2502, 2147483648
    %v2519 = vsel %vm2517, %v2518, %v2510
    %v2520 = vsel %vm2513, %v2516, %v2519
    %v2521 = vsel %vm2511, nan, %v2520
    %s2522 = scalar_lea.vmem [#allocation5], 128
    %2523 = vst [vmem:[%s2522] sm:$0xff] %v2059
    %2524 = vst [vmem:[%s2522 + $0x8] sm:$0xff] %v2213
    %2525 = vst [vmem:[%s2522 + $0x10] sm:$0xff] %v2367
    %2526 = vst [vmem:[%s2522 + $0x18] sm:$0xff] %v2521
    %v2527 = vmul.f32 %v23, 64.0
    %v2528 = vmul.f32 %v24, 64.0
    %v2529 = vmul.f32 %v25, 64.0
    %v2530 = vmul.f32 %v26, 64.0
    %v2531 = vand.u32 2147483647, %v2527
    %vm2532 = vcmp.le.f32.partialorder %v2531, 0.7853982
    %vm2533 = vcmp.lt.s32.totalorder %v2527, 0
    %v2534 = vand.u32 %v2527, 2139095040
    %v2535 = vshrl.u32 %v2534, 23
    %v2536 = vsub.s32 %v2535, 127
    %v2537 = vand.u32 2147483647, %v2527
    %v2538 = vand.u32 %v2537, 8388607
    %v2539 = vor.u32 %v2538, 8388608
    %v2540 = vsub.s32 0, %v2539
    %v2541 = vadd.s32 %v2536, 1
    %vm2542 = vcmp.gt.s32.totalorder %v2541, 0
    %v2543 = vsel %vm2542, %v2541, 0
    %v2544 = vshrl.u32 %v2543, 5
    %v2545 = vand.u32 %v2543, 31
    %v2546 = vsub.s32 32, %v2545
    %v2547 = vshrl.u32 683565275, %v2546
    %v2548 = vshll.u32 683565275, %v2545
    %v2549 = vshrl.u32 2475754826, %v2546
    %v2550 = vor.u32 %v2548, %v2549
    %v2551 = vshll.u32 2475754826, %v2545
    %v2552 = vshrl.u32 2131351028, %v2546
    %v2553 = vor.u32 %v2551, %v2552
    %v2554 = vshll.u32 2131351028, %v2545
    %v2555 = vshrl.u32 2102212464, %v2546
    %v2556 = vor.u32 %v2554, %v2555
    %v2557 = vshll.u32 2102212464, %v2545
    %v2558 = vshrl.u32 920167782, %v2546
    %v2559 = vor.u32 %v2557, %v2558
    %v2560 = vshll.u32 920167782, %v2545
    %v2561 = vshrl.u32 1326507024, %v2546
    %v2562 = vor.u32 %v2560, %v2561
    %vm2563 = vcmp.lt.s32.totalorder %v2544, 1
    %vm2564 = vcmp.lt.s32.totalorder %v2544, 2
    %vm2565 = vcmp.lt.s32.totalorder %v2544, 3
    %vm2566 = vcmp.lt.s32.totalorder %v2544, 4
    %v2567 = vsel %vm2563, %v2547, %v2550
    %v2568 = vsel %vm2566, %v2556, 2102212464
    %v2569 = vsel %vm2565, %v2553, %v2568
    %v2570 = vsel %vm2564, %v2567, %v2569
    %v2571 = vsel %vm2563, %v2550, %v2553
    %v2572 = vsel %vm2566, %v2559, 920167782
    %v2573 = vsel %vm2565, %v2556, %v2572
    %v2574 = vsel %vm2564, %v2571, %v2573
    %v2575 = vsel %vm2563, %v2553, %v2556
    %v2576 = vsel %vm2566, %v2562, 1326507024
    %v2577 = vsel %vm2565, %v2559, %v2576
    %v2578 = vsel %vm2564, %v2575, %v2577
    %v2579 = vshll.u32 %v2539, 8
    %v2580 = vand.u32 %v2579, 65535
    %v2581 = vshrl.u32 %v2579, 16
    %v2582 = vand.u32 %v2578, 65535
    %v2583 = vshrl.u32 %v2578, 16
    %v2584 = vmul.u32 %v2580, %v2582
    %v2585 = vmul.u32 %v2580, %v2583
    %v2586 = vmul.u32 %v2581, %v2582
    %v2587 = vmul.u32 %v2581, %v2583
    %v2588 = vshll.u32 %v2585, 16
    %v2589 = vshrl.u32 %v2585, 16
    %v2590 = vshll.u32 %v2586, 16
    %v2591 = vshrl.u32 %v2586, 16
    %vm2592 = vc.u32 %v2584, %v2588
    %v2593 = vsel %vm2592, 1, 0
    %v2594 = vadd.s32 %v2584, %v2588
    %v2595 = vadd.s32 %v2587, %v2593
    %vm2596 = vc.u32 %v2594, %v2590
    %v2597 = vsel %vm2596, 1, 0
    %v2598 = vadd.s32 %v2594, %v2590
    %v2599 = vadd.s32 %v2595, %v2597
    %v2600 = vadd.s32 %v2599, %v2589
    %v2601 = vadd.s32 %v2600, %v2591
    %v2602 = vand.u32 %v2579, 65535
    %v2603 = vshrl.u32 %v2579, 16
    %v2604 = vand.u32 %v2574, 65535
    %v2605 = vshrl.u32 %v2574, 16
    %v2606 = vmul.u32 %v2602, %v2604
    %v2607 = vmul.u32 %v2602, %v2605
    %v2608 = vmul.u32 %v2603, %v2604
    %v2609 = vmul.u32 %v2603, %v2605
    %v2610 = vshll.u32 %v2607, 16
    %v2611 = vshrl.u32 %v2607, 16
    %v2612 = vshll.u32 %v2608, 16
    %v2613 = vshrl.u32 %v2608, 16
    %vm2614 = vc.u32 %v2606, %v2610
    %v2615 = vsel %vm2614, 1, 0
    %v2616 = vadd.s32 %v2606, %v2610
    %v2617 = vadd.s32 %v2609, %v2615
    %vm2618 = vc.u32 %v2616, %v2612
    %v2619 = vsel %vm2618, 1, 0
    %v2620 = vadd.s32 %v2616, %v2612
    %v2621 = vadd.s32 %v2617, %v2619
    %v2622 = vadd.s32 %v2621, %v2611
    %v2623 = vadd.s32 %v2622, %v2613
    %v2624 = vmul.u32 %v2579, %v2570
    %v2625 = vadd.s32 %v2601, %v2620
    %vm2626 = vc.u32 %v2601, %v2620
    %v2627 = vadd.s32 %v2623, 1
    %v2628 = vsel %vm2626, %v2627, %v2623
    %v2629 = vadd.s32 %v2624, %v2628
    %v2630 = vadd.s32 %v2629, 536870912
    %v2631 = vshrl.u32 %v2630, 30
    %v2632 = vshll.u32 %v2631, 30
    %v2633 = vsub.s32 %v2629, %v2632
    %vm2634 = vcmp.lt.s32.totalorder %v2633, 0
    %v2635 = vsub.s32 0, %v2633
    %v2636 = vsel %vm2634, %v2635, %v2633
    %v2637 = vclz %v2636
    %v2638 = vsub.s32 %v2637, 2
    %vm2639 = vcmp.gt.s32.totalorder 0, %v2638
    %v2640 = vsel %vm2639, 0, %v2638
    %v2641 = vsub.s32 32, %v2640
    %v2642 = vshll.u32 %v2633, %v2640
    %v2643 = vshrl.u32 %v2625, %v2641
    %v2644 = vor.u32 %v2642, %v2643
    %v2645 = vsub.s32 4294967266, %v2640
    %v2646 = vadd.s32 %v2645, 127
    %v2647 = vshll.u32 %v2646, 23
    %v2648 = vor.u32 4788187, %v2647
    %v2649 = vand.u32 2147483647, %v2648
    %v2651 = vcvt.s32.f32 %v2644
    %v2652 = vmul.f32 %v2651, %v2649
    %v2653 = vxor.u32 %v2652, 2147483648
    %v2654 = vsel %vm2533, %v2653, %v2652
    %v2655 = vsub.s32 4, %v2631
    %v2656 = vsel %vm2533, %v2655, %v2631
    %v2657 = vsel %vm2532, %v2527, %v2654
    %v2658 = vsel %vm2532, 0, %v2656
    %v2659 = vmul.f32 %v2657, %v2657
    %v2660 = vmul.f32 %v2659, -0.001358992
    %v2661 = vadd.f32 %v2660, 0.041655596
    %v2662 = vmul.f32 %v2659, %v2661
    %v2663 = vadd.f32 %v2662, -0.4999988
    %v2664 = vmul.f32 %v2659, %v2663
    %v2665 = vadd.f32 1.0, %v2664
    %v2666 = vmul.f32 %v2657, %v2657
    %v2667 = vmul.f32 %v2666, -0.00019511016
    %v2668 = vadd.f32 %v2667, 0.008332121
    %v2669 = vmul.f32 %v2666, %v2668
    %v2670 = vadd.f32 %v2669, -0.16666654
    %v2671 = vmul.f32 %v2666, %v2670
    %v2672 = vadd.f32 %v2671, 1.0
    %v2673 = vmul.f32 %v2672, %v2657
    %vm2674 = vweird.f32 %v2527
    %v2675 = vadd.s32 %v2658, 3
    %v2676 = vand.u32 %v2675, 3
    %vm2677 = vcmp.lt.s32.totalorder %v2676, 2
    %vm2678 = vcmp.eq.s32.totalorder %v2676, 0
    %v2679 = vxor.u32 %v2673, 2147483648
    %v2680 = vsel %vm2678, %v2665, %v2679
    %vm2681 = vcmp.eq.s32.totalorder %v2676, 2
    %v2682 = vxor.u32 %v2665, 2147483648
    %v2683 = vsel %vm2681, %v2682, %v2673
    %v2684 = vsel %vm2677, %v2680, %v2683
    %v2685 = vsel %vm2674, nan, %v2684
    %v2686 = vand.u32 2147483647, %v2528
    %vm2687 = vcmp.le.f32.partialorder %v2686, 0.7853982
    %vm2688 = vcmp.lt.s32.totalorder %v2528, 0
    %v2689 = vand.u32 %v2528, 2139095040
    %v2690 = vshrl.u32 %v2689, 23
    %v2691 = vsub.s32 %v2690, 127
    %v2692 = vand.u32 2147483647, %v2528
    %v2693 = vand.u32 %v2692, 8388607
    %v2694 = vor.u32 %v2693, 8388608
    %v2695 = vsub.s32 0, %v2694
    %v2696 = vadd.s32 %v2691, 1
    %vm2697 = vcmp.gt.s32.totalorder %v2696, 0
    %v2698 = vsel %vm2697, %v2696, 0
    %v2699 = vshrl.u32 %v2698, 5
    %v2700 = vand.u32 %v2698, 31
    %v2701 = vsub.s32 32, %v2700
    %v2702 = vshrl.u32 683565275, %v2701
    %v2703 = vshll.u32 683565275, %v2700
    %v2704 = vshrl.u32 2475754826, %v2701
    %v2705 = vor.u32 %v2703, %v2704
    %v2706 = vshll.u32 2475754826, %v2700
    %v2707 = vshrl.u32 2131351028, %v2701
    %v2708 = vor.u32 %v2706, %v2707
    %v2709 = vshll.u32 2131351028, %v2700
    %v2710 = vshrl.u32 2102212464, %v2701
    %v2711 = vor.u32 %v2709, %v2710
    %v2712 = vshll.u32 2102212464, %v2700
    %v2713 = vshrl.u32 920167782, %v2701
    %v2714 = vor.u32 %v2712, %v2713
    %v2715 = vshll.u32 920167782, %v2700
    %v2716 = vshrl.u32 1326507024, %v2701
    %v2717 = vor.u32 %v2715, %v2716
    %vm2718 = vcmp.lt.s32.totalorder %v2699, 1
    %vm2719 = vcmp.lt.s32.totalorder %v2699, 2
    %vm2720 = vcmp.lt.s32.totalorder %v2699, 3
    %vm2721 = vcmp.lt.s32.totalorder %v2699, 4
    %v2722 = vsel %vm2718, %v2702, %v2705
    %v2723 = vsel %vm2721, %v2711, 2102212464
    %v2724 = vsel %vm2720, %v2708, %v2723
    %v2725 = vsel %vm2719, %v2722, %v2724
    %v2726 = vsel %vm2718, %v2705, %v2708
    %v2727 = vsel %vm2721, %v2714, 920167782
    %v2728 = vsel %vm2720, %v2711, %v2727
    %v2729 = vsel %vm2719, %v2726, %v2728
    %v2730 = vsel %vm2718, %v2708, %v2711
    %v2731 = vsel %vm2721, %v2717, 1326507024
    %v2732 = vsel %vm2720, %v2714, %v2731
    %v2733 = vsel %vm2719, %v2730, %v2732
    %v2734 = vshll.u32 %v2694, 8
    %v2735 = vand.u32 %v2734, 65535
    %v2736 = vshrl.u32 %v2734, 16
    %v2737 = vand.u32 %v2733, 65535
    %v2738 = vshrl.u32 %v2733, 16
    %v2739 = vmul.u32 %v2735, %v2737
    %v2740 = vmul.u32 %v2735, %v2738
    %v2741 = vmul.u32 %v2736, %v2737
    %v2742 = vmul.u32 %v2736, %v2738
    %v2743 = vshll.u32 %v2740, 16
    %v2744 = vshrl.u32 %v2740, 16
    %v2745 = vshll.u32 %v2741, 16
    %v2746 = vshrl.u32 %v2741, 16
    %vm2747 = vc.u32 %v2739, %v2743
    %v2748 = vsel %vm2747, 1, 0
    %v2749 = vadd.s32 %v2739, %v2743
    %v2750 = vadd.s32 %v2742, %v2748
    %vm2751 = vc.u32 %v2749, %v2745
    %v2752 = vsel %vm2751, 1, 0
    %v2753 = vadd.s32 %v2749, %v2745
    %v2754 = vadd.s32 %v2750, %v2752
    %v2755 = vadd.s32 %v2754, %v2744
    %v2756 = vadd.s32 %v2755, %v2746
    %v2757 = vand.u32 %v2734, 65535
    %v2758 = vshrl.u32 %v2734, 16
    %v2759 = vand.u32 %v2729, 65535
    %v2760 = vshrl.u32 %v2729, 16
    %v2761 = vmul.u32 %v2757, %v2759
    %v2762 = vmul.u32 %v2757, %v2760
    %v2763 = vmul.u32 %v2758, %v2759
    %v2764 = vmul.u32 %v2758, %v2760
    %v2765 = vshll.u32 %v2762, 16
    %v2766 = vshrl.u32 %v2762, 16
    %v2767 = vshll.u32 %v2763, 16
    %v2768 = vshrl.u32 %v2763, 16
    %vm2769 = vc.u32 %v2761, %v2765
    %v2770 = vsel %vm2769, 1, 0
    %v2771 = vadd.s32 %v2761, %v2765
    %v2772 = vadd.s32 %v2764, %v2770
    %vm2773 = vc.u32 %v2771, %v2767
    %v2774 = vsel %vm2773, 1, 0
    %v2775 = vadd.s32 %v2771, %v2767
    %v2776 = vadd.s32 %v2772, %v2774
    %v2777 = vadd.s32 %v2776, %v2766
    %v2778 = vadd.s32 %v2777, %v2768
    %v2779 = vmul.u32 %v2734, %v2725
    %v2780 = vadd.s32 %v2756, %v2775
    %vm2781 = vc.u32 %v2756, %v2775
    %v2782 = vadd.s32 %v2778, 1
    %v2783 = vsel %vm2781, %v2782, %v2778
    %v2784 = vadd.s32 %v2779, %v2783
    %v2785 = vadd.s32 %v2784, 536870912
    %v2786 = vshrl.u32 %v2785, 30
    %v2787 = vshll.u32 %v2786, 30
    %v2788 = vsub.s32 %v2784, %v2787
    %vm2789 = vcmp.lt.s32.totalorder %v2788, 0
    %v2790 = vsub.s32 0, %v2788
    %v2791 = vsel %vm2789, %v2790, %v2788
    %v2792 = vclz %v2791
    %v2793 = vsub.s32 %v2792, 2
    %vm2794 = vcmp.gt.s32.totalorder 0, %v2793
    %v2795 = vsel %vm2794, 0, %v2793
    %v2796 = vsub.s32 32, %v2795
    %v2797 = vshll.u32 %v2788, %v2795
    %v2798 = vshrl.u32 %v2780, %v2796
    %v2799 = vor.u32 %v2797, %v2798
    %v2800 = vsub.s32 4294967266, %v2795
    %v2801 = vadd.s32 %v2800, 127
    %v2802 = vshll.u32 %v2801, 23
    %v2803 = vor.u32 4788187, %v2802
    %v2804 = vand.u32 2147483647, %v2803
    %v2806 = vcvt.s32.f32 %v2799
    %v2807 = vmul.f32 %v2806, %v2804
    %v2808 = vxor.u32 %v2807, 2147483648
    %v2809 = vsel %vm2688, %v2808, %v2807
    %v2810 = vsub.s32 4, %v2786
    %v2811 = vsel %vm2688, %v2810, %v2786
    %v2812 = vsel %vm2687, %v2528, %v2809
    %v2813 = vsel %vm2687, 0, %v2811
    %v2814 = vmul.f32 %v2812, %v2812
    %v2815 = vmul.f32 %v2814, -0.001358992
    %v2816 = vadd.f32 %v2815, 0.041655596
    %v2817 = vmul.f32 %v2814, %v2816
    %v2818 = vadd.f32 %v2817, -0.4999988
    %v2819 = vmul.f32 %v2814, %v2818
    %v2820 = vadd.f32 1.0, %v2819
    %v2821 = vmul.f32 %v2812, %v2812
    %v2822 = vmul.f32 %v2821, -0.00019511016
    %v2823 = vadd.f32 %v2822, 0.008332121
    %v2824 = vmul.f32 %v2821, %v2823
    %v2825 = vadd.f32 %v2824, -0.16666654
    %v2826 = vmul.f32 %v2821, %v2825
    %v2827 = vadd.f32 %v2826, 1.0
    %v2828 = vmul.f32 %v2827, %v2812
    %vm2829 = vweird.f32 %v2528
    %v2830 = vadd.s32 %v2813, 3
    %v2831 = vand.u32 %v2830, 3
    %vm2832 = vcmp.lt.s32.totalorder %v2831, 2
    %vm2833 = vcmp.eq.s32.totalorder %v2831, 0
    %v2834 = vxor.u32 %v2828, 2147483648
    %v2835 = vsel %vm2833, %v2820, %v2834
    %vm2836 = vcmp.eq.s32.totalorder %v2831, 2
    %v2837 = vxor.u32 %v2820, 2147483648
    %v2838 = vsel %vm2836, %v2837, %v2828
    %v2839 = vsel %vm2832, %v2835, %v2838
    %v2840 = vsel %vm2829, nan, %v2839
    %v2841 = vand.u32 2147483647, %v2529
    %vm2842 = vcmp.le.f32.partialorder %v2841, 0.7853982
    %vm2843 = vcmp.lt.s32.totalorder %v2529, 0
    %v2844 = vand.u32 %v2529, 2139095040
    %v2845 = vshrl.u32 %v2844, 23
    %v2846 = vsub.s32 %v2845, 127
    %v2847 = vand.u32 2147483647, %v2529
    %v2848 = vand.u32 %v2847, 8388607
    %v2849 = vor.u32 %v2848, 8388608
    %v2850 = vsub.s32 0, %v2849
    %v2851 = vadd.s32 %v2846, 1
    %vm2852 = vcmp.gt.s32.totalorder %v2851, 0
    %v2853 = vsel %vm2852, %v2851, 0
    %v2854 = vshrl.u32 %v2853, 5
    %v2855 = vand.u32 %v2853, 31
    %v2856 = vsub.s32 32, %v2855
    %v2857 = vshrl.u32 683565275, %v2856
    %v2858 = vshll.u32 683565275, %v2855
    %v2859 = vshrl.u32 2475754826, %v2856
    %v2860 = vor.u32 %v2858, %v2859
    %v2861 = vshll.u32 2475754826, %v2855
    %v2862 = vshrl.u32 2131351028, %v2856
    %v2863 = vor.u32 %v2861, %v2862
    %v2864 = vshll.u32 2131351028, %v2855
    %v2865 = vshrl.u32 2102212464, %v2856
    %v2866 = vor.u32 %v2864, %v2865
    %v2867 = vshll.u32 2102212464, %v2855
    %v2868 = vshrl.u32 920167782, %v2856
    %v2869 = vor.u32 %v2867, %v2868
    %v2870 = vshll.u32 920167782, %v2855
    %v2871 = vshrl.u32 1326507024, %v2856
    %v2872 = vor.u32 %v2870, %v2871
    %vm2873 = vcmp.lt.s32.totalorder %v2854, 1
    %vm2874 = vcmp.lt.s32.totalorder %v2854, 2
    %vm2875 = vcmp.lt.s32.totalorder %v2854, 3
    %vm2876 = vcmp.lt.s32.totalorder %v2854, 4
    %v2877 = vsel %vm2873, %v2857, %v2860
    %v2878 = vsel %vm2876, %v2866, 2102212464
    %v2879 = vsel %vm2875, %v2863, %v2878
    %v2880 = vsel %vm2874, %v2877, %v2879
    %v2881 = vsel %vm2873, %v2860, %v2863
    %v2882 = vsel %vm2876, %v2869, 920167782
    %v2883 = vsel %vm2875, %v2866, %v2882
    %v2884 = vsel %vm2874, %v2881, %v2883
    %v2885 = vsel %vm2873, %v2863, %v2866
    %v2886 = vsel %vm2876, %v2872, 1326507024
    %v2887 = vsel %vm2875, %v2869, %v2886
    %v2888 = vsel %vm2874, %v2885, %v2887
    %v2889 = vshll.u32 %v2849, 8
    %v2890 = vand.u32 %v2889, 65535
    %v2891 = vshrl.u32 %v2889, 16
    %v2892 = vand.u32 %v2888, 65535
    %v2893 = vshrl.u32 %v2888, 16
    %v2894 = vmul.u32 %v2890, %v2892
    %v2895 = vmul.u32 %v2890, %v2893
    %v2896 = vmul.u32 %v2891, %v2892
    %v2897 = vmul.u32 %v2891, %v2893
    %v2898 = vshll.u32 %v2895, 16
    %v2899 = vshrl.u32 %v2895, 16
    %v2900 = vshll.u32 %v2896, 16
    %v2901 = vshrl.u32 %v2896, 16
    %vm2902 = vc.u32 %v2894, %v2898
    %v2903 = vsel %vm2902, 1, 0
    %v2904 = vadd.s32 %v2894, %v2898
    %v2905 = vadd.s32 %v2897, %v2903
    %vm2906 = vc.u32 %v2904, %v2900
    %v2907 = vsel %vm2906, 1, 0
    %v2908 = vadd.s32 %v2904, %v2900
    %v2909 = vadd.s32 %v2905, %v2907
    %v2910 = vadd.s32 %v2909, %v2899
    %v2911 = vadd.s32 %v2910, %v2901
    %v2912 = vand.u32 %v2889, 65535
    %v2913 = vshrl.u32 %v2889, 16
    %v2914 = vand.u32 %v2884, 65535
    %v2915 = vshrl.u32 %v2884, 16
    %v2916 = vmul.u32 %v2912, %v2914
    %v2917 = vmul.u32 %v2912, %v2915
    %v2918 = vmul.u32 %v2913, %v2914
    %v2919 = vmul.u32 %v2913, %v2915
    %v2920 = vshll.u32 %v2917, 16
    %v2921 = vshrl.u32 %v2917, 16
    %v2922 = vshll.u32 %v2918, 16
    %v2923 = vshrl.u32 %v2918, 16
    %vm2924 = vc.u32 %v2916, %v2920
    %v2925 = vsel %vm2924, 1, 0
    %v2926 = vadd.s32 %v2916, %v2920
    %v2927 = vadd.s32 %v2919, %v2925
    %vm2928 = vc.u32 %v2926, %v2922
    %v2929 = vsel %vm2928, 1, 0
    %v2930 = vadd.s32 %v2926, %v2922
    %v2931 = vadd.s32 %v2927, %v2929
    %v2932 = vadd.s32 %v2931, %v2921
    %v2933 = vadd.s32 %v2932, %v2923
    %v2934 = vmul.u32 %v2889, %v2880
    %v2935 = vadd.s32 %v2911, %v2930
    %vm2936 = vc.u32 %v2911, %v2930
    %v2937 = vadd.s32 %v2933, 1
    %v2938 = vsel %vm2936, %v2937, %v2933
    %v2939 = vadd.s32 %v2934, %v2938
    %v2940 = vadd.s32 %v2939, 536870912
    %v2941 = vshrl.u32 %v2940, 30
    %v2942 = vshll.u32 %v2941, 30
    %v2943 = vsub.s32 %v2939, %v2942
    %vm2944 = vcmp.lt.s32.totalorder %v2943, 0
    %v2945 = vsub.s32 0, %v2943
    %v2946 = vsel %vm2944, %v2945, %v2943
    %v2947 = vclz %v2946
    %v2948 = vsub.s32 %v2947, 2
    %vm2949 = vcmp.gt.s32.totalorder 0, %v2948
    %v2950 = vsel %vm2949, 0, %v2948
    %v2951 = vsub.s32 32, %v2950
    %v2952 = vshll.u32 %v2943, %v2950
    %v2953 = vshrl.u32 %v2935, %v2951
    %v2954 = vor.u32 %v2952, %v2953
    %v2955 = vsub.s32 4294967266, %v2950
    %v2956 = vadd.s32 %v2955, 127
    %v2957 = vshll.u32 %v2956, 23
    %v2958 = vor.u32 4788187, %v2957
    %v2959 = vand.u32 2147483647, %v2958
    %v2961 = vcvt.s32.f32 %v2954
    %v2962 = vmul.f32 %v2961, %v2959
    %v2963 = vxor.u32 %v2962, 2147483648
    %v2964 = vsel %vm2843, %v2963, %v2962
    %v2965 = vsub.s32 4, %v2941
    %v2966 = vsel %vm2843, %v2965, %v2941
    %v2967 = vsel %vm2842, %v2529, %v2964
    %v2968 = vsel %vm2842, 0, %v2966
    %v2969 = vmul.f32 %v2967, %v2967
    %v2970 = vmul.f32 %v2969, -0.001358992
    %v2971 = vadd.f32 %v2970, 0.041655596
    %v2972 = vmul.f32 %v2969, %v2971
    %v2973 = vadd.f32 %v2972, -0.4999988
    %v2974 = vmul.f32 %v2969, %v2973
    %v2975 = vadd.f32 1.0, %v2974
    %v2976 = vmul.f32 %v2967, %v2967
    %v2977 = vmul.f32 %v2976, -0.00019511016
    %v2978 = vadd.f32 %v2977, 0.008332121
    %v2979 = vmul.f32 %v2976, %v2978
    %v2980 = vadd.f32 %v2979, -0.16666654
    %v2981 = vmul.f32 %v2976, %v2980
    %v2982 = vadd.f32 %v2981, 1.0
    %v2983 = vmul.f32 %v2982, %v2967
    %vm2984 = vweird.f32 %v2529
    %v2985 = vadd.s32 %v2968, 3
    %v2986 = vand.u32 %v2985, 3
    %vm2987 = vcmp.lt.s32.totalorder %v2986, 2
    %vm2988 = vcmp.eq.s32.totalorder %v2986, 0
    %v2989 = vxor.u32 %v2983, 2147483648
    %v2990 = vsel %vm2988, %v2975, %v2989
    %vm2991 = vcmp.eq.s32.totalorder %v2986, 2
    %v2992 = vxor.u32 %v2975, 2147483648
    %v2993 = vsel %vm2991, %v2992, %v2983
    %v2994 = vsel %vm2987, %v2990, %v2993
    %v2995 = vsel %vm2984, nan, %v2994
    %v2996 = vand.u32 2147483647, %v2530
    %vm2997 = vcmp.le.f32.partialorder %v2996, 0.7853982
    %vm2998 = vcmp.lt.s32.totalorder %v2530, 0
    %v2999 = vand.u32 %v2530, 2139095040
    %v3000 = vshrl.u32 %v2999, 23
    %v3001 = vsub.s32 %v3000, 127
    %v3002 = vand.u32 2147483647, %v2530
    %v3003 = vand.u32 %v3002, 8388607
    %v3004 = vor.u32 %v3003, 8388608
    %v3005 = vsub.s32 0, %v3004
    %v3006 = vadd.s32 %v3001, 1
    %vm3007 = vcmp.gt.s32.totalorder %v3006, 0
    %v3008 = vsel %vm3007, %v3006, 0
    %v3009 = vshrl.u32 %v3008, 5
    %v3010 = vand.u32 %v3008, 31
    %v3011 = vsub.s32 32, %v3010
    %v3012 = vshrl.u32 683565275, %v3011
    %v3013 = vshll.u32 683565275, %v3010
    %v3014 = vshrl.u32 2475754826, %v3011
    %v3015 = vor.u32 %v3013, %v3014
    %v3016 = vshll.u32 2475754826, %v3010
    %v3017 = vshrl.u32 2131351028, %v3011
    %v3018 = vor.u32 %v3016, %v3017
    %v3019 = vshll.u32 2131351028, %v3010
    %v3020 = vshrl.u32 2102212464, %v3011
    %v3021 = vor.u32 %v3019, %v3020
    %v3022 = vshll.u32 2102212464, %v3010
    %v3023 = vshrl.u32 920167782, %v3011
    %v3024 = vor.u32 %v3022, %v3023
    %v3025 = vshll.u32 920167782, %v3010
    %v3026 = vshrl.u32 1326507024, %v3011
    %v3027 = vor.u32 %v3025, %v3026
    %vm3028 = vcmp.lt.s32.totalorder %v3009, 1
    %vm3029 = vcmp.lt.s32.totalorder %v3009, 2
    %vm3030 = vcmp.lt.s32.totalorder %v3009, 3
    %vm3031 = vcmp.lt.s32.totalorder %v3009, 4
    %v3032 = vsel %vm3028, %v3012, %v3015
    %v3033 = vsel %vm3031, %v3021, 2102212464
    %v3034 = vsel %vm3030, %v3018, %v3033
    %v3035 = vsel %vm3029, %v3032, %v3034
    %v3036 = vsel %vm3028, %v3015, %v3018
    %v3037 = vsel %vm3031, %v3024, 920167782
    %v3038 = vsel %vm3030, %v3021, %v3037
    %v3039 = vsel %vm3029, %v3036, %v3038
    %v3040 = vsel %vm3028, %v3018, %v3021
    %v3041 = vsel %vm3031, %v3027, 1326507024
    %v3042 = vsel %vm3030, %v3024, %v3041
    %v3043 = vsel %vm3029, %v3040, %v3042
    %v3044 = vshll.u32 %v3004, 8
    %v3045 = vand.u32 %v3044, 65535
    %v3046 = vshrl.u32 %v3044, 16
    %v3047 = vand.u32 %v3043, 65535
    %v3048 = vshrl.u32 %v3043, 16
    %v3049 = vmul.u32 %v3045, %v3047
    %v3050 = vmul.u32 %v3045, %v3048
    %v3051 = vmul.u32 %v3046, %v3047
    %v3052 = vmul.u32 %v3046, %v3048
    %v3053 = vshll.u32 %v3050, 16
    %v3054 = vshrl.u32 %v3050, 16
    %v3055 = vshll.u32 %v3051, 16
    %v3056 = vshrl.u32 %v3051, 16
    %vm3057 = vc.u32 %v3049, %v3053
    %v3058 = vsel %vm3057, 1, 0
    %v3059 = vadd.s32 %v3049, %v3053
    %v3060 = vadd.s32 %v3052, %v3058
    %vm3061 = vc.u32 %v3059, %v3055
    %v3062 = vsel %vm3061, 1, 0
    %v3063 = vadd.s32 %v3059, %v3055
    %v3064 = vadd.s32 %v3060, %v3062
    %v3065 = vadd.s32 %v3064, %v3054
    %v3066 = vadd.s32 %v3065, %v3056
    %v3067 = vand.u32 %v3044, 65535
    %v3068 = vshrl.u32 %v3044, 16
    %v3069 = vand.u32 %v3039, 65535
    %v3070 = vshrl.u32 %v3039, 16
    %v3071 = vmul.u32 %v3067, %v3069
    %v3072 = vmul.u32 %v3067, %v3070
    %v3073 = vmul.u32 %v3068, %v3069
    %v3074 = vmul.u32 %v3068, %v3070
    %v3075 = vshll.u32 %v3072, 16
    %v3076 = vshrl.u32 %v3072, 16
    %v3077 = vshll.u32 %v3073, 16
    %v3078 = vshrl.u32 %v3073, 16
    %vm3079 = vc.u32 %v3071, %v3075
    %v3080 = vsel %vm3079, 1, 0
    %v3081 = vadd.s32 %v3071, %v3075
    %v3082 = vadd.s32 %v3074, %v3080
    %vm3083 = vc.u32 %v3081, %v3077
    %v3084 = vsel %vm3083, 1, 0
    %v3085 = vadd.s32 %v3081, %v3077
    %v3086 = vadd.s32 %v3082, %v3084
    %v3087 = vadd.s32 %v3086, %v3076
    %v3088 = vadd.s32 %v3087, %v3078
    %v3089 = vmul.u32 %v3044, %v3035
    %v3090 = vadd.s32 %v3066, %v3085
    %vm3091 = vc.u32 %v3066, %v3085
    %v3092 = vadd.s32 %v3088, 1
    %v3093 = vsel %vm3091, %v3092, %v3088
    %v3094 = vadd.s32 %v3089, %v3093
    %v3095 = vadd.s32 %v3094, 536870912
    %v3096 = vshrl.u32 %v3095, 30
    %v3097 = vshll.u32 %v3096, 30
    %v3098 = vsub.s32 %v3094, %v3097
    %vm3099 = vcmp.lt.s32.totalorder %v3098, 0
    %v3100 = vsub.s32 0, %v3098
    %v3101 = vsel %vm3099, %v3100, %v3098
    %v3102 = vclz %v3101
    %v3103 = vsub.s32 %v3102, 2
    %vm3104 = vcmp.gt.s32.totalorder 0, %v3103
    %v3105 = vsel %vm3104, 0, %v3103
    %v3106 = vsub.s32 32, %v3105
    %v3107 = vshll.u32 %v3098, %v3105
    %v3108 = vshrl.u32 %v3090, %v3106
    %v3109 = vor.u32 %v3107, %v3108
    %v3110 = vsub.s32 4294967266, %v3105
    %v3111 = vadd.s32 %v3110, 127
    %v3112 = vshll.u32 %v3111, 23
    %v3113 = vor.u32 4788187, %v3112
    %v3114 = vand.u32 2147483647, %v3113
    %v3116 = vcvt.s32.f32 %v3109
    %v3117 = vmul.f32 %v3116, %v3114
    %v3118 = vxor.u32 %v3117, 2147483648
    %v3119 = vsel %vm2998, %v3118, %v3117
    %v3120 = vsub.s32 4, %v3096
    %v3121 = vsel %vm2998, %v3120, %v3096
    %v3122 = vsel %vm2997, %v2530, %v3119
    %v3123 = vsel %vm2997, 0, %v3121
    %v3124 = vmul.f32 %v3122, %v3122
    %v3125 = vmul.f32 %v3124, -0.001358992
    %v3126 = vadd.f32 %v3125, 0.041655596
    %v3127 = vmul.f32 %v3124, %v3126
    %v3128 = vadd.f32 %v3127, -0.4999988
    %v3129 = vmul.f32 %v3124, %v3128
    %v3130 = vadd.f32 1.0, %v3129
    %v3131 = vmul.f32 %v3122, %v3122
    %v3132 = vmul.f32 %v3131, -0.00019511016
    %v3133 = vadd.f32 %v3132, 0.008332121
    %v3134 = vmul.f32 %v3131, %v3133
    %v3135 = vadd.f32 %v3134, -0.16666654
    %v3136 = vmul.f32 %v3131, %v3135
    %v3137 = vadd.f32 %v3136, 1.0
    %v3138 = vmul.f32 %v3137, %v3122
    %vm3139 = vweird.f32 %v2530
    %v3140 = vadd.s32 %v3123, 3
    %v3141 = vand.u32 %v3140, 3
    %vm3142 = vcmp.lt.s32.totalorder %v3141, 2
    %vm3143 = vcmp.eq.s32.totalorder %v3141, 0
    %v3144 = vxor.u32 %v3138, 2147483648
    %v3145 = vsel %vm3143, %v3130, %v3144
    %vm3146 = vcmp.eq.s32.totalorder %v3141, 2
    %v3147 = vxor.u32 %v3130, 2147483648
    %v3148 = vsel %vm3146, %v3147, %v3138
    %v3149 = vsel %vm3142, %v3145, %v3148
    %v3150 = vsel %vm3139, nan, %v3149
    %s3151 = scalar_lea.vmem [#allocation5], 160
    %3152 = vst [vmem:[%s3151] sm:$0xff] %v2685
    %3153 = vst [vmem:[%s3151 + $0x8] sm:$0xff] %v2840
    %3154 = vst [vmem:[%s3151 + $0x10] sm:$0xff] %v2995
    %3155 = vst [vmem:[%s3151 + $0x18] sm:$0xff] %v3150
    %v3156 = vand.u32 2147483647, %v2527
    %vm3157 = vcmp.le.f32.partialorder %v3156, 0.7853982
    %vm3158 = vcmp.lt.s32.totalorder %v2527, 0
    %v3159 = vand.u32 %v2527, 2139095040
    %v3160 = vshrl.u32 %v3159, 23
    %v3161 = vsub.s32 %v3160, 127
    %v3162 = vand.u32 2147483647, %v2527
    %v3163 = vand.u32 %v3162, 8388607
    %v3164 = vor.u32 %v3163, 8388608
    %v3165 = vsub.s32 0, %v3164
    %v3166 = vadd.s32 %v3161, 1
    %vm3167 = vcmp.gt.s32.totalorder %v3166, 0
    %v3168 = vsel %vm3167, %v3166, 0
    %v3169 = vshrl.u32 %v3168, 5
    %v3170 = vand.u32 %v3168, 31
    %v3171 = vsub.s32 32, %v3170
    %v3172 = vshrl.u32 683565275, %v3171
    %v3173 = vshll.u32 683565275, %v3170
    %v3174 = vshrl.u32 2475754826, %v3171
    %v3175 = vor.u32 %v3173, %v3174
    %v3176 = vshll.u32 2475754826, %v3170
    %v3177 = vshrl.u32 2131351028, %v3171
    %v3178 = vor.u32 %v3176, %v3177
    %v3179 = vshll.u32 2131351028, %v3170
    %v3180 = vshrl.u32 2102212464, %v3171
    %v3181 = vor.u32 %v3179, %v3180
    %v3182 = vshll.u32 2102212464, %v3170
    %v3183 = vshrl.u32 920167782, %v3171
    %v3184 = vor.u32 %v3182, %v3183
    %v3185 = vshll.u32 920167782, %v3170
    %v3186 = vshrl.u32 1326507024, %v3171
    %v3187 = vor.u32 %v3185, %v3186
    %vm3188 = vcmp.lt.s32.totalorder %v3169, 1
    %vm3189 = vcmp.lt.s32.totalorder %v3169, 2
    %vm3190 = vcmp.lt.s32.totalorder %v3169, 3
    %vm3191 = vcmp.lt.s32.totalorder %v3169, 4
    %v3192 = vsel %vm3188, %v3172, %v3175
    %v3193 = vsel %vm3191, %v3181, 2102212464
    %v3194 = vsel %vm3190, %v3178, %v3193
    %v3195 = vsel %vm3189, %v3192, %v3194
    %v3196 = vsel %vm3188, %v3175, %v3178
    %v3197 = vsel %vm3191, %v3184, 920167782
    %v3198 = vsel %vm3190, %v3181, %v3197
    %v3199 = vsel %vm3189, %v3196, %v3198
    %v3200 = vsel %vm3188, %v3178, %v3181
    %v3201 = vsel %vm3191, %v3187, 1326507024
    %v3202 = vsel %vm3190, %v3184, %v3201
    %v3203 = vsel %vm3189, %v3200, %v3202
    %v3204 = vshll.u32 %v3164, 8
    %v3205 = vand.u32 %v3204, 65535
    %v3206 = vshrl.u32 %v3204, 16
    %v3207 = vand.u32 %v3203, 65535
    %v3208 = vshrl.u32 %v3203, 16
    %v3209 = vmul.u32 %v3205, %v3207
    %v3210 = vmul.u32 %v3205, %v3208
    %v3211 = vmul.u32 %v3206, %v3207
    %v3212 = vmul.u32 %v3206, %v3208
    %v3213 = vshll.u32 %v3210, 16
    %v3214 = vshrl.u32 %v3210, 16
    %v3215 = vshll.u32 %v3211, 16
    %v3216 = vshrl.u32 %v3211, 16
    %vm3217 = vc.u32 %v3209, %v3213
    %v3218 = vsel %vm3217, 1, 0
    %v3219 = vadd.s32 %v3209, %v3213
    %v3220 = vadd.s32 %v3212, %v3218
    %vm3221 = vc.u32 %v3219, %v3215
    %v3222 = vsel %vm3221, 1, 0
    %v3223 = vadd.s32 %v3219, %v3215
    %v3224 = vadd.s32 %v3220, %v3222
    %v3225 = vadd.s32 %v3224, %v3214
    %v3226 = vadd.s32 %v3225, %v3216
    %v3227 = vand.u32 %v3204, 65535
    %v3228 = vshrl.u32 %v3204, 16
    %v3229 = vand.u32 %v3199, 65535
    %v3230 = vshrl.u32 %v3199, 16
    %v3231 = vmul.u32 %v3227, %v3229
    %v3232 = vmul.u32 %v3227, %v3230
    %v3233 = vmul.u32 %v3228, %v3229
    %v3234 = vmul.u32 %v3228, %v3230
    %v3235 = vshll.u32 %v3232, 16
    %v3236 = vshrl.u32 %v3232, 16
    %v3237 = vshll.u32 %v3233, 16
    %v3238 = vshrl.u32 %v3233, 16
    %vm3239 = vc.u32 %v3231, %v3235
    %v3240 = vsel %vm3239, 1, 0
    %v3241 = vadd.s32 %v3231, %v3235
    %v3242 = vadd.s32 %v3234, %v3240
    %vm3243 = vc.u32 %v3241, %v3237
    %v3244 = vsel %vm3243, 1, 0
    %v3245 = vadd.s32 %v3241, %v3237
    %v3246 = vadd.s32 %v3242, %v3244
    %v3247 = vadd.s32 %v3246, %v3236
    %v3248 = vadd.s32 %v3247, %v3238
    %v3249 = vmul.u32 %v3204, %v3195
    %v3250 = vadd.s32 %v3226, %v3245
    %vm3251 = vc.u32 %v3226, %v3245
    %v3252 = vadd.s32 %v3248, 1
    %v3253 = vsel %vm3251, %v3252, %v3248
    %v3254 = vadd.s32 %v3249, %v3253
    %v3255 = vadd.s32 %v3254, 536870912
    %v3256 = vshrl.u32 %v3255, 30
    %v3257 = vshll.u32 %v3256, 30
    %v3258 = vsub.s32 %v3254, %v3257
    %vm3259 = vcmp.lt.s32.totalorder %v3258, 0
    %v3260 = vsub.s32 0, %v3258
    %v3261 = vsel %vm3259, %v3260, %v3258
    %v3262 = vclz %v3261
    %v3263 = vsub.s32 %v3262, 2
    %vm3264 = vcmp.gt.s32.totalorder 0, %v3263
    %v3265 = vsel %vm3264, 0, %v3263
    %v3266 = vsub.s32 32, %v3265
    %v3267 = vshll.u32 %v3258, %v3265
    %v3268 = vshrl.u32 %v3250, %v3266
    %v3269 = vor.u32 %v3267, %v3268
    %v3270 = vsub.s32 4294967266, %v3265
    %v3271 = vadd.s32 %v3270, 127
    %v3272 = vshll.u32 %v3271, 23
    %v3273 = vor.u32 4788187, %v3272
    %v3274 = vand.u32 2147483647, %v3273
    %v3276 = vcvt.s32.f32 %v3269
    %v3277 = vmul.f32 %v3276, %v3274
    %v3278 = vxor.u32 %v3277, 2147483648
    %v3279 = vsel %vm3158, %v3278, %v3277
    %v3280 = vsub.s32 4, %v3256
    %v3281 = vsel %vm3158, %v3280, %v3256
    %v3282 = vsel %vm3157, %v2527, %v3279
    %v3283 = vsel %vm3157, 0, %v3281
    %v3284 = vmul.f32 %v3282, %v3282
    %v3285 = vmul.f32 %v3284, -0.001358992
    %v3286 = vadd.f32 %v3285, 0.041655596
    %v3287 = vmul.f32 %v3284, %v3286
    %v3288 = vadd.f32 %v3287, -0.4999988
    %v3289 = vmul.f32 %v3284, %v3288
    %v3290 = vadd.f32 1.0, %v3289
    %v3291 = vmul.f32 %v3282, %v3282
    %v3292 = vmul.f32 %v3291, -0.00019511016
    %v3293 = vadd.f32 %v3292, 0.008332121
    %v3294 = vmul.f32 %v3291, %v3293
    %v3295 = vadd.f32 %v3294, -0.16666654
    %v3296 = vmul.f32 %v3291, %v3295
    %v3297 = vadd.f32 %v3296, 1.0
    %v3298 = vmul.f32 %v3297, %v3282
    %vm3299 = vweird.f32 %v2527
    %v3300 = vand.u32 %v3283, 3
    %vm3301 = vcmp.lt.s32.totalorder %v3300, 2
    %vm3302 = vcmp.eq.s32.totalorder %v3300, 0
    %v3303 = vxor.u32 %v3298, 2147483648
    %v3304 = vsel %vm3302, %v3290, %v3303
    %vm3305 = vcmp.eq.s32.totalorder %v3300, 2
    %v3306 = vxor.u32 %v3290, 2147483648
    %v3307 = vsel %vm3305, %v3306, %v3298
    %v3308 = vsel %vm3301, %v3304, %v3307
    %v3309 = vsel %vm3299, nan, %v3308
    %v3310 = vand.u32 2147483647, %v2528
    %vm3311 = vcmp.le.f32.partialorder %v3310, 0.7853982
    %vm3312 = vcmp.lt.s32.totalorder %v2528, 0
    %v3313 = vand.u32 %v2528, 2139095040
    %v3314 = vshrl.u32 %v3313, 23
    %v3315 = vsub.s32 %v3314, 127
    %v3316 = vand.u32 2147483647, %v2528
    %v3317 = vand.u32 %v3316, 8388607
    %v3318 = vor.u32 %v3317, 8388608
    %v3319 = vsub.s32 0, %v3318
    %v3320 = vadd.s32 %v3315, 1
    %vm3321 = vcmp.gt.s32.totalorder %v3320, 0
    %v3322 = vsel %vm3321, %v3320, 0
    %v3323 = vshrl.u32 %v3322, 5
    %v3324 = vand.u32 %v3322, 31
    %v3325 = vsub.s32 32, %v3324
    %v3326 = vshrl.u32 683565275, %v3325
    %v3327 = vshll.u32 683565275, %v3324
    %v3328 = vshrl.u32 2475754826, %v3325
    %v3329 = vor.u32 %v3327, %v3328
    %v3330 = vshll.u32 2475754826, %v3324
    %v3331 = vshrl.u32 2131351028, %v3325
    %v3332 = vor.u32 %v3330, %v3331
    %v3333 = vshll.u32 2131351028, %v3324
    %v3334 = vshrl.u32 2102212464, %v3325
    %v3335 = vor.u32 %v3333, %v3334
    %v3336 = vshll.u32 2102212464, %v3324
    %v3337 = vshrl.u32 920167782, %v3325
    %v3338 = vor.u32 %v3336, %v3337
    %v3339 = vshll.u32 920167782, %v3324
    %v3340 = vshrl.u32 1326507024, %v3325
    %v3341 = vor.u32 %v3339, %v3340
    %vm3342 = vcmp.lt.s32.totalorder %v3323, 1
    %vm3343 = vcmp.lt.s32.totalorder %v3323, 2
    %vm3344 = vcmp.lt.s32.totalorder %v3323, 3
    %vm3345 = vcmp.lt.s32.totalorder %v3323, 4
    %v3346 = vsel %vm3342, %v3326, %v3329
    %v3347 = vsel %vm3345, %v3335, 2102212464
    %v3348 = vsel %vm3344, %v3332, %v3347
    %v3349 = vsel %vm3343, %v3346, %v3348
    %v3350 = vsel %vm3342, %v3329, %v3332
    %v3351 = vsel %vm3345, %v3338, 920167782
    %v3352 = vsel %vm3344, %v3335, %v3351
    %v3353 = vsel %vm3343, %v3350, %v3352
    %v3354 = vsel %vm3342, %v3332, %v3335
    %v3355 = vsel %vm3345, %v3341, 1326507024
    %v3356 = vsel %vm3344, %v3338, %v3355
    %v3357 = vsel %vm3343, %v3354, %v3356
    %v3358 = vshll.u32 %v3318, 8
    %v3359 = vand.u32 %v3358, 65535
    %v3360 = vshrl.u32 %v3358, 16
    %v3361 = vand.u32 %v3357, 65535
    %v3362 = vshrl.u32 %v3357, 16
    %v3363 = vmul.u32 %v3359, %v3361
    %v3364 = vmul.u32 %v3359, %v3362
    %v3365 = vmul.u32 %v3360, %v3361
    %v3366 = vmul.u32 %v3360, %v3362
    %v3367 = vshll.u32 %v3364, 16
    %v3368 = vshrl.u32 %v3364, 16
    %v3369 = vshll.u32 %v3365, 16
    %v3370 = vshrl.u32 %v3365, 16
    %vm3371 = vc.u32 %v3363, %v3367
    %v3372 = vsel %vm3371, 1, 0
    %v3373 = vadd.s32 %v3363, %v3367
    %v3374 = vadd.s32 %v3366, %v3372
    %vm3375 = vc.u32 %v3373, %v3369
    %v3376 = vsel %vm3375, 1, 0
    %v3377 = vadd.s32 %v3373, %v3369
    %v3378 = vadd.s32 %v3374, %v3376
    %v3379 = vadd.s32 %v3378, %v3368
    %v3380 = vadd.s32 %v3379, %v3370
    %v3381 = vand.u32 %v3358, 65535
    %v3382 = vshrl.u32 %v3358, 16
    %v3383 = vand.u32 %v3353, 65535
    %v3384 = vshrl.u32 %v3353, 16
    %v3385 = vmul.u32 %v3381, %v3383
    %v3386 = vmul.u32 %v3381, %v3384
    %v3387 = vmul.u32 %v3382, %v3383
    %v3388 = vmul.u32 %v3382, %v3384
    %v3389 = vshll.u32 %v3386, 16
    %v3390 = vshrl.u32 %v3386, 16
    %v3391 = vshll.u32 %v3387, 16
    %v3392 = vshrl.u32 %v3387, 16
    %vm3393 = vc.u32 %v3385, %v3389
    %v3394 = vsel %vm3393, 1, 0
    %v3395 = vadd.s32 %v3385, %v3389
    %v3396 = vadd.s32 %v3388, %v3394
    %vm3397 = vc.u32 %v3395, %v3391
    %v3398 = vsel %vm3397, 1, 0
    %v3399 = vadd.s32 %v3395, %v3391
    %v3400 = vadd.s32 %v3396, %v3398
    %v3401 = vadd.s32 %v3400, %v3390
    %v3402 = vadd.s32 %v3401, %v3392
    %v3403 = vmul.u32 %v3358, %v3349
    %v3404 = vadd.s32 %v3380, %v3399
    %vm3405 = vc.u32 %v3380, %v3399
    %v3406 = vadd.s32 %v3402, 1
    %v3407 = vsel %vm3405, %v3406, %v3402
    %v3408 = vadd.s32 %v3403, %v3407
    %v3409 = vadd.s32 %v3408, 536870912
    %v3410 = vshrl.u32 %v3409, 30
    %v3411 = vshll.u32 %v3410, 30
    %v3412 = vsub.s32 %v3408, %v3411
    %vm3413 = vcmp.lt.s32.totalorder %v3412, 0
    %v3414 = vsub.s32 0, %v3412
    %v3415 = vsel %vm3413, %v3414, %v3412
    %v3416 = vclz %v3415
    %v3417 = vsub.s32 %v3416, 2
    %vm3418 = vcmp.gt.s32.totalorder 0, %v3417
    %v3419 = vsel %vm3418, 0, %v3417
    %v3420 = vsub.s32 32, %v3419
    %v3421 = vshll.u32 %v3412, %v3419
    %v3422 = vshrl.u32 %v3404, %v3420
    %v3423 = vor.u32 %v3421, %v3422
    %v3424 = vsub.s32 4294967266, %v3419
    %v3425 = vadd.s32 %v3424, 127
    %v3426 = vshll.u32 %v3425, 23
    %v3427 = vor.u32 4788187, %v3426
    %v3428 = vand.u32 2147483647, %v3427
    %v3430 = vcvt.s32.f32 %v3423
    %v3431 = vmul.f32 %v3430, %v3428
    %v3432 = vxor.u32 %v3431, 2147483648
    %v3433 = vsel %vm3312, %v3432, %v3431
    %v3434 = vsub.s32 4, %v3410
    %v3435 = vsel %vm3312, %v3434, %v3410
    %v3436 = vsel %vm3311, %v2528, %v3433
    %v3437 = vsel %vm3311, 0, %v3435
    %v3438 = vmul.f32 %v3436, %v3436
    %v3439 = vmul.f32 %v3438, -0.001358992
    %v3440 = vadd.f32 %v3439, 0.041655596
    %v3441 = vmul.f32 %v3438, %v3440
    %v3442 = vadd.f32 %v3441, -0.4999988
    %v3443 = vmul.f32 %v3438, %v3442
    %v3444 = vadd.f32 1.0, %v3443
    %v3445 = vmul.f32 %v3436, %v3436
    %v3446 = vmul.f32 %v3445, -0.00019511016
    %v3447 = vadd.f32 %v3446, 0.008332121
    %v3448 = vmul.f32 %v3445, %v3447
    %v3449 = vadd.f32 %v3448, -0.16666654
    %v3450 = vmul.f32 %v3445, %v3449
    %v3451 = vadd.f32 %v3450, 1.0
    %v3452 = vmul.f32 %v3451, %v3436
    %vm3453 = vweird.f32 %v2528
    %v3454 = vand.u32 %v3437, 3
    %vm3455 = vcmp.lt.s32.totalorder %v3454, 2
    %vm3456 = vcmp.eq.s32.totalorder %v3454, 0
    %v3457 = vxor.u32 %v3452, 2147483648
    %v3458 = vsel %vm3456, %v3444, %v3457
    %vm3459 = vcmp.eq.s32.totalorder %v3454, 2
    %v3460 = vxor.u32 %v3444, 2147483648
    %v3461 = vsel %vm3459, %v3460, %v3452
    %v3462 = vsel %vm3455, %v3458, %v3461
    %v3463 = vsel %vm3453, nan, %v3462
    %v3464 = vand.u32 2147483647, %v2529
    %vm3465 = vcmp.le.f32.partialorder %v3464, 0.7853982
    %vm3466 = vcmp.lt.s32.totalorder %v2529, 0
    %v3467 = vand.u32 %v2529, 2139095040
    %v3468 = vshrl.u32 %v3467, 23
    %v3469 = vsub.s32 %v3468, 127
    %v3470 = vand.u32 2147483647, %v2529
    %v3471 = vand.u32 %v3470, 8388607
    %v3472 = vor.u32 %v3471, 8388608
    %v3473 = vsub.s32 0, %v3472
    %v3474 = vadd.s32 %v3469, 1
    %vm3475 = vcmp.gt.s32.totalorder %v3474, 0
    %v3476 = vsel %vm3475, %v3474, 0
    %v3477 = vshrl.u32 %v3476, 5
    %v3478 = vand.u32 %v3476, 31
    %v3479 = vsub.s32 32, %v3478
    %v3480 = vshrl.u32 683565275, %v3479
    %v3481 = vshll.u32 683565275, %v3478
    %v3482 = vshrl.u32 2475754826, %v3479
    %v3483 = vor.u32 %v3481, %v3482
    %v3484 = vshll.u32 2475754826, %v3478
    %v3485 = vshrl.u32 2131351028, %v3479
    %v3486 = vor.u32 %v3484, %v3485
    %v3487 = vshll.u32 2131351028, %v3478
    %v3488 = vshrl.u32 2102212464, %v3479
    %v3489 = vor.u32 %v3487, %v3488
    %v3490 = vshll.u32 2102212464, %v3478
    %v3491 = vshrl.u32 920167782, %v3479
    %v3492 = vor.u32 %v3490, %v3491
    %v3493 = vshll.u32 920167782, %v3478
    %v3494 = vshrl.u32 1326507024, %v3479
    %v3495 = vor.u32 %v3493, %v3494
    %vm3496 = vcmp.lt.s32.totalorder %v3477, 1
    %vm3497 = vcmp.lt.s32.totalorder %v3477, 2
    %vm3498 = vcmp.lt.s32.totalorder %v3477, 3
    %vm3499 = vcmp.lt.s32.totalorder %v3477, 4
    %v3500 = vsel %vm3496, %v3480, %v3483
    %v3501 = vsel %vm3499, %v3489, 2102212464
    %v3502 = vsel %vm3498, %v3486, %v3501
    %v3503 = vsel %vm3497, %v3500, %v3502
    %v3504 = vsel %vm3496, %v3483, %v3486
    %v3505 = vsel %vm3499, %v3492, 920167782
    %v3506 = vsel %vm3498, %v3489, %v3505
    %v3507 = vsel %vm3497, %v3504, %v3506
    %v3508 = vsel %vm3496, %v3486, %v3489
    %v3509 = vsel %vm3499, %v3495, 1326507024
    %v3510 = vsel %vm3498, %v3492, %v3509
    %v3511 = vsel %vm3497, %v3508, %v3510
    %v3512 = vshll.u32 %v3472, 8
    %v3513 = vand.u32 %v3512, 65535
    %v3514 = vshrl.u32 %v3512, 16
    %v3515 = vand.u32 %v3511, 65535
    %v3516 = vshrl.u32 %v3511, 16
    %v3517 = vmul.u32 %v3513, %v3515
    %v3518 = vmul.u32 %v3513, %v3516
    %v3519 = vmul.u32 %v3514, %v3515
    %v3520 = vmul.u32 %v3514, %v3516
    %v3521 = vshll.u32 %v3518, 16
    %v3522 = vshrl.u32 %v3518, 16
    %v3523 = vshll.u32 %v3519, 16
    %v3524 = vshrl.u32 %v3519, 16
    %vm3525 = vc.u32 %v3517, %v3521
    %v3526 = vsel %vm3525, 1, 0
    %v3527 = vadd.s32 %v3517, %v3521
    %v3528 = vadd.s32 %v3520, %v3526
    %vm3529 = vc.u32 %v3527, %v3523
    %v3530 = vsel %vm3529, 1, 0
    %v3531 = vadd.s32 %v3527, %v3523
    %v3532 = vadd.s32 %v3528, %v3530
    %v3533 = vadd.s32 %v3532, %v3522
    %v3534 = vadd.s32 %v3533, %v3524
    %v3535 = vand.u32 %v3512, 65535
    %v3536 = vshrl.u32 %v3512, 16
    %v3537 = vand.u32 %v3507, 65535
    %v3538 = vshrl.u32 %v3507, 16
    %v3539 = vmul.u32 %v3535, %v3537
    %v3540 = vmul.u32 %v3535, %v3538
    %v3541 = vmul.u32 %v3536, %v3537
    %v3542 = vmul.u32 %v3536, %v3538
    %v3543 = vshll.u32 %v3540, 16
    %v3544 = vshrl.u32 %v3540, 16
    %v3545 = vshll.u32 %v3541, 16
    %v3546 = vshrl.u32 %v3541, 16
    %vm3547 = vc.u32 %v3539, %v3543
    %v3548 = vsel %vm3547, 1, 0
    %v3549 = vadd.s32 %v3539, %v3543
    %v3550 = vadd.s32 %v3542, %v3548
    %vm3551 = vc.u32 %v3549, %v3545
    %v3552 = vsel %vm3551, 1, 0
    %v3553 = vadd.s32 %v3549, %v3545
    %v3554 = vadd.s32 %v3550, %v3552
    %v3555 = vadd.s32 %v3554, %v3544
    %v3556 = vadd.s32 %v3555, %v3546
    %v3557 = vmul.u32 %v3512, %v3503
    %v3558 = vadd.s32 %v3534, %v3553
    %vm3559 = vc.u32 %v3534, %v3553
    %v3560 = vadd.s32 %v3556, 1
    %v3561 = vsel %vm3559, %v3560, %v3556
    %v3562 = vadd.s32 %v3557, %v3561
    %v3563 = vadd.s32 %v3562, 536870912
    %v3564 = vshrl.u32 %v3563, 30
    %v3565 = vshll.u32 %v3564, 30
    %v3566 = vsub.s32 %v3562, %v3565
    %vm3567 = vcmp.lt.s32.totalorder %v3566, 0
    %v3568 = vsub.s32 0, %v3566
    %v3569 = vsel %vm3567, %v3568, %v3566
    %v3570 = vclz %v3569
    %v3571 = vsub.s32 %v3570, 2
    %vm3572 = vcmp.gt.s32.totalorder 0, %v3571
    %v3573 = vsel %vm3572, 0, %v3571
    %v3574 = vsub.s32 32, %v3573
    %v3575 = vshll.u32 %v3566, %v3573
    %v3576 = vshrl.u32 %v3558, %v3574
    %v3577 = vor.u32 %v3575, %v3576
    %v3578 = vsub.s32 4294967266, %v3573
    %v3579 = vadd.s32 %v3578, 127
    %v3580 = vshll.u32 %v3579, 23
    %v3581 = vor.u32 4788187, %v3580
    %v3582 = vand.u32 2147483647, %v3581
    %v3584 = vcvt.s32.f32 %v3577
    %v3585 = vmul.f32 %v3584, %v3582
    %v3586 = vxor.u32 %v3585, 2147483648
    %v3587 = vsel %vm3466, %v3586, %v3585
    %v3588 = vsub.s32 4, %v3564
    %v3589 = vsel %vm3466, %v3588, %v3564
    %v3590 = vsel %vm3465, %v2529, %v3587
    %v3591 = vsel %vm3465, 0, %v3589
    %v3592 = vmul.f32 %v3590, %v3590
    %v3593 = vmul.f32 %v3592, -0.001358992
    %v3594 = vadd.f32 %v3593, 0.041655596
    %v3595 = vmul.f32 %v3592, %v3594
    %v3596 = vadd.f32 %v3595, -0.4999988
    %v3597 = vmul.f32 %v3592, %v3596
    %v3598 = vadd.f32 1.0, %v3597
    %v3599 = vmul.f32 %v3590, %v3590
    %v3600 = vmul.f32 %v3599, -0.00019511016
    %v3601 = vadd.f32 %v3600, 0.008332121
    %v3602 = vmul.f32 %v3599, %v3601
    %v3603 = vadd.f32 %v3602, -0.16666654
    %v3604 = vmul.f32 %v3599, %v3603
    %v3605 = vadd.f32 %v3604, 1.0
    %v3606 = vmul.f32 %v3605, %v3590
    %vm3607 = vweird.f32 %v2529
    %v3608 = vand.u32 %v3591, 3
    %vm3609 = vcmp.lt.s32.totalorder %v3608, 2
    %vm3610 = vcmp.eq.s32.totalorder %v3608, 0
    %v3611 = vxor.u32 %v3606, 2147483648
    %v3612 = vsel %vm3610, %v3598, %v3611
    %vm3613 = vcmp.eq.s32.totalorder %v3608, 2
    %v3614 = vxor.u32 %v3598, 2147483648
    %v3615 = vsel %vm3613, %v3614, %v3606
    %v3616 = vsel %vm3609, %v3612, %v3615
    %v3617 = vsel %vm3607, nan, %v3616
    %v3618 = vand.u32 2147483647, %v2530
    %vm3619 = vcmp.le.f32.partialorder %v3618, 0.7853982
    %vm3620 = vcmp.lt.s32.totalorder %v2530, 0
    %v3621 = vand.u32 %v2530, 2139095040
    %v3622 = vshrl.u32 %v3621, 23
    %v3623 = vsub.s32 %v3622, 127
    %v3624 = vand.u32 2147483647, %v2530
    %v3625 = vand.u32 %v3624, 8388607
    %v3626 = vor.u32 %v3625, 8388608
    %v3627 = vsub.s32 0, %v3626
    %v3628 = vadd.s32 %v3623, 1
    %vm3629 = vcmp.gt.s32.totalorder %v3628, 0
    %v3630 = vsel %vm3629, %v3628, 0
    %v3631 = vshrl.u32 %v3630, 5
    %v3632 = vand.u32 %v3630, 31
    %v3633 = vsub.s32 32, %v3632
    %v3634 = vshrl.u32 683565275, %v3633
    %v3635 = vshll.u32 683565275, %v3632
    %v3636 = vshrl.u32 2475754826, %v3633
    %v3637 = vor.u32 %v3635, %v3636
    %v3638 = vshll.u32 2475754826, %v3632
    %v3639 = vshrl.u32 2131351028, %v3633
    %v3640 = vor.u32 %v3638, %v3639
    %v3641 = vshll.u32 2131351028, %v3632
    %v3642 = vshrl.u32 2102212464, %v3633
    %v3643 = vor.u32 %v3641, %v3642
    %v3644 = vshll.u32 2102212464, %v3632
    %v3645 = vshrl.u32 920167782, %v3633
    %v3646 = vor.u32 %v3644, %v3645
    %v3647 = vshll.u32 920167782, %v3632
    %v3648 = vshrl.u32 1326507024, %v3633
    %v3649 = vor.u32 %v3647, %v3648
    %vm3650 = vcmp.lt.s32.totalorder %v3631, 1
    %vm3651 = vcmp.lt.s32.totalorder %v3631, 2
    %vm3652 = vcmp.lt.s32.totalorder %v3631, 3
    %vm3653 = vcmp.lt.s32.totalorder %v3631, 4
    %v3654 = vsel %vm3650, %v3634, %v3637
    %v3655 = vsel %vm3653, %v3643, 2102212464
    %v3656 = vsel %vm3652, %v3640, %v3655
    %v3657 = vsel %vm3651, %v3654, %v3656
    %v3658 = vsel %vm3650, %v3637, %v3640
    %v3659 = vsel %vm3653, %v3646, 920167782
    %v3660 = vsel %vm3652, %v3643, %v3659
    %v3661 = vsel %vm3651, %v3658, %v3660
    %v3662 = vsel %vm3650, %v3640, %v3643
    %v3663 = vsel %vm3653, %v3649, 1326507024
    %v3664 = vsel %vm3652, %v3646, %v3663
    %v3665 = vsel %vm3651, %v3662, %v3664
    %v3666 = vshll.u32 %v3626, 8
    %v3667 = vand.u32 %v3666, 65535
    %v3668 = vshrl.u32 %v3666, 16
    %v3669 = vand.u32 %v3665, 65535
    %v3670 = vshrl.u32 %v3665, 16
    %v3671 = vmul.u32 %v3667, %v3669
    %v3672 = vmul.u32 %v3667, %v3670
    %v3673 = vmul.u32 %v3668, %v3669
    %v3674 = vmul.u32 %v3668, %v3670
    %v3675 = vshll.u32 %v3672, 16
    %v3676 = vshrl.u32 %v3672, 16
    %v3677 = vshll.u32 %v3673, 16
    %v3678 = vshrl.u32 %v3673, 16
    %vm3679 = vc.u32 %v3671, %v3675
    %v3680 = vsel %vm3679, 1, 0
    %v3681 = vadd.s32 %v3671, %v3675
    %v3682 = vadd.s32 %v3674, %v3680
    %vm3683 = vc.u32 %v3681, %v3677
    %v3684 = vsel %vm3683, 1, 0
    %v3685 = vadd.s32 %v3681, %v3677
    %v3686 = vadd.s32 %v3682, %v3684
    %v3687 = vadd.s32 %v3686, %v3676
    %v3688 = vadd.s32 %v3687, %v3678
    %v3689 = vand.u32 %v3666, 65535
    %v3690 = vshrl.u32 %v3666, 16
    %v3691 = vand.u32 %v3661, 65535
    %v3692 = vshrl.u32 %v3661, 16
    %v3693 = vmul.u32 %v3689, %v3691
    %v3694 = vmul.u32 %v3689, %v3692
    %v3695 = vmul.u32 %v3690, %v3691
    %v3696 = vmul.u32 %v3690, %v3692
    %v3697 = vshll.u32 %v3694, 16
    %v3698 = vshrl.u32 %v3694, 16
    %v3699 = vshll.u32 %v3695, 16
    %v3700 = vshrl.u32 %v3695, 16
    %vm3701 = vc.u32 %v3693, %v3697
    %v3702 = vsel %vm3701, 1, 0
    %v3703 = vadd.s32 %v3693, %v3697
    %v3704 = vadd.s32 %v3696, %v3702
    %vm3705 = vc.u32 %v3703, %v3699
    %v3706 = vsel %vm3705, 1, 0
    %v3707 = vadd.s32 %v3703, %v3699
    %v3708 = vadd.s32 %v3704, %v3706
    %v3709 = vadd.s32 %v3708, %v3698
    %v3710 = vadd.s32 %v3709, %v3700
    %v3711 = vmul.u32 %v3666, %v3657
    %v3712 = vadd.s32 %v3688, %v3707
    %vm3713 = vc.u32 %v3688, %v3707
    %v3714 = vadd.s32 %v3710, 1
    %v3715 = vsel %vm3713, %v3714, %v3710
    %v3716 = vadd.s32 %v3711, %v3715
    %v3717 = vadd.s32 %v3716, 536870912
    %v3718 = vshrl.u32 %v3717, 30
    %v3719 = vshll.u32 %v3718, 30
    %v3720 = vsub.s32 %v3716, %v3719
    %vm3721 = vcmp.lt.s32.totalorder %v3720, 0
    %v3722 = vsub.s32 0, %v3720
    %v3723 = vsel %vm3721, %v3722, %v3720
    %v3724 = vclz %v3723
    %v3725 = vsub.s32 %v3724, 2
    %vm3726 = vcmp.gt.s32.totalorder 0, %v3725
    %v3727 = vsel %vm3726, 0, %v3725
    %v3728 = vsub.s32 32, %v3727
    %v3729 = vshll.u32 %v3720, %v3727
    %v3730 = vshrl.u32 %v3712, %v3728
    %v3731 = vor.u32 %v3729, %v3730
    %v3732 = vsub.s32 4294967266, %v3727
    %v3733 = vadd.s32 %v3732, 127
    %v3734 = vshll.u32 %v3733, 23
    %v3735 = vor.u32 4788187, %v3734
    %v3736 = vand.u32 2147483647, %v3735
    %v3738 = vcvt.s32.f32 %v3731
    %v3739 = vmul.f32 %v3738, %v3736
    %v3740 = vxor.u32 %v3739, 2147483648
    %v3741 = vsel %vm3620, %v3740, %v3739
    %v3742 = vsub.s32 4, %v3718
    %v3743 = vsel %vm3620, %v3742, %v3718
    %v3744 = vsel %vm3619, %v2530, %v3741
    %v3745 = vsel %vm3619, 0, %v3743
    %v3746 = vmul.f32 %v3744, %v3744
    %v3747 = vmul.f32 %v3746, -0.001358992
    %v3748 = vadd.f32 %v3747, 0.041655596
    %v3749 = vmul.f32 %v3746, %v3748
    %v3750 = vadd.f32 %v3749, -0.4999988
    %v3751 = vmul.f32 %v3746, %v3750
    %v3752 = vadd.f32 1.0, %v3751
    %v3753 = vmul.f32 %v3744, %v3744
    %v3754 = vmul.f32 %v3753, -0.00019511016
    %v3755 = vadd.f32 %v3754, 0.008332121
    %v3756 = vmul.f32 %v3753, %v3755
    %v3757 = vadd.f32 %v3756, -0.16666654
    %v3758 = vmul.f32 %v3753, %v3757
    %v3759 = vadd.f32 %v3758, 1.0
    %v3760 = vmul.f32 %v3759, %v3744
    %vm3761 = vweird.f32 %v2530
    %v3762 = vand.u32 %v3745, 3
    %vm3763 = vcmp.lt.s32.totalorder %v3762, 2
    %vm3764 = vcmp.eq.s32.totalorder %v3762, 0
    %v3765 = vxor.u32 %v3760, 2147483648
    %v3766 = vsel %vm3764, %v3752, %v3765
    %vm3767 = vcmp.eq.s32.totalorder %v3762, 2
    %v3768 = vxor.u32 %v3752, 2147483648
    %v3769 = vsel %vm3767, %v3768, %v3760
    %v3770 = vsel %vm3763, %v3766, %v3769
    %v3771 = vsel %vm3761, nan, %v3770
    %s3772 = scalar_lea.vmem [#allocation5], 192
    %3773 = vst [vmem:[%s3772] sm:$0xff] %v3309
    %3774 = vst [vmem:[%s3772 + $0x8] sm:$0xff] %v3463
    %3775 = vst [vmem:[%s3772 + $0x10] sm:$0xff] %v3617
    %3776 = vst [vmem:[%s3772 + $0x18] sm:$0xff] %v3771
    %v3777 = vmul.f32 %v23, 512.0
    %v3778 = vmul.f32 %v24, 512.0
    %v3779 = vmul.f32 %v25, 512.0
    %v3780 = vmul.f32 %v26, 512.0
    %v3781 = vand.u32 2147483647, %v3777
    %vm3782 = vcmp.le.f32.partialorder %v3781, 0.7853982
    %vm3783 = vcmp.lt.s32.totalorder %v3777, 0
    %v3784 = vand.u32 %v3777, 2139095040
    %v3785 = vshrl.u32 %v3784, 23
    %v3786 = vsub.s32 %v3785, 127
    %v3787 = vand.u32 2147483647, %v3777
    %v3788 = vand.u32 %v3787, 8388607
    %v3789 = vor.u32 %v3788, 8388608
    %v3790 = vsub.s32 0, %v3789
    %v3791 = vadd.s32 %v3786, 1
    %vm3792 = vcmp.gt.s32.totalorder %v3791, 0
    %v3793 = vsel %vm3792, %v3791, 0
    %v3794 = vshrl.u32 %v3793, 5
    %v3795 = vand.u32 %v3793, 31
    %v3796 = vsub.s32 32, %v3795
    %v3797 = vshrl.u32 683565275, %v3796
    %v3798 = vshll.u32 683565275, %v3795
    %v3799 = vshrl.u32 2475754826, %v3796
    %v3800 = vor.u32 %v3798, %v3799
    %v3801 = vshll.u32 2475754826, %v3795
    %v3802 = vshrl.u32 2131351028, %v3796
    %v3803 = vor.u32 %v3801, %v3802
    %v3804 = vshll.u32 2131351028, %v3795
    %v3805 = vshrl.u32 2102212464, %v3796
    %v3806 = vor.u32 %v3804, %v3805
    %v3807 = vshll.u32 2102212464, %v3795
    %v3808 = vshrl.u32 920167782, %v3796
    %v3809 = vor.u32 %v3807, %v3808
    %v3810 = vshll.u32 920167782, %v3795
    %v3811 = vshrl.u32 1326507024, %v3796
    %v3812 = vor.u32 %v3810, %v3811
    %vm3813 = vcmp.lt.s32.totalorder %v3794, 1
    %vm3814 = vcmp.lt.s32.totalorder %v3794, 2
    %vm3815 = vcmp.lt.s32.totalorder %v3794, 3
    %vm3816 = vcmp.lt.s32.totalorder %v3794, 4
    %v3817 = vsel %vm3813, %v3797, %v3800
    %v3818 = vsel %vm3816, %v3806, 2102212464
    %v3819 = vsel %vm3815, %v3803, %v3818
    %v3820 = vsel %vm3814, %v3817, %v3819
    %v3821 = vsel %vm3813, %v3800, %v3803
    %v3822 = vsel %vm3816, %v3809, 920167782
    %v3823 = vsel %vm3815, %v3806, %v3822
    %v3824 = vsel %vm3814, %v3821, %v3823
    %v3825 = vsel %vm3813, %v3803, %v3806
    %v3826 = vsel %vm3816, %v3812, 1326507024
    %v3827 = vsel %vm3815, %v3809, %v3826
    %v3828 = vsel %vm3814, %v3825, %v3827
    %v3829 = vshll.u32 %v3789, 8
    %v3830 = vand.u32 %v3829, 65535
    %v3831 = vshrl.u32 %v3829, 16
    %v3832 = vand.u32 %v3828, 65535
    %v3833 = vshrl.u32 %v3828, 16
    %v3834 = vmul.u32 %v3830, %v3832
    %v3835 = vmul.u32 %v3830, %v3833
    %v3836 = vmul.u32 %v3831, %v3832
    %v3837 = vmul.u32 %v3831, %v3833
    %v3838 = vshll.u32 %v3835, 16
    %v3839 = vshrl.u32 %v3835, 16
    %v3840 = vshll.u32 %v3836, 16
    %v3841 = vshrl.u32 %v3836, 16
    %vm3842 = vc.u32 %v3834, %v3838
    %v3843 = vsel %vm3842, 1, 0
    %v3844 = vadd.s32 %v3834, %v3838
    %v3845 = vadd.s32 %v3837, %v3843
    %vm3846 = vc.u32 %v3844, %v3840
    %v3847 = vsel %vm3846, 1, 0
    %v3848 = vadd.s32 %v3844, %v3840
    %v3849 = vadd.s32 %v3845, %v3847
    %v3850 = vadd.s32 %v3849, %v3839
    %v3851 = vadd.s32 %v3850, %v3841
    %v3852 = vand.u32 %v3829, 65535
    %v3853 = vshrl.u32 %v3829, 16
    %v3854 = vand.u32 %v3824, 65535
    %v3855 = vshrl.u32 %v3824, 16
    %v3856 = vmul.u32 %v3852, %v3854
    %v3857 = vmul.u32 %v3852, %v3855
    %v3858 = vmul.u32 %v3853, %v3854
    %v3859 = vmul.u32 %v3853, %v3855
    %v3860 = vshll.u32 %v3857, 16
    %v3861 = vshrl.u32 %v3857, 16
    %v3862 = vshll.u32 %v3858, 16
    %v3863 = vshrl.u32 %v3858, 16
    %vm3864 = vc.u32 %v3856, %v3860
    %v3865 = vsel %vm3864, 1, 0
    %v3866 = vadd.s32 %v3856, %v3860
    %v3867 = vadd.s32 %v3859, %v3865
    %vm3868 = vc.u32 %v3866, %v3862
    %v3869 = vsel %vm3868, 1, 0
    %v3870 = vadd.s32 %v3866, %v3862
    %v3871 = vadd.s32 %v3867, %v3869
    %v3872 = vadd.s32 %v3871, %v3861
    %v3873 = vadd.s32 %v3872, %v3863
    %v3874 = vmul.u32 %v3829, %v3820
    %v3875 = vadd.s32 %v3851, %v3870
    %vm3876 = vc.u32 %v3851, %v3870
    %v3877 = vadd.s32 %v3873, 1
    %v3878 = vsel %vm3876, %v3877, %v3873
    %v3879 = vadd.s32 %v3874, %v3878
    %v3880 = vadd.s32 %v3879, 536870912
    %v3881 = vshrl.u32 %v3880, 30
    %v3882 = vshll.u32 %v3881, 30
    %v3883 = vsub.s32 %v3879, %v3882
    %vm3884 = vcmp.lt.s32.totalorder %v3883, 0
    %v3885 = vsub.s32 0, %v3883
    %v3886 = vsel %vm3884, %v3885, %v3883
    %v3887 = vclz %v3886
    %v3888 = vsub.s32 %v3887, 2
    %vm3889 = vcmp.gt.s32.totalorder 0, %v3888
    %v3890 = vsel %vm3889, 0, %v3888
    %v3891 = vsub.s32 32, %v3890
    %v3892 = vshll.u32 %v3883, %v3890
    %v3893 = vshrl.u32 %v3875, %v3891
    %v3894 = vor.u32 %v3892, %v3893
    %v3895 = vsub.s32 4294967266, %v3890
    %v3896 = vadd.s32 %v3895, 127
    %v3897 = vshll.u32 %v3896, 23
    %v3898 = vor.u32 4788187, %v3897
    %v3899 = vand.u32 2147483647, %v3898
    %v3901 = vcvt.s32.f32 %v3894
    %v3902 = vmul.f32 %v3901, %v3899
    %v3903 = vxor.u32 %v3902, 2147483648
    %v3904 = vsel %vm3783, %v3903, %v3902
    %v3905 = vsub.s32 4, %v3881
    %v3906 = vsel %vm3783, %v3905, %v3881
    %v3907 = vsel %vm3782, %v3777, %v3904
    %v3908 = vsel %vm3782, 0, %v3906
    %v3909 = vmul.f32 %v3907, %v3907
    %v3910 = vmul.f32 %v3909, -0.001358992
    %v3911 = vadd.f32 %v3910, 0.041655596
    %v3912 = vmul.f32 %v3909, %v3911
    %v3913 = vadd.f32 %v3912, -0.4999988
    %v3914 = vmul.f32 %v3909, %v3913
    %v3915 = vadd.f32 1.0, %v3914
    %v3916 = vmul.f32 %v3907, %v3907
    %v3917 = vmul.f32 %v3916, -0.00019511016
    %v3918 = vadd.f32 %v3917, 0.008332121
    %v3919 = vmul.f32 %v3916, %v3918
    %v3920 = vadd.f32 %v3919, -0.16666654
    %v3921 = vmul.f32 %v3916, %v3920
    %v3922 = vadd.f32 %v3921, 1.0
    %v3923 = vmul.f32 %v3922, %v3907
    %vm3924 = vweird.f32 %v3777
    %v3925 = vadd.s32 %v3908, 3
    %v3926 = vand.u32 %v3925, 3
    %vm3927 = vcmp.lt.s32.totalorder %v3926, 2
    %vm3928 = vcmp.eq.s32.totalorder %v3926, 0
    %v3929 = vxor.u32 %v3923, 2147483648
    %v3930 = vsel %vm3928, %v3915, %v3929
    %vm3931 = vcmp.eq.s32.totalorder %v3926, 2
    %v3932 = vxor.u32 %v3915, 2147483648
    %v3933 = vsel %vm3931, %v3932, %v3923
    %v3934 = vsel %vm3927, %v3930, %v3933
    %v3935 = vsel %vm3924, nan, %v3934
    %v3936 = vand.u32 2147483647, %v3778
    %vm3937 = vcmp.le.f32.partialorder %v3936, 0.7853982
    %vm3938 = vcmp.lt.s32.totalorder %v3778, 0
    %v3939 = vand.u32 %v3778, 2139095040
    %v3940 = vshrl.u32 %v3939, 23
    %v3941 = vsub.s32 %v3940, 127
    %v3942 = vand.u32 2147483647, %v3778
    %v3943 = vand.u32 %v3942, 8388607
    %v3944 = vor.u32 %v3943, 8388608
    %v3945 = vsub.s32 0, %v3944
    %v3946 = vadd.s32 %v3941, 1
    %vm3947 = vcmp.gt.s32.totalorder %v3946, 0
    %v3948 = vsel %vm3947, %v3946, 0
    %v3949 = vshrl.u32 %v3948, 5
    %v3950 = vand.u32 %v3948, 31
    %v3951 = vsub.s32 32, %v3950
    %v3952 = vshrl.u32 683565275, %v3951
    %v3953 = vshll.u32 683565275, %v3950
    %v3954 = vshrl.u32 2475754826, %v3951
    %v3955 = vor.u32 %v3953, %v3954
    %v3956 = vshll.u32 2475754826, %v3950
    %v3957 = vshrl.u32 2131351028, %v3951
    %v3958 = vor.u32 %v3956, %v3957
    %v3959 = vshll.u32 2131351028, %v3950
    %v3960 = vshrl.u32 2102212464, %v3951
    %v3961 = vor.u32 %v3959, %v3960
    %v3962 = vshll.u32 2102212464, %v3950
    %v3963 = vshrl.u32 920167782, %v3951
    %v3964 = vor.u32 %v3962, %v3963
    %v3965 = vshll.u32 920167782, %v3950
    %v3966 = vshrl.u32 1326507024, %v3951
    %v3967 = vor.u32 %v3965, %v3966
    %vm3968 = vcmp.lt.s32.totalorder %v3949, 1
    %vm3969 = vcmp.lt.s32.totalorder %v3949, 2
    %vm3970 = vcmp.lt.s32.totalorder %v3949, 3
    %vm3971 = vcmp.lt.s32.totalorder %v3949, 4
    %v3972 = vsel %vm3968, %v3952, %v3955
    %v3973 = vsel %vm3971, %v3961, 2102212464
    %v3974 = vsel %vm3970, %v3958, %v3973
    %v3975 = vsel %vm3969, %v3972, %v3974
    %v3976 = vsel %vm3968, %v3955, %v3958
    %v3977 = vsel %vm3971, %v3964, 920167782
    %v3978 = vsel %vm3970, %v3961, %v3977
    %v3979 = vsel %vm3969, %v3976, %v3978
    %v3980 = vsel %vm3968, %v3958, %v3961
    %v3981 = vsel %vm3971, %v3967, 1326507024
    %v3982 = vsel %vm3970, %v3964, %v3981
    %v3983 = vsel %vm3969, %v3980, %v3982
    %v3984 = vshll.u32 %v3944, 8
    %v3985 = vand.u32 %v3984, 65535
    %v3986 = vshrl.u32 %v3984, 16
    %v3987 = vand.u32 %v3983, 65535
    %v3988 = vshrl.u32 %v3983, 16
    %v3989 = vmul.u32 %v3985, %v3987
    %v3990 = vmul.u32 %v3985, %v3988
    %v3991 = vmul.u32 %v3986, %v3987
    %v3992 = vmul.u32 %v3986, %v3988
    %v3993 = vshll.u32 %v3990, 16
    %v3994 = vshrl.u32 %v3990, 16
    %v3995 = vshll.u32 %v3991, 16
    %v3996 = vshrl.u32 %v3991, 16
    %vm3997 = vc.u32 %v3989, %v3993
    %v3998 = vsel %vm3997, 1, 0
    %v3999 = vadd.s32 %v3989, %v3993
    %v4000 = vadd.s32 %v3992, %v3998
    %vm4001 = vc.u32 %v3999, %v3995
    %v4002 = vsel %vm4001, 1, 0
    %v4003 = vadd.s32 %v3999, %v3995
    %v4004 = vadd.s32 %v4000, %v4002
    %v4005 = vadd.s32 %v4004, %v3994
    %v4006 = vadd.s32 %v4005, %v3996
    %v4007 = vand.u32 %v3984, 65535
    %v4008 = vshrl.u32 %v3984, 16
    %v4009 = vand.u32 %v3979, 65535
    %v4010 = vshrl.u32 %v3979, 16
    %v4011 = vmul.u32 %v4007, %v4009
    %v4012 = vmul.u32 %v4007, %v4010
    %v4013 = vmul.u32 %v4008, %v4009
    %v4014 = vmul.u32 %v4008, %v4010
    %v4015 = vshll.u32 %v4012, 16
    %v4016 = vshrl.u32 %v4012, 16
    %v4017 = vshll.u32 %v4013, 16
    %v4018 = vshrl.u32 %v4013, 16
    %vm4019 = vc.u32 %v4011, %v4015
    %v4020 = vsel %vm4019, 1, 0
    %v4021 = vadd.s32 %v4011, %v4015
    %v4022 = vadd.s32 %v4014, %v4020
    %vm4023 = vc.u32 %v4021, %v4017
    %v4024 = vsel %vm4023, 1, 0
    %v4025 = vadd.s32 %v4021, %v4017
    %v4026 = vadd.s32 %v4022, %v4024
    %v4027 = vadd.s32 %v4026, %v4016
    %v4028 = vadd.s32 %v4027, %v4018
    %v4029 = vmul.u32 %v3984, %v3975
    %v4030 = vadd.s32 %v4006, %v4025
    %vm4031 = vc.u32 %v4006, %v4025
    %v4032 = vadd.s32 %v4028, 1
    %v4033 = vsel %vm4031, %v4032, %v4028
    %v4034 = vadd.s32 %v4029, %v4033
    %v4035 = vadd.s32 %v4034, 536870912
    %v4036 = vshrl.u32 %v4035, 30
    %v4037 = vshll.u32 %v4036, 30
    %v4038 = vsub.s32 %v4034, %v4037
    %vm4039 = vcmp.lt.s32.totalorder %v4038, 0
    %v4040 = vsub.s32 0, %v4038
    %v4041 = vsel %vm4039, %v4040, %v4038
    %v4042 = vclz %v4041
    %v4043 = vsub.s32 %v4042, 2
    %vm4044 = vcmp.gt.s32.totalorder 0, %v4043
    %v4045 = vsel %vm4044, 0, %v4043
    %v4046 = vsub.s32 32, %v4045
    %v4047 = vshll.u32 %v4038, %v4045
    %v4048 = vshrl.u32 %v4030, %v4046
    %v4049 = vor.u32 %v4047, %v4048
    %v4050 = vsub.s32 4294967266, %v4045
    %v4051 = vadd.s32 %v4050, 127
    %v4052 = vshll.u32 %v4051, 23
    %v4053 = vor.u32 4788187, %v4052
    %v4054 = vand.u32 2147483647, %v4053
    %v4056 = vcvt.s32.f32 %v4049
    %v4057 = vmul.f32 %v4056, %v4054
    %v4058 = vxor.u32 %v4057, 2147483648
    %v4059 = vsel %vm3938, %v4058, %v4057
    %v4060 = vsub.s32 4, %v4036
    %v4061 = vsel %vm3938, %v4060, %v4036
    %v4062 = vsel %vm3937, %v3778, %v4059
    %v4063 = vsel %vm3937, 0, %v4061
    %v4064 = vmul.f32 %v4062, %v4062
    %v4065 = vmul.f32 %v4064, -0.001358992
    %v4066 = vadd.f32 %v4065, 0.041655596
    %v4067 = vmul.f32 %v4064, %v4066
    %v4068 = vadd.f32 %v4067, -0.4999988
    %v4069 = vmul.f32 %v4064, %v4068
    %v4070 = vadd.f32 1.0, %v4069
    %v4071 = vmul.f32 %v4062, %v4062
    %v4072 = vmul.f32 %v4071, -0.00019511016
    %v4073 = vadd.f32 %v4072, 0.008332121
    %v4074 = vmul.f32 %v4071, %v4073
    %v4075 = vadd.f32 %v4074, -0.16666654
    %v4076 = vmul.f32 %v4071, %v4075
    %v4077 = vadd.f32 %v4076, 1.0
    %v4078 = vmul.f32 %v4077, %v4062
    %vm4079 = vweird.f32 %v3778
    %v4080 = vadd.s32 %v4063, 3
    %v4081 = vand.u32 %v4080, 3
    %vm4082 = vcmp.lt.s32.totalorder %v4081, 2
    %vm4083 = vcmp.eq.s32.totalorder %v4081, 0
    %v4084 = vxor.u32 %v4078, 2147483648
    %v4085 = vsel %vm4083, %v4070, %v4084
    %vm4086 = vcmp.eq.s32.totalorder %v4081, 2
    %v4087 = vxor.u32 %v4070, 2147483648
    %v4088 = vsel %vm4086, %v4087, %v4078
    %v4089 = vsel %vm4082, %v4085, %v4088
    %v4090 = vsel %vm4079, nan, %v4089
    %v4091 = vand.u32 2147483647, %v3779
    %vm4092 = vcmp.le.f32.partialorder %v4091, 0.7853982
    %vm4093 = vcmp.lt.s32.totalorder %v3779, 0
    %v4094 = vand.u32 %v3779, 2139095040
    %v4095 = vshrl.u32 %v4094, 23
    %v4096 = vsub.s32 %v4095, 127
    %v4097 = vand.u32 2147483647, %v3779
    %v4098 = vand.u32 %v4097, 8388607
    %v4099 = vor.u32 %v4098, 8388608
    %v4100 = vsub.s32 0, %v4099
    %v4101 = vadd.s32 %v4096, 1
    %vm4102 = vcmp.gt.s32.totalorder %v4101, 0
    %v4103 = vsel %vm4102, %v4101, 0
    %v4104 = vshrl.u32 %v4103, 5
    %v4105 = vand.u32 %v4103, 31
    %v4106 = vsub.s32 32, %v4105
    %v4107 = vshrl.u32 683565275, %v4106
    %v4108 = vshll.u32 683565275, %v4105
    %v4109 = vshrl.u32 2475754826, %v4106
    %v4110 = vor.u32 %v4108, %v4109
    %v4111 = vshll.u32 2475754826, %v4105
    %v4112 = vshrl.u32 2131351028, %v4106
    %v4113 = vor.u32 %v4111, %v4112
    %v4114 = vshll.u32 2131351028, %v4105
    %v4115 = vshrl.u32 2102212464, %v4106
    %v4116 = vor.u32 %v4114, %v4115
    %v4117 = vshll.u32 2102212464, %v4105
    %v4118 = vshrl.u32 920167782, %v4106
    %v4119 = vor.u32 %v4117, %v4118
    %v4120 = vshll.u32 920167782, %v4105
    %v4121 = vshrl.u32 1326507024, %v4106
    %v4122 = vor.u32 %v4120, %v4121
    %vm4123 = vcmp.lt.s32.totalorder %v4104, 1
    %vm4124 = vcmp.lt.s32.totalorder %v4104, 2
    %vm4125 = vcmp.lt.s32.totalorder %v4104, 3
    %vm4126 = vcmp.lt.s32.totalorder %v4104, 4
    %v4127 = vsel %vm4123, %v4107, %v4110
    %v4128 = vsel %vm4126, %v4116, 2102212464
    %v4129 = vsel %vm4125, %v4113, %v4128
    %v4130 = vsel %vm4124, %v4127, %v4129
    %v4131 = vsel %vm4123, %v4110, %v4113
    %v4132 = vsel %vm4126, %v4119, 920167782
    %v4133 = vsel %vm4125, %v4116, %v4132
    %v4134 = vsel %vm4124, %v4131, %v4133
    %v4135 = vsel %vm4123, %v4113, %v4116
    %v4136 = vsel %vm4126, %v4122, 1326507024
    %v4137 = vsel %vm4125, %v4119, %v4136
    %v4138 = vsel %vm4124, %v4135, %v4137
    %v4139 = vshll.u32 %v4099, 8
    %v4140 = vand.u32 %v4139, 65535
    %v4141 = vshrl.u32 %v4139, 16
    %v4142 = vand.u32 %v4138, 65535
    %v4143 = vshrl.u32 %v4138, 16
    %v4144 = vmul.u32 %v4140, %v4142
    %v4145 = vmul.u32 %v4140, %v4143
    %v4146 = vmul.u32 %v4141, %v4142
    %v4147 = vmul.u32 %v4141, %v4143
    %v4148 = vshll.u32 %v4145, 16
    %v4149 = vshrl.u32 %v4145, 16
    %v4150 = vshll.u32 %v4146, 16
    %v4151 = vshrl.u32 %v4146, 16
    %vm4152 = vc.u32 %v4144, %v4148
    %v4153 = vsel %vm4152, 1, 0
    %v4154 = vadd.s32 %v4144, %v4148
    %v4155 = vadd.s32 %v4147, %v4153
    %vm4156 = vc.u32 %v4154, %v4150
    %v4157 = vsel %vm4156, 1, 0
    %v4158 = vadd.s32 %v4154, %v4150
    %v4159 = vadd.s32 %v4155, %v4157
    %v4160 = vadd.s32 %v4159, %v4149
    %v4161 = vadd.s32 %v4160, %v4151
    %v4162 = vand.u32 %v4139, 65535
    %v4163 = vshrl.u32 %v4139, 16
    %v4164 = vand.u32 %v4134, 65535
    %v4165 = vshrl.u32 %v4134, 16
    %v4166 = vmul.u32 %v4162, %v4164
    %v4167 = vmul.u32 %v4162, %v4165
    %v4168 = vmul.u32 %v4163, %v4164
    %v4169 = vmul.u32 %v4163, %v4165
    %v4170 = vshll.u32 %v4167, 16
    %v4171 = vshrl.u32 %v4167, 16
    %v4172 = vshll.u32 %v4168, 16
    %v4173 = vshrl.u32 %v4168, 16
    %vm4174 = vc.u32 %v4166, %v4170
    %v4175 = vsel %vm4174, 1, 0
    %v4176 = vadd.s32 %v4166, %v4170
    %v4177 = vadd.s32 %v4169, %v4175
    %vm4178 = vc.u32 %v4176, %v4172
    %v4179 = vsel %vm4178, 1, 0
    %v4180 = vadd.s32 %v4176, %v4172
    %v4181 = vadd.s32 %v4177, %v4179
    %v4182 = vadd.s32 %v4181, %v4171
    %v4183 = vadd.s32 %v4182, %v4173
    %v4184 = vmul.u32 %v4139, %v4130
    %v4185 = vadd.s32 %v4161, %v4180
    %vm4186 = vc.u32 %v4161, %v4180
    %v4187 = vadd.s32 %v4183, 1
    %v4188 = vsel %vm4186, %v4187, %v4183
    %v4189 = vadd.s32 %v4184, %v4188
    %v4190 = vadd.s32 %v4189, 536870912
    %v4191 = vshrl.u32 %v4190, 30
    %v4192 = vshll.u32 %v4191, 30
    %v4193 = vsub.s32 %v4189, %v4192
    %vm4194 = vcmp.lt.s32.totalorder %v4193, 0
    %v4195 = vsub.s32 0, %v4193
    %v4196 = vsel %vm4194, %v4195, %v4193
    %v4197 = vclz %v4196
    %v4198 = vsub.s32 %v4197, 2
    %vm4199 = vcmp.gt.s32.totalorder 0, %v4198
    %v4200 = vsel %vm4199, 0, %v4198
    %v4201 = vsub.s32 32, %v4200
    %v4202 = vshll.u32 %v4193, %v4200
    %v4203 = vshrl.u32 %v4185, %v4201
    %v4204 = vor.u32 %v4202, %v4203
    %v4205 = vsub.s32 4294967266, %v4200
    %v4206 = vadd.s32 %v4205, 127
    %v4207 = vshll.u32 %v4206, 23
    %v4208 = vor.u32 4788187, %v4207
    %v4209 = vand.u32 2147483647, %v4208
    %v4211 = vcvt.s32.f32 %v4204
    %v4212 = vmul.f32 %v4211, %v4209
    %v4213 = vxor.u32 %v4212, 2147483648
    %v4214 = vsel %vm4093, %v4213, %v4212
    %v4215 = vsub.s32 4, %v4191
    %v4216 = vsel %vm4093, %v4215, %v4191
    %v4217 = vsel %vm4092, %v3779, %v4214
    %v4218 = vsel %vm4092, 0, %v4216
    %v4219 = vmul.f32 %v4217, %v4217
    %v4220 = vmul.f32 %v4219, -0.001358992
    %v4221 = vadd.f32 %v4220, 0.041655596
    %v4222 = vmul.f32 %v4219, %v4221
    %v4223 = vadd.f32 %v4222, -0.4999988
    %v4224 = vmul.f32 %v4219, %v4223
    %v4225 = vadd.f32 1.0, %v4224
    %v4226 = vmul.f32 %v4217, %v4217
    %v4227 = vmul.f32 %v4226, -0.00019511016
    %v4228 = vadd.f32 %v4227, 0.008332121
    %v4229 = vmul.f32 %v4226, %v4228
    %v4230 = vadd.f32 %v4229, -0.16666654
    %v4231 = vmul.f32 %v4226, %v4230
    %v4232 = vadd.f32 %v4231, 1.0
    %v4233 = vmul.f32 %v4232, %v4217
    %vm4234 = vweird.f32 %v3779
    %v4235 = vadd.s32 %v4218, 3
    %v4236 = vand.u32 %v4235, 3
    %vm4237 = vcmp.lt.s32.totalorder %v4236, 2
    %vm4238 = vcmp.eq.s32.totalorder %v4236, 0
    %v4239 = vxor.u32 %v4233, 2147483648
    %v4240 = vsel %vm4238, %v4225, %v4239
    %vm4241 = vcmp.eq.s32.totalorder %v4236, 2
    %v4242 = vxor.u32 %v4225, 2147483648
    %v4243 = vsel %vm4241, %v4242, %v4233
    %v4244 = vsel %vm4237, %v4240, %v4243
    %v4245 = vsel %vm4234, nan, %v4244
    %v4246 = vand.u32 2147483647, %v3780
    %vm4247 = vcmp.le.f32.partialorder %v4246, 0.7853982
    %vm4248 = vcmp.lt.s32.totalorder %v3780, 0
    %v4249 = vand.u32 %v3780, 2139095040
    %v4250 = vshrl.u32 %v4249, 23
    %v4251 = vsub.s32 %v4250, 127
    %v4252 = vand.u32 2147483647, %v3780
    %v4253 = vand.u32 %v4252, 8388607
    %v4254 = vor.u32 %v4253, 8388608
    %v4255 = vsub.s32 0, %v4254
    %v4256 = vadd.s32 %v4251, 1
    %vm4257 = vcmp.gt.s32.totalorder %v4256, 0
    %v4258 = vsel %vm4257, %v4256, 0
    %v4259 = vshrl.u32 %v4258, 5
    %v4260 = vand.u32 %v4258, 31
    %v4261 = vsub.s32 32, %v4260
    %v4262 = vshrl.u32 683565275, %v4261
    %v4263 = vshll.u32 683565275, %v4260
    %v4264 = vshrl.u32 2475754826, %v4261
    %v4265 = vor.u32 %v4263, %v4264
    %v4266 = vshll.u32 2475754826, %v4260
    %v4267 = vshrl.u32 2131351028, %v4261
    %v4268 = vor.u32 %v4266, %v4267
    %v4269 = vshll.u32 2131351028, %v4260
    %v4270 = vshrl.u32 2102212464, %v4261
    %v4271 = vor.u32 %v4269, %v4270
    %v4272 = vshll.u32 2102212464, %v4260
    %v4273 = vshrl.u32 920167782, %v4261
    %v4274 = vor.u32 %v4272, %v4273
    %v4275 = vshll.u32 920167782, %v4260
    %v4276 = vshrl.u32 1326507024, %v4261
    %v4277 = vor.u32 %v4275, %v4276
    %vm4278 = vcmp.lt.s32.totalorder %v4259, 1
    %vm4279 = vcmp.lt.s32.totalorder %v4259, 2
    %vm4280 = vcmp.lt.s32.totalorder %v4259, 3
    %vm4281 = vcmp.lt.s32.totalorder %v4259, 4
    %v4282 = vsel %vm4278, %v4262, %v4265
    %v4283 = vsel %vm4281, %v4271, 2102212464
    %v4284 = vsel %vm4280, %v4268, %v4283
    %v4285 = vsel %vm4279, %v4282, %v4284
    %v4286 = vsel %vm4278, %v4265, %v4268
    %v4287 = vsel %vm4281, %v4274, 920167782
    %v4288 = vsel %vm4280, %v4271, %v4287
    %v4289 = vsel %vm4279, %v4286, %v4288
    %v4290 = vsel %vm4278, %v4268, %v4271
    %v4291 = vsel %vm4281, %v4277, 1326507024
    %v4292 = vsel %vm4280, %v4274, %v4291
    %v4293 = vsel %vm4279, %v4290, %v4292
    %v4294 = vshll.u32 %v4254, 8
    %v4295 = vand.u32 %v4294, 65535
    %v4296 = vshrl.u32 %v4294, 16
    %v4297 = vand.u32 %v4293, 65535
    %v4298 = vshrl.u32 %v4293, 16
    %v4299 = vmul.u32 %v4295, %v4297
    %v4300 = vmul.u32 %v4295, %v4298
    %v4301 = vmul.u32 %v4296, %v4297
    %v4302 = vmul.u32 %v4296, %v4298
    %v4303 = vshll.u32 %v4300, 16
    %v4304 = vshrl.u32 %v4300, 16
    %v4305 = vshll.u32 %v4301, 16
    %v4306 = vshrl.u32 %v4301, 16
    %vm4307 = vc.u32 %v4299, %v4303
    %v4308 = vsel %vm4307, 1, 0
    %v4309 = vadd.s32 %v4299, %v4303
    %v4310 = vadd.s32 %v4302, %v4308
    %vm4311 = vc.u32 %v4309, %v4305
    %v4312 = vsel %vm4311, 1, 0
    %v4313 = vadd.s32 %v4309, %v4305
    %v4314 = vadd.s32 %v4310, %v4312
    %v4315 = vadd.s32 %v4314, %v4304
    %v4316 = vadd.s32 %v4315, %v4306
    %v4317 = vand.u32 %v4294, 65535
    %v4318 = vshrl.u32 %v4294, 16
    %v4319 = vand.u32 %v4289, 65535
    %v4320 = vshrl.u32 %v4289, 16
    %v4321 = vmul.u32 %v4317, %v4319
    %v4322 = vmul.u32 %v4317, %v4320
    %v4323 = vmul.u32 %v4318, %v4319
    %v4324 = vmul.u32 %v4318, %v4320
    %v4325 = vshll.u32 %v4322, 16
    %v4326 = vshrl.u32 %v4322, 16
    %v4327 = vshll.u32 %v4323, 16
    %v4328 = vshrl.u32 %v4323, 16
    %vm4329 = vc.u32 %v4321, %v4325
    %v4330 = vsel %vm4329, 1, 0
    %v4331 = vadd.s32 %v4321, %v4325
    %v4332 = vadd.s32 %v4324, %v4330
    %vm4333 = vc.u32 %v4331, %v4327
    %v4334 = vsel %vm4333, 1, 0
    %v4335 = vadd.s32 %v4331, %v4327
    %v4336 = vadd.s32 %v4332, %v4334
    %v4337 = vadd.s32 %v4336, %v4326
    %v4338 = vadd.s32 %v4337, %v4328
    %v4339 = vmul.u32 %v4294, %v4285
    %v4340 = vadd.s32 %v4316, %v4335
    %vm4341 = vc.u32 %v4316, %v4335
    %v4342 = vadd.s32 %v4338, 1
    %v4343 = vsel %vm4341, %v4342, %v4338
    %v4344 = vadd.s32 %v4339, %v4343
    %v4345 = vadd.s32 %v4344, 536870912
    %v4346 = vshrl.u32 %v4345, 30
    %v4347 = vshll.u32 %v4346, 30
    %v4348 = vsub.s32 %v4344, %v4347
    %vm4349 = vcmp.lt.s32.totalorder %v4348, 0
    %v4350 = vsub.s32 0, %v4348
    %v4351 = vsel %vm4349, %v4350, %v4348
    %v4352 = vclz %v4351
    %v4353 = vsub.s32 %v4352, 2
    %vm4354 = vcmp.gt.s32.totalorder 0, %v4353
    %v4355 = vsel %vm4354, 0, %v4353
    %v4356 = vsub.s32 32, %v4355
    %v4357 = vshll.u32 %v4348, %v4355
    %v4358 = vshrl.u32 %v4340, %v4356
    %v4359 = vor.u32 %v4357, %v4358
    %v4360 = vsub.s32 4294967266, %v4355
    %v4361 = vadd.s32 %v4360, 127
    %v4362 = vshll.u32 %v4361, 23
    %v4363 = vor.u32 4788187, %v4362
    %v4364 = vand.u32 2147483647, %v4363
    %v4366 = vcvt.s32.f32 %v4359
    %v4367 = vmul.f32 %v4366, %v4364
    %v4368 = vxor.u32 %v4367, 2147483648
    %v4369 = vsel %vm4248, %v4368, %v4367
    %v4370 = vsub.s32 4, %v4346
    %v4371 = vsel %vm4248, %v4370, %v4346
    %v4372 = vsel %vm4247, %v3780, %v4369
    %v4373 = vsel %vm4247, 0, %v4371
    %v4374 = vmul.f32 %v4372, %v4372
    %v4375 = vmul.f32 %v4374, -0.001358992
    %v4376 = vadd.f32 %v4375, 0.041655596
    %v4377 = vmul.f32 %v4374, %v4376
    %v4378 = vadd.f32 %v4377, -0.4999988
    %v4379 = vmul.f32 %v4374, %v4378
    %v4380 = vadd.f32 1.0, %v4379
    %v4381 = vmul.f32 %v4372, %v4372
    %v4382 = vmul.f32 %v4381, -0.00019511016
    %v4383 = vadd.f32 %v4382, 0.008332121
    %v4384 = vmul.f32 %v4381, %v4383
    %v4385 = vadd.f32 %v4384, -0.16666654
    %v4386 = vmul.f32 %v4381, %v4385
    %v4387 = vadd.f32 %v4386, 1.0
    %v4388 = vmul.f32 %v4387, %v4372
    %vm4389 = vweird.f32 %v3780
    %v4390 = vadd.s32 %v4373, 3
    %v4391 = vand.u32 %v4390, 3
    %vm4392 = vcmp.lt.s32.totalorder %v4391, 2
    %vm4393 = vcmp.eq.s32.totalorder %v4391, 0
    %v4394 = vxor.u32 %v4388, 2147483648
    %v4395 = vsel %vm4393, %v4380, %v4394
    %vm4396 = vcmp.eq.s32.totalorder %v4391, 2
    %v4397 = vxor.u32 %v4380, 2147483648
    %v4398 = vsel %vm4396, %v4397, %v4388
    %v4399 = vsel %vm4392, %v4395, %v4398
    %v4400 = vsel %vm4389, nan, %v4399
    %s4401 = scalar_lea.vmem [#allocation5], 224
    %4402 = vst [vmem:[%s4401] sm:$0xff] %v3935
    %4403 = vst [vmem:[%s4401 + $0x8] sm:$0xff] %v4090
    %4404 = vst [vmem:[%s4401 + $0x10] sm:$0xff] %v4245
    %4405 = vst [vmem:[%s4401 + $0x18] sm:$0xff] %v4400
    %v4406 = vand.u32 2147483647, %v3777
    %vm4407 = vcmp.le.f32.partialorder %v4406, 0.7853982
    %vm4408 = vcmp.lt.s32.totalorder %v3777, 0
    %v4409 = vand.u32 %v3777, 2139095040
    %v4410 = vshrl.u32 %v4409, 23
    %v4411 = vsub.s32 %v4410, 127
    %v4412 = vand.u32 2147483647, %v3777
    %v4413 = vand.u32 %v4412, 8388607
    %v4414 = vor.u32 %v4413, 8388608
    %v4415 = vsub.s32 0, %v4414
    %v4416 = vadd.s32 %v4411, 1
    %vm4417 = vcmp.gt.s32.totalorder %v4416, 0
    %v4418 = vsel %vm4417, %v4416, 0
    %v4419 = vshrl.u32 %v4418, 5
    %v4420 = vand.u32 %v4418, 31
    %v4421 = vsub.s32 32, %v4420
    %v4422 = vshrl.u32 683565275, %v4421
    %v4423 = vshll.u32 683565275, %v4420
    %v4424 = vshrl.u32 2475754826, %v4421
    %v4425 = vor.u32 %v4423, %v4424
    %v4426 = vshll.u32 2475754826, %v4420
    %v4427 = vshrl.u32 2131351028, %v4421
    %v4428 = vor.u32 %v4426, %v4427
    %v4429 = vshll.u32 2131351028, %v4420
    %v4430 = vshrl.u32 2102212464, %v4421
    %v4431 = vor.u32 %v4429, %v4430
    %v4432 = vshll.u32 2102212464, %v4420
    %v4433 = vshrl.u32 920167782, %v4421
    %v4434 = vor.u32 %v4432, %v4433
    %v4435 = vshll.u32 920167782, %v4420
    %v4436 = vshrl.u32 1326507024, %v4421
    %v4437 = vor.u32 %v4435, %v4436
    %vm4438 = vcmp.lt.s32.totalorder %v4419, 1
    %vm4439 = vcmp.lt.s32.totalorder %v4419, 2
    %vm4440 = vcmp.lt.s32.totalorder %v4419, 3
    %vm4441 = vcmp.lt.s32.totalorder %v4419, 4
    %v4442 = vsel %vm4438, %v4422, %v4425
    %v4443 = vsel %vm4441, %v4431, 2102212464
    %v4444 = vsel %vm4440, %v4428, %v4443
    %v4445 = vsel %vm4439, %v4442, %v4444
    %v4446 = vsel %vm4438, %v4425, %v4428
    %v4447 = vsel %vm4441, %v4434, 920167782
    %v4448 = vsel %vm4440, %v4431, %v4447
    %v4449 = vsel %vm4439, %v4446, %v4448
    %v4450 = vsel %vm4438, %v4428, %v4431
    %v4451 = vsel %vm4441, %v4437, 1326507024
    %v4452 = vsel %vm4440, %v4434, %v4451
    %v4453 = vsel %vm4439, %v4450, %v4452
    %v4454 = vshll.u32 %v4414, 8
    %v4455 = vand.u32 %v4454, 65535
    %v4456 = vshrl.u32 %v4454, 16
    %v4457 = vand.u32 %v4453, 65535
    %v4458 = vshrl.u32 %v4453, 16
    %v4459 = vmul.u32 %v4455, %v4457
    %v4460 = vmul.u32 %v4455, %v4458
    %v4461 = vmul.u32 %v4456, %v4457
    %v4462 = vmul.u32 %v4456, %v4458
    %v4463 = vshll.u32 %v4460, 16
    %v4464 = vshrl.u32 %v4460, 16
    %v4465 = vshll.u32 %v4461, 16
    %v4466 = vshrl.u32 %v4461, 16
    %vm4467 = vc.u32 %v4459, %v4463
    %v4468 = vsel %vm4467, 1, 0
    %v4469 = vadd.s32 %v4459, %v4463
    %v4470 = vadd.s32 %v4462, %v4468
    %vm4471 = vc.u32 %v4469, %v4465
    %v4472 = vsel %vm4471, 1, 0
    %v4473 = vadd.s32 %v4469, %v4465
    %v4474 = vadd.s32 %v4470, %v4472
    %v4475 = vadd.s32 %v4474, %v4464
    %v4476 = vadd.s32 %v4475, %v4466
    %v4477 = vand.u32 %v4454, 65535
    %v4478 = vshrl.u32 %v4454, 16
    %v4479 = vand.u32 %v4449, 65535
    %v4480 = vshrl.u32 %v4449, 16
    %v4481 = vmul.u32 %v4477, %v4479
    %v4482 = vmul.u32 %v4477, %v4480
    %v4483 = vmul.u32 %v4478, %v4479
    %v4484 = vmul.u32 %v4478, %v4480
    %v4485 = vshll.u32 %v4482, 16
    %v4486 = vshrl.u32 %v4482, 16
    %v4487 = vshll.u32 %v4483, 16
    %v4488 = vshrl.u32 %v4483, 16
    %vm4489 = vc.u32 %v4481, %v4485
    %v4490 = vsel %vm4489, 1, 0
    %v4491 = vadd.s32 %v4481, %v4485
    %v4492 = vadd.s32 %v4484, %v4490
    %vm4493 = vc.u32 %v4491, %v4487
    %v4494 = vsel %vm4493, 1, 0
    %v4495 = vadd.s32 %v4491, %v4487
    %v4496 = vadd.s32 %v4492, %v4494
    %v4497 = vadd.s32 %v4496, %v4486
    %v4498 = vadd.s32 %v4497, %v4488
    %v4499 = vmul.u32 %v4454, %v4445
    %v4500 = vadd.s32 %v4476, %v4495
    %vm4501 = vc.u32 %v4476, %v4495
    %v4502 = vadd.s32 %v4498, 1
    %v4503 = vsel %vm4501, %v4502, %v4498
    %v4504 = vadd.s32 %v4499, %v4503
    %v4505 = vadd.s32 %v4504, 536870912
    %v4506 = vshrl.u32 %v4505, 30
    %v4507 = vshll.u32 %v4506, 30
    %v4508 = vsub.s32 %v4504, %v4507
    %vm4509 = vcmp.lt.s32.totalorder %v4508, 0
    %v4510 = vsub.s32 0, %v4508
    %v4511 = vsel %vm4509, %v4510, %v4508
    %v4512 = vclz %v4511
    %v4513 = vsub.s32 %v4512, 2
    %vm4514 = vcmp.gt.s32.totalorder 0, %v4513
    %v4515 = vsel %vm4514, 0, %v4513
    %v4516 = vsub.s32 32, %v4515
    %v4517 = vshll.u32 %v4508, %v4515
    %v4518 = vshrl.u32 %v4500, %v4516
    %v4519 = vor.u32 %v4517, %v4518
    %v4520 = vsub.s32 4294967266, %v4515
    %v4521 = vadd.s32 %v4520, 127
    %v4522 = vshll.u32 %v4521, 23
    %v4523 = vor.u32 4788187, %v4522
    %v4524 = vand.u32 2147483647, %v4523
    %v4526 = vcvt.s32.f32 %v4519
    %v4527 = vmul.f32 %v4526, %v4524
    %v4528 = vxor.u32 %v4527, 2147483648
    %v4529 = vsel %vm4408, %v4528, %v4527
    %v4530 = vsub.s32 4, %v4506
    %v4531 = vsel %vm4408, %v4530, %v4506
    %v4532 = vsel %vm4407, %v3777, %v4529
    %v4533 = vsel %vm4407, 0, %v4531
    %v4534 = vmul.f32 %v4532, %v4532
    %v4535 = vmul.f32 %v4534, -0.001358992
    %v4536 = vadd.f32 %v4535, 0.041655596
    %v4537 = vmul.f32 %v4534, %v4536
    %v4538 = vadd.f32 %v4537, -0.4999988
    %v4539 = vmul.f32 %v4534, %v4538
    %v4540 = vadd.f32 1.0, %v4539
    %v4541 = vmul.f32 %v4532, %v4532
    %v4542 = vmul.f32 %v4541, -0.00019511016
    %v4543 = vadd.f32 %v4542, 0.008332121
    %v4544 = vmul.f32 %v4541, %v4543
    %v4545 = vadd.f32 %v4544, -0.16666654
    %v4546 = vmul.f32 %v4541, %v4545
    %v4547 = vadd.f32 %v4546, 1.0
    %v4548 = vmul.f32 %v4547, %v4532
    %vm4549 = vweird.f32 %v3777
    %v4550 = vand.u32 %v4533, 3
    %vm4551 = vcmp.lt.s32.totalorder %v4550, 2
    %vm4552 = vcmp.eq.s32.totalorder %v4550, 0
    %v4553 = vxor.u32 %v4548, 2147483648
    %v4554 = vsel %vm4552, %v4540, %v4553
    %vm4555 = vcmp.eq.s32.totalorder %v4550, 2
    %v4556 = vxor.u32 %v4540, 2147483648
    %v4557 = vsel %vm4555, %v4556, %v4548
    %v4558 = vsel %vm4551, %v4554, %v4557
    %v4559 = vsel %vm4549, nan, %v4558
    %v4560 = vand.u32 2147483647, %v3778
    %vm4561 = vcmp.le.f32.partialorder %v4560, 0.7853982
    %vm4562 = vcmp.lt.s32.totalorder %v3778, 0
    %v4563 = vand.u32 %v3778, 2139095040
    %v4564 = vshrl.u32 %v4563, 23
    %v4565 = vsub.s32 %v4564, 127
    %v4566 = vand.u32 2147483647, %v3778
    %v4567 = vand.u32 %v4566, 8388607
    %v4568 = vor.u32 %v4567, 8388608
    %v4569 = vsub.s32 0, %v4568
    %v4570 = vadd.s32 %v4565, 1
    %vm4571 = vcmp.gt.s32.totalorder %v4570, 0
    %v4572 = vsel %vm4571, %v4570, 0
    %v4573 = vshrl.u32 %v4572, 5
    %v4574 = vand.u32 %v4572, 31
    %v4575 = vsub.s32 32, %v4574
    %v4576 = vshrl.u32 683565275, %v4575
    %v4577 = vshll.u32 683565275, %v4574
    %v4578 = vshrl.u32 2475754826, %v4575
    %v4579 = vor.u32 %v4577, %v4578
    %v4580 = vshll.u32 2475754826, %v4574
    %v4581 = vshrl.u32 2131351028, %v4575
    %v4582 = vor.u32 %v4580, %v4581
    %v4583 = vshll.u32 2131351028, %v4574
    %v4584 = vshrl.u32 2102212464, %v4575
    %v4585 = vor.u32 %v4583, %v4584
    %v4586 = vshll.u32 2102212464, %v4574
    %v4587 = vshrl.u32 920167782, %v4575
    %v4588 = vor.u32 %v4586, %v4587
    %v4589 = vshll.u32 920167782, %v4574
    %v4590 = vshrl.u32 1326507024, %v4575
    %v4591 = vor.u32 %v4589, %v4590
    %vm4592 = vcmp.lt.s32.totalorder %v4573, 1
    %vm4593 = vcmp.lt.s32.totalorder %v4573, 2
    %vm4594 = vcmp.lt.s32.totalorder %v4573, 3
    %vm4595 = vcmp.lt.s32.totalorder %v4573, 4
    %v4596 = vsel %vm4592, %v4576, %v4579
    %v4597 = vsel %vm4595, %v4585, 2102212464
    %v4598 = vsel %vm4594, %v4582, %v4597
    %v4599 = vsel %vm4593, %v4596, %v4598
    %v4600 = vsel %vm4592, %v4579, %v4582
    %v4601 = vsel %vm4595, %v4588, 920167782
    %v4602 = vsel %vm4594, %v4585, %v4601
    %v4603 = vsel %vm4593, %v4600, %v4602
    %v4604 = vsel %vm4592, %v4582, %v4585
    %v4605 = vsel %vm4595, %v4591, 1326507024
    %v4606 = vsel %vm4594, %v4588, %v4605
    %v4607 = vsel %vm4593, %v4604, %v4606
    %v4608 = vshll.u32 %v4568, 8
    %v4609 = vand.u32 %v4608, 65535
    %v4610 = vshrl.u32 %v4608, 16
    %v4611 = vand.u32 %v4607, 65535
    %v4612 = vshrl.u32 %v4607, 16
    %v4613 = vmul.u32 %v4609, %v4611
    %v4614 = vmul.u32 %v4609, %v4612
    %v4615 = vmul.u32 %v4610, %v4611
    %v4616 = vmul.u32 %v4610, %v4612
    %v4617 = vshll.u32 %v4614, 16
    %v4618 = vshrl.u32 %v4614, 16
    %v4619 = vshll.u32 %v4615, 16
    %v4620 = vshrl.u32 %v4615, 16
    %vm4621 = vc.u32 %v4613, %v4617
    %v4622 = vsel %vm4621, 1, 0
    %v4623 = vadd.s32 %v4613, %v4617
    %v4624 = vadd.s32 %v4616, %v4622
    %vm4625 = vc.u32 %v4623, %v4619
    %v4626 = vsel %vm4625, 1, 0
    %v4627 = vadd.s32 %v4623, %v4619
    %v4628 = vadd.s32 %v4624, %v4626
    %v4629 = vadd.s32 %v4628, %v4618
    %v4630 = vadd.s32 %v4629, %v4620
    %v4631 = vand.u32 %v4608, 65535
    %v4632 = vshrl.u32 %v4608, 16
    %v4633 = vand.u32 %v4603, 65535
    %v4634 = vshrl.u32 %v4603, 16
    %v4635 = vmul.u32 %v4631, %v4633
    %v4636 = vmul.u32 %v4631, %v4634
    %v4637 = vmul.u32 %v4632, %v4633
    %v4638 = vmul.u32 %v4632, %v4634
    %v4639 = vshll.u32 %v4636, 16
    %v4640 = vshrl.u32 %v4636, 16
    %v4641 = vshll.u32 %v4637, 16
    %v4642 = vshrl.u32 %v4637, 16
    %vm4643 = vc.u32 %v4635, %v4639
    %v4644 = vsel %vm4643, 1, 0
    %v4645 = vadd.s32 %v4635, %v4639
    %v4646 = vadd.s32 %v4638, %v4644
    %vm4647 = vc.u32 %v4645, %v4641
    %v4648 = vsel %vm4647, 1, 0
    %v4649 = vadd.s32 %v4645, %v4641
    %v4650 = vadd.s32 %v4646, %v4648
    %v4651 = vadd.s32 %v4650, %v4640
    %v4652 = vadd.s32 %v4651, %v4642
    %v4653 = vmul.u32 %v4608, %v4599
    %v4654 = vadd.s32 %v4630, %v4649
    %vm4655 = vc.u32 %v4630, %v4649
    %v4656 = vadd.s32 %v4652, 1
    %v4657 = vsel %vm4655, %v4656, %v4652
    %v4658 = vadd.s32 %v4653, %v4657
    %v4659 = vadd.s32 %v4658, 536870912
    %v4660 = vshrl.u32 %v4659, 30
    %v4661 = vshll.u32 %v4660, 30
    %v4662 = vsub.s32 %v4658, %v4661
    %vm4663 = vcmp.lt.s32.totalorder %v4662, 0
    %v4664 = vsub.s32 0, %v4662
    %v4665 = vsel %vm4663, %v4664, %v4662
    %v4666 = vclz %v4665
    %v4667 = vsub.s32 %v4666, 2
    %vm4668 = vcmp.gt.s32.totalorder 0, %v4667
    %v4669 = vsel %vm4668, 0, %v4667
    %v4670 = vsub.s32 32, %v4669
    %v4671 = vshll.u32 %v4662, %v4669
    %v4672 = vshrl.u32 %v4654, %v4670
    %v4673 = vor.u32 %v4671, %v4672
    %v4674 = vsub.s32 4294967266, %v4669
    %v4675 = vadd.s32 %v4674, 127
    %v4676 = vshll.u32 %v4675, 23
    %v4677 = vor.u32 4788187, %v4676
    %v4678 = vand.u32 2147483647, %v4677
    %v4680 = vcvt.s32.f32 %v4673
    %v4681 = vmul.f32 %v4680, %v4678
    %v4682 = vxor.u32 %v4681, 2147483648
    %v4683 = vsel %vm4562, %v4682, %v4681
    %v4684 = vsub.s32 4, %v4660
    %v4685 = vsel %vm4562, %v4684, %v4660
    %v4686 = vsel %vm4561, %v3778, %v4683
    %v4687 = vsel %vm4561, 0, %v4685
    %v4688 = vmul.f32 %v4686, %v4686
    %v4689 = vmul.f32 %v4688, -0.001358992
    %v4690 = vadd.f32 %v4689, 0.041655596
    %v4691 = vmul.f32 %v4688, %v4690
    %v4692 = vadd.f32 %v4691, -0.4999988
    %v4693 = vmul.f32 %v4688, %v4692
    %v4694 = vadd.f32 1.0, %v4693
    %v4695 = vmul.f32 %v4686, %v4686
    %v4696 = vmul.f32 %v4695, -0.00019511016
    %v4697 = vadd.f32 %v4696, 0.008332121
    %v4698 = vmul.f32 %v4695, %v4697
    %v4699 = vadd.f32 %v4698, -0.16666654
    %v4700 = vmul.f32 %v4695, %v4699
    %v4701 = vadd.f32 %v4700, 1.0
    %v4702 = vmul.f32 %v4701, %v4686
    %vm4703 = vweird.f32 %v3778
    %v4704 = vand.u32 %v4687, 3
    %vm4705 = vcmp.lt.s32.totalorder %v4704, 2
    %vm4706 = vcmp.eq.s32.totalorder %v4704, 0
    %v4707 = vxor.u32 %v4702, 2147483648
    %v4708 = vsel %vm4706, %v4694, %v4707
    %vm4709 = vcmp.eq.s32.totalorder %v4704, 2
    %v4710 = vxor.u32 %v4694, 2147483648
    %v4711 = vsel %vm4709, %v4710, %v4702
    %v4712 = vsel %vm4705, %v4708, %v4711
    %v4713 = vsel %vm4703, nan, %v4712
    %v4714 = vand.u32 2147483647, %v3779
    %vm4715 = vcmp.le.f32.partialorder %v4714, 0.7853982
    %vm4716 = vcmp.lt.s32.totalorder %v3779, 0
    %v4717 = vand.u32 %v3779, 2139095040
    %v4718 = vshrl.u32 %v4717, 23
    %v4719 = vsub.s32 %v4718, 127
    %v4720 = vand.u32 2147483647, %v3779
    %v4721 = vand.u32 %v4720, 8388607
    %v4722 = vor.u32 %v4721, 8388608
    %v4723 = vsub.s32 0, %v4722
    %v4724 = vadd.s32 %v4719, 1
    %vm4725 = vcmp.gt.s32.totalorder %v4724, 0
    %v4726 = vsel %vm4725, %v4724, 0
    %v4727 = vshrl.u32 %v4726, 5
    %v4728 = vand.u32 %v4726, 31
    %v4729 = vsub.s32 32, %v4728
    %v4730 = vshrl.u32 683565275, %v4729
    %v4731 = vshll.u32 683565275, %v4728
    %v4732 = vshrl.u32 2475754826, %v4729
    %v4733 = vor.u32 %v4731, %v4732
    %v4734 = vshll.u32 2475754826, %v4728
    %v4735 = vshrl.u32 2131351028, %v4729
    %v4736 = vor.u32 %v4734, %v4735
    %v4737 = vshll.u32 2131351028, %v4728
    %v4738 = vshrl.u32 2102212464, %v4729
    %v4739 = vor.u32 %v4737, %v4738
    %v4740 = vshll.u32 2102212464, %v4728
    %v4741 = vshrl.u32 920167782, %v4729
    %v4742 = vor.u32 %v4740, %v4741
    %v4743 = vshll.u32 920167782, %v4728
    %v4744 = vshrl.u32 1326507024, %v4729
    %v4745 = vor.u32 %v4743, %v4744
    %vm4746 = vcmp.lt.s32.totalorder %v4727, 1
    %vm4747 = vcmp.lt.s32.totalorder %v4727, 2
    %vm4748 = vcmp.lt.s32.totalorder %v4727, 3
    %vm4749 = vcmp.lt.s32.totalorder %v4727, 4
    %v4750 = vsel %vm4746, %v4730, %v4733
    %v4751 = vsel %vm4749, %v4739, 2102212464
    %v4752 = vsel %vm4748, %v4736, %v4751
    %v4753 = vsel %vm4747, %v4750, %v4752
    %v4754 = vsel %vm4746, %v4733, %v4736
    %v4755 = vsel %vm4749, %v4742, 920167782
    %v4756 = vsel %vm4748, %v4739, %v4755
    %v4757 = vsel %vm4747, %v4754, %v4756
    %v4758 = vsel %vm4746, %v4736, %v4739
    %v4759 = vsel %vm4749, %v4745, 1326507024
    %v4760 = vsel %vm4748, %v4742, %v4759
    %v4761 = vsel %vm4747, %v4758, %v4760
    %v4762 = vshll.u32 %v4722, 8
    %v4763 = vand.u32 %v4762, 65535
    %v4764 = vshrl.u32 %v4762, 16
    %v4765 = vand.u32 %v4761, 65535
    %v4766 = vshrl.u32 %v4761, 16
    %v4767 = vmul.u32 %v4763, %v4765
    %v4768 = vmul.u32 %v4763, %v4766
    %v4769 = vmul.u32 %v4764, %v4765
    %v4770 = vmul.u32 %v4764, %v4766
    %v4771 = vshll.u32 %v4768, 16
    %v4772 = vshrl.u32 %v4768, 16
    %v4773 = vshll.u32 %v4769, 16
    %v4774 = vshrl.u32 %v4769, 16
    %vm4775 = vc.u32 %v4767, %v4771
    %v4776 = vsel %vm4775, 1, 0
    %v4777 = vadd.s32 %v4767, %v4771
    %v4778 = vadd.s32 %v4770, %v4776
    %vm4779 = vc.u32 %v4777, %v4773
    %v4780 = vsel %vm4779, 1, 0
    %v4781 = vadd.s32 %v4777, %v4773
    %v4782 = vadd.s32 %v4778, %v4780
    %v4783 = vadd.s32 %v4782, %v4772
    %v4784 = vadd.s32 %v4783, %v4774
    %v4785 = vand.u32 %v4762, 65535
    %v4786 = vshrl.u32 %v4762, 16
    %v4787 = vand.u32 %v4757, 65535
    %v4788 = vshrl.u32 %v4757, 16
    %v4789 = vmul.u32 %v4785, %v4787
    %v4790 = vmul.u32 %v4785, %v4788
    %v4791 = vmul.u32 %v4786, %v4787
    %v4792 = vmul.u32 %v4786, %v4788
    %v4793 = vshll.u32 %v4790, 16
    %v4794 = vshrl.u32 %v4790, 16
    %v4795 = vshll.u32 %v4791, 16
    %v4796 = vshrl.u32 %v4791, 16
    %vm4797 = vc.u32 %v4789, %v4793
    %v4798 = vsel %vm4797, 1, 0
    %v4799 = vadd.s32 %v4789, %v4793
    %v4800 = vadd.s32 %v4792, %v4798
    %vm4801 = vc.u32 %v4799, %v4795
    %v4802 = vsel %vm4801, 1, 0
    %v4803 = vadd.s32 %v4799, %v4795
    %v4804 = vadd.s32 %v4800, %v4802
    %v4805 = vadd.s32 %v4804, %v4794
    %v4806 = vadd.s32 %v4805, %v4796
    %v4807 = vmul.u32 %v4762, %v4753
    %v4808 = vadd.s32 %v4784, %v4803
    %vm4809 = vc.u32 %v4784, %v4803
    %v4810 = vadd.s32 %v4806, 1
    %v4811 = vsel %vm4809, %v4810, %v4806
    %v4812 = vadd.s32 %v4807, %v4811
    %v4813 = vadd.s32 %v4812, 536870912
    %v4814 = vshrl.u32 %v4813, 30
    %v4815 = vshll.u32 %v4814, 30
    %v4816 = vsub.s32 %v4812, %v4815
    %vm4817 = vcmp.lt.s32.totalorder %v4816, 0
    %v4818 = vsub.s32 0, %v4816
    %v4819 = vsel %vm4817, %v4818, %v4816
    %v4820 = vclz %v4819
    %v4821 = vsub.s32 %v4820, 2
    %vm4822 = vcmp.gt.s32.totalorder 0, %v4821
    %v4823 = vsel %vm4822, 0, %v4821
    %v4824 = vsub.s32 32, %v4823
    %v4825 = vshll.u32 %v4816, %v4823
    %v4826 = vshrl.u32 %v4808, %v4824
    %v4827 = vor.u32 %v4825, %v4826
    %v4828 = vsub.s32 4294967266, %v4823
    %v4829 = vadd.s32 %v4828, 127
    %v4830 = vshll.u32 %v4829, 23
    %v4831 = vor.u32 4788187, %v4830
    %v4832 = vand.u32 2147483647, %v4831
    %v4834 = vcvt.s32.f32 %v4827
    %v4835 = vmul.f32 %v4834, %v4832
    %v4836 = vxor.u32 %v4835, 2147483648
    %v4837 = vsel %vm4716, %v4836, %v4835
    %v4838 = vsub.s32 4, %v4814
    %v4839 = vsel %vm4716, %v4838, %v4814
    %v4840 = vsel %vm4715, %v3779, %v4837
    %v4841 = vsel %vm4715, 0, %v4839
    %v4842 = vmul.f32 %v4840, %v4840
    %v4843 = vmul.f32 %v4842, -0.001358992
    %v4844 = vadd.f32 %v4843, 0.041655596
    %v4845 = vmul.f32 %v4842, %v4844
    %v4846 = vadd.f32 %v4845, -0.4999988
    %v4847 = vmul.f32 %v4842, %v4846
    %v4848 = vadd.f32 1.0, %v4847
    %v4849 = vmul.f32 %v4840, %v4840
    %v4850 = vmul.f32 %v4849, -0.00019511016
    %v4851 = vadd.f32 %v4850, 0.008332121
    %v4852 = vmul.f32 %v4849, %v4851
    %v4853 = vadd.f32 %v4852, -0.16666654
    %v4854 = vmul.f32 %v4849, %v4853
    %v4855 = vadd.f32 %v4854, 1.0
    %v4856 = vmul.f32 %v4855, %v4840
    %vm4857 = vweird.f32 %v3779
    %v4858 = vand.u32 %v4841, 3
    %vm4859 = vcmp.lt.s32.totalorder %v4858, 2
    %vm4860 = vcmp.eq.s32.totalorder %v4858, 0
    %v4861 = vxor.u32 %v4856, 2147483648
    %v4862 = vsel %vm4860, %v4848, %v4861
    %vm4863 = vcmp.eq.s32.totalorder %v4858, 2
    %v4864 = vxor.u32 %v4848, 2147483648
    %v4865 = vsel %vm4863, %v4864, %v4856
    %v4866 = vsel %vm4859, %v4862, %v4865
    %v4867 = vsel %vm4857, nan, %v4866
    %v4868 = vand.u32 2147483647, %v3780
    %vm4869 = vcmp.le.f32.partialorder %v4868, 0.7853982
    %vm4870 = vcmp.lt.s32.totalorder %v3780, 0
    %v4871 = vand.u32 %v3780, 2139095040
    %v4872 = vshrl.u32 %v4871, 23
    %v4873 = vsub.s32 %v4872, 127
    %v4874 = vand.u32 2147483647, %v3780
    %v4875 = vand.u32 %v4874, 8388607
    %v4876 = vor.u32 %v4875, 8388608
    %v4877 = vsub.s32 0, %v4876
    %v4878 = vadd.s32 %v4873, 1
    %vm4879 = vcmp.gt.s32.totalorder %v4878, 0
    %v4880 = vsel %vm4879, %v4878, 0
    %v4881 = vshrl.u32 %v4880, 5
    %v4882 = vand.u32 %v4880, 31
    %v4883 = vsub.s32 32, %v4882
    %v4884 = vshrl.u32 683565275, %v4883
    %v4885 = vshll.u32 683565275, %v4882
    %v4886 = vshrl.u32 2475754826, %v4883
    %v4887 = vor.u32 %v4885, %v4886
    %v4888 = vshll.u32 2475754826, %v4882
    %v4889 = vshrl.u32 2131351028, %v4883
    %v4890 = vor.u32 %v4888, %v4889
    %v4891 = vshll.u32 2131351028, %v4882
    %v4892 = vshrl.u32 2102212464, %v4883
    %v4893 = vor.u32 %v4891, %v4892
    %v4894 = vshll.u32 2102212464, %v4882
    %v4895 = vshrl.u32 920167782, %v4883
    %v4896 = vor.u32 %v4894, %v4895
    %v4897 = vshll.u32 920167782, %v4882
    %v4898 = vshrl.u32 1326507024, %v4883
    %v4899 = vor.u32 %v4897, %v4898
    %vm4900 = vcmp.lt.s32.totalorder %v4881, 1
    %vm4901 = vcmp.lt.s32.totalorder %v4881, 2
    %vm4902 = vcmp.lt.s32.totalorder %v4881, 3
    %vm4903 = vcmp.lt.s32.totalorder %v4881, 4
    %v4904 = vsel %vm4900, %v4884, %v4887
    %v4905 = vsel %vm4903, %v4893, 2102212464
    %v4906 = vsel %vm4902, %v4890, %v4905
    %v4907 = vsel %vm4901, %v4904, %v4906
    %v4908 = vsel %vm4900, %v4887, %v4890
    %v4909 = vsel %vm4903, %v4896, 920167782
    %v4910 = vsel %vm4902, %v4893, %v4909
    %v4911 = vsel %vm4901, %v4908, %v4910
    %v4912 = vsel %vm4900, %v4890, %v4893
    %v4913 = vsel %vm4903, %v4899, 1326507024
    %v4914 = vsel %vm4902, %v4896, %v4913
    %v4915 = vsel %vm4901, %v4912, %v4914
    %v4916 = vshll.u32 %v4876, 8
    %v4917 = vand.u32 %v4916, 65535
    %v4918 = vshrl.u32 %v4916, 16
    %v4919 = vand.u32 %v4915, 65535
    %v4920 = vshrl.u32 %v4915, 16
    %v4921 = vmul.u32 %v4917, %v4919
    %v4922 = vmul.u32 %v4917, %v4920
    %v4923 = vmul.u32 %v4918, %v4919
    %v4924 = vmul.u32 %v4918, %v4920
    %v4925 = vshll.u32 %v4922, 16
    %v4926 = vshrl.u32 %v4922, 16
    %v4927 = vshll.u32 %v4923, 16
    %v4928 = vshrl.u32 %v4923, 16
    %vm4929 = vc.u32 %v4921, %v4925
    %v4930 = vsel %vm4929, 1, 0
    %v4931 = vadd.s32 %v4921, %v4925
    %v4932 = vadd.s32 %v4924, %v4930
    %vm4933 = vc.u32 %v4931, %v4927
    %v4934 = vsel %vm4933, 1, 0
    %v4935 = vadd.s32 %v4931, %v4927
    %v4936 = vadd.s32 %v4932, %v4934
    %v4937 = vadd.s32 %v4936, %v4926
    %v4938 = vadd.s32 %v4937, %v4928
    %v4939 = vand.u32 %v4916, 65535
    %v4940 = vshrl.u32 %v4916, 16
    %v4941 = vand.u32 %v4911, 65535
    %v4942 = vshrl.u32 %v4911, 16
    %v4943 = vmul.u32 %v4939, %v4941
    %v4944 = vmul.u32 %v4939, %v4942
    %v4945 = vmul.u32 %v4940, %v4941
    %v4946 = vmul.u32 %v4940, %v4942
    %v4947 = vshll.u32 %v4944, 16
    %v4948 = vshrl.u32 %v4944, 16
    %v4949 = vshll.u32 %v4945, 16
    %v4950 = vshrl.u32 %v4945, 16
    %vm4951 = vc.u32 %v4943, %v4947
    %v4952 = vsel %vm4951, 1, 0
    %v4953 = vadd.s32 %v4943, %v4947
    %v4954 = vadd.s32 %v4946, %v4952
    %vm4955 = vc.u32 %v4953, %v4949
    %v4956 = vsel %vm4955, 1, 0
    %v4957 = vadd.s32 %v4953, %v4949
    %v4958 = vadd.s32 %v4954, %v4956
    %v4959 = vadd.s32 %v4958, %v4948
    %v4960 = vadd.s32 %v4959, %v4950
    %v4961 = vmul.u32 %v4916, %v4907
    %v4962 = vadd.s32 %v4938, %v4957
    %vm4963 = vc.u32 %v4938, %v4957
    %v4964 = vadd.s32 %v4960, 1
    %v4965 = vsel %vm4963, %v4964, %v4960
    %v4966 = vadd.s32 %v4961, %v4965
    %v4967 = vadd.s32 %v4966, 536870912
    %v4968 = vshrl.u32 %v4967, 30
    %v4969 = vshll.u32 %v4968, 30
    %v4970 = vsub.s32 %v4966, %v4969
    %vm4971 = vcmp.lt.s32.totalorder %v4970, 0
    %v4972 = vsub.s32 0, %v4970
    %v4973 = vsel %vm4971, %v4972, %v4970
    %v4974 = vclz %v4973
    %v4975 = vsub.s32 %v4974, 2
    %vm4976 = vcmp.gt.s32.totalorder 0, %v4975
    %v4977 = vsel %vm4976, 0, %v4975
    %v4978 = vsub.s32 32, %v4977
    %v4979 = vshll.u32 %v4970, %v4977
    %v4980 = vshrl.u32 %v4962, %v4978
    %v4981 = vor.u32 %v4979, %v4980
    %v4982 = vsub.s32 4294967266, %v4977
    %v4983 = vadd.s32 %v4982, 127
    %v4984 = vshll.u32 %v4983, 23
    %v4985 = vor.u32 4788187, %v4984
    %v4986 = vand.u32 2147483647, %v4985
    %v4988 = vcvt.s32.f32 %v4981
    %v4989 = vmul.f32 %v4988, %v4986
    %v4990 = vxor.u32 %v4989, 2147483648
    %v4991 = vsel %vm4870, %v4990, %v4989
    %v4992 = vsub.s32 4, %v4968
    %v4993 = vsel %vm4870, %v4992, %v4968
    %v4994 = vsel %vm4869, %v3780, %v4991
    %v4995 = vsel %vm4869, 0, %v4993
    %v4996 = vmul.f32 %v4994, %v4994
    %v4997 = vmul.f32 %v4996, -0.001358992
    %v4998 = vadd.f32 %v4997, 0.041655596
    %v4999 = vmul.f32 %v4996, %v4998
    %v5000 = vadd.f32 %v4999, -0.4999988
    %v5001 = vmul.f32 %v4996, %v5000
    %v5002 = vadd.f32 1.0, %v5001
    %v5003 = vmul.f32 %v4994, %v4994
    %v5004 = vmul.f32 %v5003, -0.00019511016
    %v5005 = vadd.f32 %v5004, 0.008332121
    %v5006 = vmul.f32 %v5003, %v5005
    %v5007 = vadd.f32 %v5006, -0.16666654
    %v5008 = vmul.f32 %v5003, %v5007
    %v5009 = vadd.f32 %v5008, 1.0
    %v5010 = vmul.f32 %v5009, %v4994
    %vm5011 = vweird.f32 %v3780
    %v5012 = vand.u32 %v4995, 3
    %vm5013 = vcmp.lt.s32.totalorder %v5012, 2
    %vm5014 = vcmp.eq.s32.totalorder %v5012, 0
    %v5015 = vxor.u32 %v5010, 2147483648
    %v5016 = vsel %vm5014, %v5002, %v5015
    %vm5017 = vcmp.eq.s32.totalorder %v5012, 2
    %v5018 = vxor.u32 %v5002, 2147483648
    %v5019 = vsel %vm5017, %v5018, %v5010
    %v5020 = vsel %vm5013, %v5016, %v5019
    %v5021 = vsel %vm5011, nan, %v5020
    %s5022 = scalar_lea.vmem [#allocation5], 256
    %5023 = vst [vmem:[%s5022] sm:$0xff] %v4559
    %5024 = vst [vmem:[%s5022 + $0x8] sm:$0xff] %v4713
    %5025 = vst [vmem:[%s5022 + $0x10] sm:$0xff] %v4867
    %5026 = vst [vmem:[%s5022 + $0x18] sm:$0xff] %v5021
    // Predicated region
    $region10: #{tpu_custom_call.1} parent=1 // pred_check
      _
    $region11: #{tpu_custom_call.1} parent=1 // pred_check_branch
      %5028 = sbr.rel (0) target = $region13
    $region12: #{tpu_custom_call.1} parent=1 // pred_region
      %5030 = vsyncadd [#allocation4], 0
      %s5031 = sshll.u32 [#allocation5], 4
      %s5032 = int_to_ptr.vmem [resolvable:$true] %s5031
      %s5033 = sshll.u32 %s1, 4
      %s5034 = int_to_ptr.hbm [resolvable:$true] %s5033
      %5039 = dma.vmem_to_hbm [thread:$0]  %s5032, 4608, %s5034, [#allocation4], 512, 512, 32
    $region13: #{tpu_custom_call.1} parent=1 // pred_fallthru
      _
    // Predicated region
    $region14: #{tpu_custom_call.1} parent=1 // pred_check
      _
    $region15: #{tpu_custom_call.1} parent=1 // pred_check_branch
      %5041 = sbr.rel (0) target = $region17
    $region16: #{tpu_custom_call.1} parent=1 // pred_region
      %5043 = dma.done [#allocation4], 4608
    $region17: #{tpu_custom_call.1} parent=1 // pred_fallthru
      _
    %5044 = vsyncpa [#allocation3], 1
    %5045 = vsyncpa [#allocation4], 1

</llo_original>
